<compile_context>
chip_gen: v7x
topology: tpu7x:2x2x1
jax: 0.10.0
libtpu: 0.0.40
codegen_flags: <defaults>
</compile_context>

<pallas_src>
import functools
import math

import jax
import jax.numpy as jnp
from jax import lax
from jax.experimental import pallas as pl
from jax.experimental.pallas import tpu as pltpu

EPS = 1e-5      # PyTorch BatchNorm2d default eps
LANE = 128      # TPU lane width


def _round_up(x, m):
    return ((x + m - 1) // m) * m


def _device_kind():
    try:
        return jax.devices()[0].device_kind.lower()
    except Exception:
        return ""


_KIND = _device_kind()
_IS_V5 = "v5" in _KIND


def _vmem_budgets():
    """Generation-aware scoped-VMEM limit and weight-residency budget."""
    cap = None
    try:
        cap = int(pltpu.get_tpu_info().vmem_capacity_bytes)
    except Exception:
        cap = None
    if "7" in _KIND:                                   # v7x: 64 MiB VMEM per TensorCore
        return 40 * 2 ** 20, 24 * 2 ** 20
    if ("v5" in _KIND) or ("v6" in _KIND) or (cap is not None and cap >= 100 * 2 ** 20):
        return 96 * 2 ** 20, 64 * 2 ** 20              # v5e / v6e: 128 MiB per core
    return 32 * 2 ** 20, 24 * 2 ** 20                  # unknown / older: conservative


VMEM_LIMIT, VMEM_FUSED_BUDGET = _vmem_budgets()


def _k_padded(k):
    """Padded contraction width: multiple of 128, multiple of 512 once it is large."""
    return _round_up(k, 128) if k <= 2048 else _round_up(k, 512)


def _apply_act(y, act):
    if act == "relu":
        return jnp.maximum(y, 0.0)
    if act == "sigmoid":
        return 1.0 / (1.0 + jnp.exp(-y))               # exact sigmoid (review)
    return y


# ----------------------------- Pallas kernels ------------------------------ #

def _mlp_chain_kernel(*refs, acts):
    """Chain of matmul+bias+activation layers; all weights resident in VMEM.

    refs = (x_ref, w0, b0, w1, b1, ..., o_ref).  Used both for the fully-fused
    whole-network path and for the general path's linear tail.
    """
    x_ref, o_ref = refs[0], refs[-1]
    y = x_ref[...]
    n_layers = len(acts)
    for l in range(n_layers):
        w = refs[1 + 2 * l][...]
        b = refs[2 + 2 * l][...]
        z = jnp.dot(y, w, preferred_element_type=jnp.float32) + b
        z = _apply_act(z, acts[l])
        y = z.astype(jnp.bfloat16) if l + 1 < n_layers else z   # bf16 back onto the MXU
    o_ref[...] = y.astype(o_ref.dtype)


def _gemm_kernel_single_k(x_ref, w_ref, b_ref, o_ref, *, act):
    """Whole contraction in one tile: no reduction axis, no scratch, single store."""
    y = jnp.dot(x_ref[...], w_ref[...], preferred_element_type=jnp.float32) + b_ref[...]
    o_ref[...] = _apply_act(y, act).astype(o_ref.dtype)


def _gemm_kernel_multi_k(x_ref, w_ref, b_ref, o_ref, acc_ref, *, act):
    """Tiled (M,K)@(K,N) with f32 VMEM accumulator; bias + activation epilogue."""
    @pl.when(pl.program_id(2) == 0)
    def _init():
        acc_ref[...] = jnp.zeros_like(acc_ref)

    acc_ref[...] += jnp.dot(x_ref[...], w_ref[...], preferred_element_type=jnp.float32)

    @pl.when(pl.program_id(2) == pl.num_programs(2) - 1)
    def _finalize():
        o_ref[...] = _apply_act(acc_ref[...] + b_ref[...], act).astype(o_ref.dtype)


# --------------------------- kernel call wrappers ---------------------------- #

def mlp_chain(x, layers, *, out_dtype=jnp.float32):
    """x:(B,K0p) bf16; layers: dicts with w:(Kp,Np) bf16, b:(1,Np) f32, act.

    Single pallas_call, grid over batch-row tiles, weights fetched once (constant
    index_maps) and resident in VMEM.
    """
    B, K0 = x.shape
    assert K0 == layers[0]["w"].shape[0] and K0 % LANE == 0
    n_tiles = max(1, math.ceil(B / 512))
    if B >= 32:                      # give v7x's second TensorCore a tile to work on
        n_tiles = max(n_tiles, 2)
    tile_m = _round_up(math.ceil(B / n_tiles), 16)     # 16: bf16 sublane packing
    Mp = tile_m * n_tiles
    if Mp != B:
        x = jnp.pad(x, ((0, Mp - B), (0, 0)))
    n_out = layers[-1]["w"].shape[1]

    operands = [x]
    in_specs = [pl.BlockSpec((tile_m, K0), lambda i: (i, 0))]
    for l in layers:
        operands += [l["w"], l["b"]]
        in_specs += [pl.BlockSpec(l["w"].shape, lambda i: (0, 0)),
                     pl.BlockSpec(l["b"].shape, lambda i: (0, 0))]

    flops = 2 * Mp * sum(l["w"].shape[0] * l["w"].shape[1] for l in layers)
    bytes_acc = (x.size * 2
                 + sum(l["w"].size * 2 + l["b"].size * 4 for l in layers)
                 + Mp * n_out * jnp.dtype(out_dtype).itemsize)
    out = pl.pallas_call(
        functools.partial(_mlp_chain_kernel, acts=tuple(l["act"] for l in layers)),
        out_shape=jax.ShapeDtypeStruct((Mp, n_out), out_dtype),
        grid_spec=pltpu.PrefetchScalarGridSpec(
            num_scalar_prefetch=0,
            grid=(n_tiles,),
            in_specs=in_specs,
            out_specs=pl.BlockSpec((tile_m, n_out), lambda i: (i, 0))),
        compiler_params=pltpu.CompilerParams(
            dimension_semantics=("parallel",),
            vmem_limit_bytes=VMEM_LIMIT),
        cost_estimate=pl.CostEstimate(flops=int(flops),
                                      transcendentals=int(Mp * n_out),
                                      bytes_accessed=int(bytes_acc)),
    )(*operands)
    return out[:B]


def gemm_bias_act(x, w, b, *, act, out_dtype):
    """x:(M,K) bf16, w:(K,Np) bf16, b:(1,Np) f32 -> (M,Np).  K, Np multiples of 128."""
    M, K = x.shape
    Kw, Np = w.shape
    assert K == Kw and K % LANE == 0 and Np % LANE == 0

    # N tile: 256 fills the 2x256^2 MXU on v6e/v7x; keep 128 on v5e (4x128^2 MXU).
    tile_n = 256 if (Np % 256 == 0 and not _IS_V5) else 128
    # M tiling: balanced tiles <=1024, multiple of 16, no ~2x padding blow-up, and
    # >=2 tiles once M is large so v7x's second TensorCore shares the "parallel" axis.
    n_m = max(1, math.ceil(M / 1024))
    if M >= 256:
        n_m = max(n_m, 2)
    tile_m = _round_up(math.ceil(M / n_m), 16)
    Mp = tile_m * n_m
    if Mp != M:
        x = jnp.pad(x, ((0, Mp - M), (0, 0)))

    cost = pl.CostEstimate(
        flops=2 * Mp * K * Np,
        transcendentals=Mp * Np if act == "sigmoid" else 0,
        bytes_accessed=int(Mp * K * 2 * (Np // tile_n) + w.size * 2 + b.size * 4
                           + Mp * Np * jnp.dtype(out_dtype).itemsize))

    if K <= 2048:
        # Whole contraction in one tile -> no reduction axis, no accumulator scratch,
        # output written exactly once, both grid axes megacore-parallel.
        out = pl.pallas_call(
            functools.partial(_gemm_kernel_single_k, act=act),
            out_shape=jax.ShapeDtypeStruct((Mp, Np), out_dtype),
            grid_spec=pltpu.PrefetchScalarGridSpec(
                num_scalar_prefetch=0,
                grid=(n_m, Np // tile_n),
                in_specs=[pl.BlockSpec((tile_m, K), lambda i, j: (i, 0)),
                          pl.BlockSpec((K, tile_n), lambda i, j: (0, j)),
                          pl.BlockSpec((1, tile_n), lambda i, j: (0, j))],
                out_specs=pl.BlockSpec((tile_m, tile_n), lambda i, j: (i, j))),
            compiler_params=pltpu.CompilerParams(
                dimension_semantics=("parallel", "parallel"),
                vmem_limit_bytes=VMEM_LIMIT),
            cost_estimate=cost,
        )(x, w, b)
    else:
        tile_k = next(c for c in (1024, 512, 256, 128) if K % c == 0)
        out = pl.pallas_call(
            functools.partial(_gemm_kernel_multi_k, act=act),
            out_shape=jax.ShapeDtypeStruct((Mp, Np), out_dtype),
            grid_spec=pltpu.PrefetchScalarGridSpec(
                num_scalar_prefetch=0,
                grid=(n_m, Np // tile_n, K // tile_k),
                in_specs=[pl.BlockSpec((tile_m, tile_k), lambda i, j, k: (i, k)),
                          pl.BlockSpec((tile_k, tile_n), lambda i, j, k: (k, j)),
                          pl.BlockSpec((1, tile_n), lambda i, j, k: (0, j))],
                out_specs=pl.BlockSpec((tile_m, tile_n), lambda i, j, k: (i, j)),
                scratch_shapes=[pltpu.VMEM((tile_m, tile_n), jnp.float32)]),
            compiler_params=pltpu.CompilerParams(
                dimension_semantics=("parallel", "parallel", "arbitrary"),
                vmem_limit_bytes=VMEM_LIMIT),
            cost_estimate=cost,
        )(x, w, b)
    return out[:M]


# ---------------------- shared eval-mode conv+BN (host / ref) ---------------------- #

def _conv_bn(x_nchw, p, stride, padding, dilation):
    y = lax.conv_general_dilated(
        x_nchw, p["w"], window_strides=(stride, stride),
        padding=[(padding, padding), (padding, padding)],
        rhs_dilation=(dilation, dilation),
        dimension_numbers=("NCHW", "OIHW", "NCHW"))
    y = y + p["b"][None, :, None, None]
    inv = p["gamma"] / jnp.sqrt(p["var"] + EPS)
    return (y - p["mean"][None, :, None, None]) * inv[None, :, None, None] \
        + p["beta"][None, :, None, None]


# ------------------- fused whole-network path (small configs) ---------------------- #

def _affine_matrix(fn, in_shape):
    """Exact (W, b) with fn(x) == flatten(x) @ W + b for an affine fn on NCHW images."""
    size = int(math.prod(in_shape))
    bias = fn(jnp.zeros((1,) + tuple(in_shape), jnp.float32))[0]
    basis = jnp.eye(size, dtype=jnp.float32).reshape((size,) + tuple(in_shape))
    w = fn(basis) - bias[None, :]
    return w, bias


def _fused_feasible(params):
    """True when every composed layer matrix is small enough for VMEM residency."""
    H, W = params["input_size"]
    C = params["in_channels"]
    s, p, d = params["stride"], params["padding"], params["dilation"]
    nconv = len(params["conv"])
    if nconv == 0 or not params["linear"]:
        return False
    pairs, cur, max_basis = [], C * H * W, 0
    for i, cp in enumerate(params["conv"]):
        cout, cin, kh, kw = cp["w"].shape
        if cin != C:
            return False
        max_basis = max(max_basis, cur)
        H = (H + 2 * p - d * (kh - 1) - 1) // s + 1
        W = (W + 2 * p - d * (kw - 1) - 1) // s + 1
        if i == nconv - 1:
            lin0 = params["linear"][0]
            if lin0["w"].shape[1] != cout * H * W:
                return False
            pairs.append((cur, lin0["w"].shape[0]))
            cur = lin0["w"].shape[0]
        else:
            pairs.append((cur, cout * H * W))
            cur = cout * H * W
        C = cout
    for lp in params["linear"][1:]:
        if lp["w"].shape[1] != cur:
            return False
        pairs.append((cur, lp["w"].shape[0]))
        cur = lp["w"].shape[0]
    if max_basis > 4096:                                   # keep host composition cheap
        return False
    w_bytes = sum(_round_up(a, LANE) * _round_up(b, LANE) * 2 + _round_up(b, LANE) * 4
                  for a, b in pairs)
    return w_bytes <= VMEM_FUSED_BUDGET // 3               # room for buffers + activations


def prepare_fused(params):
    """Compose every linear segment of the network into dense padded bf16 matrices."""
    s, p, d = params["stride"], params["padding"], params["dilation"]
    H, W = params["input_size"]
    C = params["in_channels"]
    in_flat = C * H * W
    nconv = len(params["conv"])

    raw_layers = []
    for i, cp in enumerate(params["conv"]):
        cout, cin, kh, kw = cp["w"].shape
        in_shape = (cin, int(H), int(W))
        if i == nconv - 1:
            # last conv (+BN) has no ReLU -> compose conv + NCHW flatten + Linear[0].
            lin0 = params["linear"][0]

            def seg_fn(img, cp=cp, lin0=lin0):
                y = _conv_bn(img, cp, s, p, d).reshape(img.shape[0], -1)
                return y @ lin0["w"].T + lin0["b"]
            act = lin0["act"]
        else:
            def seg_fn(img, cp=cp):
                return _conv_bn(img, cp, s, p, d).reshape(img.shape[0], -1)
            act = "relu"
        w_mat, b_vec = _affine_matrix(seg_fn, in_shape)
        raw_layers.append((w_mat, b_vec, act))
        H = (H + 2 * p - d * (kh - 1) - 1) // s + 1
        W = (W + 2 * p - d * (kw - 1) - 1) // s + 1
        C = cout
    for lp in params["linear"][1:]:
        raw_layers.append((lp["w"].T, lp["b"], lp["act"]))

    layers = []
    for w_mat, b_vec, act in raw_layers:
        kin, nout = w_mat.shape
        kp_, np_ = _round_up(kin, LANE), _round_up(nout, LANE)
        layers.append(dict(
            w=jnp.pad(w_mat, ((0, kp_ - kin), (0, np_ - nout))).astype(jnp.bfloat16),
            b=jnp.pad(b_vec.reshape(1, nout).astype(jnp.float32),
                      ((0, 0), (0, np_ - nout))),
            act=act))
    return {"layers": layers,
            "in_flat": in_flat,
            "in_flat_pad": _round_up(in_flat, LANE),
            "out_classes": params["linear"][-1]["w"].shape[0]}


def net_forward_fused(x_nchw, fused):
    b = x_nchw.shape[0]
    x = x_nchw.reshape(b, -1).astype(jnp.bfloat16)          # NCHW flatten = basis order
    x = jnp.pad(x, ((0, 0), (0, fused["in_flat_pad"] - x.shape[1])))
    y = mlp_chain(x, fused["layers"], out_dtype=jnp.float32)
    return y[:, :fused["out_classes"]]


# -------------------- general tiled path (large configs, fallback) ------------------ #

def _im2col(x_nhwc, kh, kw, stride, padding, dilation):
    """NHWC -> (N*Ho*Wo, kh*kw*C) patches (built in bf16 to halve HBM traffic)."""
    # TODO(synk): move this into the kernel (strided window DMAs per (kh,kw)) to avoid
    #             the patches HBM round trip on large configs.
    N, H, W, C = x_nhwc.shape
    Ho = (H + 2 * padding - dilation * (kh - 1) - 1) // stride + 1
    Wo = (W + 2 * padding - dilation * (kw - 1) - 1) // stride + 1
    xp = jnp.pad(x_nhwc, ((0, 0), (padding, padding), (padding, padding), (0, 0)))
    cols = []
    for i in range(kh):
        for j in range(kw):
            di, dj = i * dilation, j * dilation
            cols.append(xp[:, di:di + (Ho - 1) * stride + 1:stride,
                           dj:dj + (Wo - 1) * stride + 1:stride, :])
    patches = jnp.stack(cols, axis=3)                       # (N, Ho, Wo, kh*kw, C)
    return patches.reshape(N * Ho * Wo, kh * kw * C), Ho, Wo


def conv_block(x_nhwc, layer, *, relu):
    """Conv2d + (folded) BatchNorm2d + optional ReLU, NHWC in / NHWC out."""
    patches, Ho, Wo = _im2col(x_nhwc, layer["kh"], layer["kw"],
                              layer["stride"], layer["padding"], layer["dilation"])
    k_nat = patches.shape[1]
    k_pad, n_pad = layer["w_mat"].shape
    if k_pad != k_nat:
        patches = jnp.pad(patches, ((0, 0), (0, k_pad - k_nat)))
    out = gemm_bias_act(patches, layer["w_mat"], layer["b_row"],
                        act="relu" if relu else "none", out_dtype=jnp.bfloat16)
    out = out.reshape(x_nhwc.shape[0], Ho, Wo, n_pad)
    return out[..., :layer["cout"]]


def mlp_tail(x, layers):
    """Linear tail: weights-resident gridded chain kernel when it fits, else tiled GEMMs."""
    B, K0 = x.shape
    tile_m_est = min(512, _round_up(max(B, 16), 16))
    act_bytes = 4 * tile_m_est * max([K0] + [l["w"].shape[1] for l in layers])
    w_bytes = sum(l["w"].size * 2 + l["b"].size * 4 for l in layers)
    if w_bytes + 2 * act_bytes <= VMEM_FUSED_BUDGET:
        return mlp_chain(x, layers, out_dtype=jnp.float32)
    y = x
    for i, l in enumerate(layers):
        last = i == len(layers) - 1
        y = gemm_bias_act(y, l["w"], l["b"], act=l["act"],
                          out_dtype=jnp.float32 if last else jnp.bfloat16)
    return y


def prepare_general(params):
    """One-time host prep: fold BN, build padded bf16 GEMM weights, permute linear-0."""
    stride, padding, dilation = params["stride"], params["padding"], params["dilation"]
    prepared = {"conv": [], "linear": []}
    for p in params["conv"]:
        cout, cin, kh, kw = p["w"].shape
        inv = p["gamma"] * lax.rsqrt(p["var"] + EPS)        # fold eval-mode BatchNorm2d
        w_f = p["w"] * inv[:, None, None, None]
        b_f = (p["b"] - p["mean"]) * inv + p["beta"]
        k_nat = kh * kw * cin
        k_pad, n_pad = _k_padded(k_nat), _round_up(cout, LANE)
        w_mat = jnp.transpose(w_f, (2, 3, 1, 0)).reshape(k_nat, cout)
        w_mat = jnp.pad(w_mat, ((0, k_pad - k_nat), (0, n_pad - cout))).astype(jnp.bfloat16)
        b_row = jnp.pad(b_f.reshape(1, cout), ((0, 0), (0, n_pad - cout))).astype(jnp.float32)
        prepared["conv"].append(dict(w_mat=w_mat, b_row=b_row, cout=cout, kh=kh, kw=kw,
                                     stride=stride, padding=padding, dilation=dilation))

    hf, wf = params["conv_out_hw"]
    c_last = params["conv"][-1]["w"].shape[0]
    prev_pad = None
    for idx, p in enumerate(params["linear"]):
        nout, nin = p["w"].shape
        w = p["w"]
        if idx == 0:
            # torch flattens NCHW as (c,h,w); our activation flattens NHWC as (h,w,c).
            w = w.reshape(nout, c_last, hf, wf).transpose(0, 2, 3, 1).reshape(nout, nin)
            k_pad = _k_padded(nin)
        else:
            k_pad = prev_pad
        n_pad = _round_up(nout, LANE)
        w_t = jnp.pad(w.T, ((0, k_pad - nin), (0, n_pad - nout))).astype(jnp.bfloat16)
        b_row = jnp.pad(p["b"].reshape(1, nout), ((0, 0), (0, n_pad - nout))).astype(jnp.float32)
        prepared["linear"].append(dict(w=w_t, b=b_row, act=p["act"], nout=nout))
        prev_pad = n_pad
    prepared["flat_pad"] = prepared["linear"][0]["w"].shape[0]
    prepared["flat_nat"] = params["flat_n"]
    prepared["out_classes"] = prepared["linear"][-1]["nout"]
    return prepared


def net_forward_general(x_nchw, prepared):
    x = jnp.transpose(x_nchw, (0, 2, 3, 1)).astype(jnp.bfloat16)   # single NCHW->NHWC
    nconv = len(prepared["conv"])
    for c, layer in enumerate(prepared["conv"]):
        x = conv_block(x, layer, relu=(c < nconv - 1))
        # Dropout2d(p=0.1) -> identity (eval mode)
    b = x.shape[0]
    x = x.reshape(b, -1)                                           # NHWC flatten
    x = jnp.pad(x, ((0, 0), (0, prepared["flat_pad"] - x.shape[1])))
    y = mlp_tail(x, prepared["linear"])
    # Dropout(p=0.5) -> identity (eval mode)
    return y[:, :prepared["out_classes"]].astype(jnp.float32)


# ------------------------------ parameter init ------------------------------ #

def init_params(key, input_size=(28, 28), in_channels=1, out_classes=10,
                kernel_size=4, stride=2, padding=1, dilation=1,
                conv_layers=2, linear_layers=2, expansion=5):
    """Deterministic synthetic parameters with the exact shapes of Net.__init__."""
    params = {"stride": stride, "padding": padding, "dilation": dilation,
              "input_size": tuple(input_size), "in_channels": in_channels,
              "conv": [], "linear": []}
    H, W = input_size
    for c in range(conv_layers):
        H = (H + 2 * padding - dilation * (kernel_size - 1) - 1) // stride + 1
        W = (W + 2 * padding - dilation * (kernel_size - 1) - 1) // stride + 1
        cin = in_channels * expansion ** c
        cout = expansion ** (c + 1)
        key, k1, k2, k3, k4 = jax.random.split(key, 5)
        params["conv"].append({
            "w": 0.1 * jax.random.normal(k1, (cout, cin, kernel_size, kernel_size), jnp.float32),
            "b": 0.1 * jax.random.normal(k2, (cout,), jnp.float32),
            "gamma": 1.0 + 0.05 * jax.random.normal(k3, (cout,), jnp.float32),
            "beta": 0.05 * jax.random.normal(k4, (cout,), jnp.float32),
            "mean": jnp.zeros((cout,), jnp.float32),      # BN running_mean init
            "var": jnp.ones((cout,), jnp.float32),        # BN running_var init
        })
    params["conv_out_hw"] = (int(H), int(W))
    N = int(H * W * expansion ** conv_layers)             # flatten width
    params["flat_n"] = N
    for _ in range(linear_layers):
        if int(N / expansion) > out_classes:
            nout = int(N / expansion)
            key, k1, k2 = jax.random.split(key, 3)
            params["linear"].append({
                "w": 0.05 * jax.random.normal(k1, (nout, N), jnp.float32),
                "b": 0.05 * jax.random.normal(k2, (nout,), jnp.float32),
                "act": "relu",
            })
            N = nout
    key, k1, k2 = jax.random.split(key, 3)
    params["linear"].append({
        "w": 0.05 * jax.random.normal(k1, (out_classes, N), jnp.float32),
        "b": 0.05 * jax.random.normal(k2, (out_classes,), jnp.float32),
        "act": "sigmoid",
    })
    return params


def prepare_params(params):
    prepared = {"general": prepare_general(params), "fused": None}
    if _fused_feasible(params):
        prepared["fused"] = prepare_fused(params)
    return prepared


def net_forward(x_nchw, prepared):
    if prepared["fused"] is not None:
        return net_forward_fused(x_nchw, prepared["fused"])
    return net_forward_general(x_nchw, prepared["general"])


# ------------------------- pure-JAX reference (check) ------------------------ #

def net_reference(x, params):
    s, p, d = params["stride"], params["padding"], params["dilation"]
    y = x
    nconv = len(params["conv"])
    for c, cp in enumerate(params["conv"]):
        y = _conv_bn(y, cp, s, p, d)
        if c < nconv - 1:
            y = jnp.maximum(y, 0.0)
    y = y.reshape(y.shape[0], -1)                                  # NCHW flatten
    for lp in params["linear"]:
        y = y @ lp["w"].T + lp["b"]
        y = jnp.maximum(y, 0.0) if lp["act"] == "relu" else jax.nn.sigmoid(y)
    return y


# ----------------------------------- main ----------------------------------- #

if __name__ == "__main__":
    key = jax.random.PRNGKey(0)
    kp, kx = jax.random.split(key)
    params = init_params(kp)                                 # default MNIST-shaped Net
    prepared = prepare_params(params)
    x = jax.random.normal(kx, (2, 1, 28, 28), jnp.float32)   # NCHW, batch=2

    out = jax.jit(lambda xx: net_forward(xx, prepared))(x)
    out = jax.block_until_ready(out)
    ref = jax.block_until_ready(jax.jit(lambda xx: net_reference(xx, params))(x))

    assert out.shape == (2, 10) and out.dtype == jnp.float32
    assert bool(jnp.all(jnp.isfinite(out)))
    assert bool(jnp.all((out >= 0.0) & (out <= 1.0)))        # sigmoid output range
    max_err = float(jnp.max(jnp.abs(out - ref)))
    assert max_err < 5e-2, f"mismatch vs reference: {max_err}"
    print("KERNEL_OK")
</pallas_src>

<mosaic_0001>
module attributes {stable_mosaic.version = 11 : i64} {
  func.func @_mlp_chain_kernel(%arg0: i32, %arg1: memref<16x896xbf16, #tpu.memory_space<vmem>>, %arg2: memref<896x1024xbf16, #tpu.memory_space<vmem>>, %arg3: memref<1x1024xf32, #tpu.memory_space<vmem>>, %arg4: memref<1024x256xbf16, #tpu.memory_space<vmem>>, %arg5: memref<1x256xf32, #tpu.memory_space<vmem>>, %arg6: memref<256x128xbf16, #tpu.memory_space<vmem>>, %arg7: memref<1x128xf32, #tpu.memory_space<vmem>>, %arg8: memref<128x128xbf16, #tpu.memory_space<vmem>>, %arg9: memref<1x128xf32, #tpu.memory_space<vmem>>, %arg10: memref<16x128xf32, #tpu.memory_space<vmem>>) attributes {dimension_semantics = [#tpu.dimension_semantics<parallel>], iteration_bounds = array<i64: 1>, scalar_prefetch = 0 : i64, scratch_operands = 0 : i64, tpu.core_type = #tpu.core_type<tc>, window_params = [{transform_indices = @transform_0, window_bounds = array<i64: 16, 896>}, {pipeline_mode = #tpu.pipeline_mode<synchronous>, transform_indices = @transform_1, window_bounds = array<i64: 896, 1024>}, {pipeline_mode = #tpu.pipeline_mode<synchronous>, transform_indices = @transform_2, window_bounds = array<i64: 1, 1024>}, {pipeline_mode = #tpu.pipeline_mode<synchronous>, transform_indices = @transform_3, window_bounds = array<i64: 1024, 256>}, {pipeline_mode = #tpu.pipeline_mode<synchronous>, transform_indices = @transform_4, window_bounds = array<i64: 1, 256>}, {pipeline_mode = #tpu.pipeline_mode<synchronous>, transform_indices = @transform_5, window_bounds = array<i64: 256, 128>}, {pipeline_mode = #tpu.pipeline_mode<synchronous>, transform_indices = @transform_6, window_bounds = array<i64: 1, 128>}, {pipeline_mode = #tpu.pipeline_mode<synchronous>, transform_indices = @transform_7, window_bounds = array<i64: 128, 128>}, {pipeline_mode = #tpu.pipeline_mode<synchronous>, transform_indices = @transform_8, window_bounds = array<i64: 1, 128>}, {transform_indices = @transform_9, window_bounds = array<i64: 16, 128>}]} {
    %c0 = arith.constant 0 : index
    %c0_0 = arith.constant 0 : index
    %0 = vector.load %arg1[%c0, %c0_0] : memref<16x896xbf16, #tpu.memory_space<vmem>>, vector<16x896xbf16>
    %c0_1 = arith.constant 0 : index
    %c0_2 = arith.constant 0 : index
    %1 = vector.load %arg2[%c0_1, %c0_2] : memref<896x1024xbf16, #tpu.memory_space<vmem>>, vector<896x1024xbf16>
    %c0_3 = arith.constant 0 : index
    %c0_4 = arith.constant 0 : index
    %2 = vector.load %arg3[%c0_3, %c0_4] : memref<1x1024xf32, #tpu.memory_space<vmem>>, vector<1x1024xf32>
    %cst = arith.constant dense<0.000000e+00> : vector<16x1024xf32>
    %3 = tpu.matmul %0, %1, %cst {dimension_numbers = #tpu.dot_dimension_numbers<[1], [0], [0], [1], [0, 0, 1, 1], [], []>} : vector<16x896xbf16>, vector<896x1024xbf16>, vector<16x1024xf32> -> vector<16x1024xf32>
    %4 = vector.broadcast %2 : vector<1x1024xf32> to vector<16x1024xf32>
    %5 = arith.addf %3, %4 : vector<16x1024xf32>
    %cst_5 = arith.constant 0.000000e+00 : f32
    %6 = vector.broadcast %cst_5 : f32 to vector<16x1024xf32>
    %7 = arith.maximumf %5, %6 : vector<16x1024xf32>
    %8 = arith.truncf %7 : vector<16x1024xf32> to vector<16x1024xbf16>
    %c0_6 = arith.constant 0 : index
    %c0_7 = arith.constant 0 : index
    %9 = vector.load %arg4[%c0_6, %c0_7] : memref<1024x256xbf16, #tpu.memory_space<vmem>>, vector<1024x256xbf16>
    %c0_8 = arith.constant 0 : index
    %c0_9 = arith.constant 0 : index
    %10 = vector.load %arg5[%c0_8, %c0_9] : memref<1x256xf32, #tpu.memory_space<vmem>>, vector<1x256xf32>
    %cst_10 = arith.constant dense<0.000000e+00> : vector<16x256xf32>
    %11 = tpu.matmul %8, %9, %cst_10 {dimension_numbers = #tpu.dot_dimension_numbers<[1], [0], [0], [1], [0, 0, 1, 1], [], []>} : vector<16x1024xbf16>, vector<1024x256xbf16>, vector<16x256xf32> -> vector<16x256xf32>
    %12 = vector.broadcast %10 : vector<1x256xf32> to vector<16x256xf32>
    %13 = arith.addf %11, %12 : vector<16x256xf32>
    %cst_11 = arith.constant 0.000000e+00 : f32
    %14 = vector.broadcast %cst_11 : f32 to vector<16x256xf32>
    %15 = arith.maximumf %13, %14 : vector<16x256xf32>
    %16 = arith.truncf %15 : vector<16x256xf32> to vector<16x256xbf16>
    %c0_12 = arith.constant 0 : index
    %c0_13 = arith.constant 0 : index
    %17 = vector.load %arg6[%c0_12, %c0_13] : memref<256x128xbf16, #tpu.memory_space<vmem>>, vector<256x128xbf16>
    %c0_14 = arith.constant 0 : index
    %c0_15 = arith.constant 0 : index
    %18 = vector.load %arg7[%c0_14, %c0_15] : memref<1x128xf32, #tpu.memory_space<vmem>>, vector<1x128xf32>
    %cst_16 = arith.constant dense<0.000000e+00> : vector<16x128xf32>
    %19 = tpu.matmul %16, %17, %cst_16 {dimension_numbers = #tpu.dot_dimension_numbers<[1], [0], [0], [1], [0, 0, 1, 1], [], []>} : vector<16x256xbf16>, vector<256x128xbf16>, vector<16x128xf32> -> vector<16x128xf32>
    %20 = vector.broadcast %18 : vector<1x128xf32> to vector<16x128xf32>
    %21 = arith.addf %19, %20 : vector<16x128xf32>
    %cst_17 = arith.constant 0.000000e+00 : f32
    %22 = vector.broadcast %cst_17 : f32 to vector<16x128xf32>
    %23 = arith.maximumf %21, %22 : vector<16x128xf32>
    %24 = arith.truncf %23 : vector<16x128xf32> to vector<16x128xbf16>
    %c0_18 = arith.constant 0 : index
    %c0_19 = arith.constant 0 : index
    %25 = vector.load %arg8[%c0_18, %c0_19] : memref<128x128xbf16, #tpu.memory_space<vmem>>, vector<128x128xbf16>
    %c0_20 = arith.constant 0 : index
    %c0_21 = arith.constant 0 : index
    %26 = vector.load %arg9[%c0_20, %c0_21] : memref<1x128xf32, #tpu.memory_space<vmem>>, vector<1x128xf32>
    %cst_22 = arith.constant dense<0.000000e+00> : vector<16x128xf32>
    %27 = tpu.matmul %24, %25, %cst_22 {dimension_numbers = #tpu.dot_dimension_numbers<[1], [0], [0], [1], [0, 0, 1, 1], [], []>} : vector<16x128xbf16>, vector<128x128xbf16>, vector<16x128xf32> -> vector<16x128xf32>
    %28 = vector.broadcast %26 : vector<1x128xf32> to vector<16x128xf32>
    %29 = arith.addf %27, %28 : vector<16x128xf32>
    %cst_23 = arith.constant 0.000000e+00 : f32
    %30 = vector.broadcast %cst_23 : f32 to vector<16x128xf32>
    %31 = arith.subf %30, %29 : vector<16x128xf32>
    %32 = math.exp %31 : vector<16x128xf32>
    %cst_24 = arith.constant 1.000000e+00 : f32
    %33 = vector.broadcast %cst_24 : f32 to vector<16x128xf32>
    %34 = arith.addf %33, %32 : vector<16x128xf32>
    %cst_25 = arith.constant 1.000000e+00 : f32
    %35 = vector.broadcast %cst_25 : f32 to vector<16x128xf32>
    %36 = arith.divf %35, %34 : vector<16x128xf32>
    %c0_26 = arith.constant 0 : index
    %c0_27 = arith.constant 0 : index
    %37 = vector.load %arg10[%c0_26, %c0_27] : memref<16x128xf32, #tpu.memory_space<vmem>>, vector<16x128xf32>
    tpu.vector_store %arg10[%c0_26, %c0_27], %36 {strides = array<i32>} : memref<16x128xf32, #tpu.memory_space<vmem>>, vector<16x128xf32>,
    return
  }
  func.func @transform_0(%arg0: i32) -> (i32, i32) {
    %c0_i32 = arith.constant 0 : i32
    %c0_i32_0 = arith.constant 0 : i32
    return %arg0, %c0_i32 : i32, i32
  }
  func.func @transform_1(%arg0: i32) -> (i32, i32) {
    %c0_i32 = arith.constant 0 : i32
    %c0_i32_0 = arith.constant 0 : i32
    %c0_i32_1 = arith.constant 0 : i32
    return %c0_i32, %c0_i32_0 : i32, i32
  }
  func.func @transform_2(%arg0: i32) -> (i32, i32) {
    %c0_i32 = arith.constant 0 : i32
    %c0_i32_0 = arith.constant 0 : i32
    %c0_i32_1 = arith.constant 0 : i32
    return %c0_i32, %c0_i32_0 : i32, i32
  }
  func.func @transform_3(%arg0: i32) -> (i32, i32) {
    %c0_i32 = arith.constant 0 : i32
    %c0_i32_0 = arith.constant 0 : i32
    %c0_i32_1 = arith.constant 0 : i32
    return %c0_i32, %c0_i32_0 : i32, i32
  }
  func.func @transform_4(%arg0: i32) -> (i32, i32) {
    %c0_i32 = arith.constant 0 : i32
    %c0_i32_0 = arith.constant 0 : i32
    %c0_i32_1 = arith.constant 0 : i32
    return %c0_i32, %c0_i32_0 : i32, i32
  }
  func.func @transform_5(%arg0: i32) -> (i32, i32) {
    %c0_i32 = arith.constant 0 : i32
    %c0_i32_0 = arith.constant 0 : i32
    %c0_i32_1 = arith.constant 0 : i32
    return %c0_i32, %c0_i32_0 : i32, i32
  }
  func.func @transform_6(%arg0: i32) -> (i32, i32) {
    %c0_i32 = arith.constant 0 : i32
    %c0_i32_0 = arith.constant 0 : i32
    %c0_i32_1 = arith.constant 0 : i32
    return %c0_i32, %c0_i32_0 : i32, i32
  }
  func.func @transform_7(%arg0: i32) -> (i32, i32) {
    %c0_i32 = arith.constant 0 : i32
    %c0_i32_0 = arith.constant 0 : i32
    %c0_i32_1 = arith.constant 0 : i32
    return %c0_i32, %c0_i32_0 : i32, i32
  }
  func.func @transform_8(%arg0: i32) -> (i32, i32) {
    %c0_i32 = arith.constant 0 : i32
    %c0_i32_0 = arith.constant 0 : i32
    %c0_i32_1 = arith.constant 0 : i32
    return %c0_i32, %c0_i32_0 : i32, i32
  }
  func.func @transform_9(%arg0: i32) -> (i32, i32) {
    %c0_i32 = arith.constant 0 : i32
    %c0_i32_0 = arith.constant 0 : i32
    return %arg0, %c0_i32 : i32, i32
  }
}

</mosaic_0001>

<llo_original>
// kernel: _lambda_.1
$region0: #{_lambda_.1}
  #allocation0 [shape = 'u32[]', space=smem, size = 0x4, offset = 0x4, fixed_abs, tag = 'smem constant byte address 0x4 - core index']
  #allocation1 [shape = 'u32[144,128]{1,0:T(1,128)}', space=vmem, size = 0x12000, scoped, tag = 'internal scratch']
  %s0 = inlined_call_operand.vmem [shape: bf16[16,896], index: 0, kind: input, shape index: {}]
  %s1 = inlined_call_operand.vmem [shape: bf16[896,1024], index: 1, kind: input, shape index: {}]
  %s2 = inlined_call_operand.vmem [shape: f32[1,1024], index: 2, kind: input, shape index: {}]
  %s3 = inlined_call_operand.vmem [shape: bf16[1024,256], index: 3, kind: input, shape index: {}]
  %s4 = inlined_call_operand.vmem [shape: f32[1,256], index: 4, kind: input, shape index: {}]
  %s5 = inlined_call_operand.vmem [shape: bf16[256,128], index: 5, kind: input, shape index: {}]
  %s6 = inlined_call_operand.vmem [shape: f32[1,128], index: 6, kind: input, shape index: {}]
  %s7 = inlined_call_operand.vmem [shape: bf16[128,128], index: 7, kind: input, shape index: {}]
  %s8 = inlined_call_operand.vmem [shape: f32[1,128], index: 8, kind: input, shape index: {}]
  %s9 = inlined_call_operand.vmem [shape: f32[16,128], index: 9, kind: output, shape index: {}]
  %s10 = sld [smem:[#allocation0]]
  $region46: #{_lambda_.1} parent=0
    _
  %s12 = ssub.s32 1, %s10
  %s13 = scalar_select 0, %s12, %s10
  // Predicated region
  $region2: #{_lambda_.1} parent=0 // pred_check
    _
  $region3: #{_lambda_.1} parent=0 // pred_check_branch
    %15 = sbr.rel (0) target = $region5
  $region4: #{_lambda_.1} parent=0 // pred_region
    _
  $region5: #{_lambda_.1} parent=0 // pred_fallthru
    _
  // Predicated region
  $region6: #{_lambda_.1} parent=0 // pred_check
    _
  $region7: #{_lambda_.1} parent=0 // pred_check_branch
    %17 = sbr.rel (0) target = $region9
  $region8: #{_lambda_.1} parent=0 // pred_region
    _
  $region9: #{_lambda_.1} parent=0 // pred_fallthru
    _
  // Predicated region
  $region10: #{_lambda_.1} parent=0 // pred_check
    _
  $region11: #{_lambda_.1} parent=0 // pred_check_branch
    %19 = sbr.rel (0) target = $region13
  $region12: #{_lambda_.1} parent=0 // pred_region
    _
  $region13: #{_lambda_.1} parent=0 // pred_fallthru
    _
  // Predicated region
  $region14: #{_lambda_.1} parent=0 // pred_check
    _
  $region15: #{_lambda_.1} parent=0 // pred_check_branch
    %21 = sbr.rel (0) target = $region17
  $region16: #{_lambda_.1} parent=0 // pred_region
    _
  $region17: #{_lambda_.1} parent=0 // pred_fallthru
    _
  // Predicated region
  $region18: #{_lambda_.1} parent=0 // pred_check
    _
  $region19: #{_lambda_.1} parent=0 // pred_check_branch
    %23 = sbr.rel (0) target = $region21
  $region20: #{_lambda_.1} parent=0 // pred_region
    _
  $region21: #{_lambda_.1} parent=0 // pred_fallthru
    _
  // Predicated region
  $region22: #{_lambda_.1} parent=0 // pred_check
    _
  $region23: #{_lambda_.1} parent=0 // pred_check_branch
    %25 = sbr.rel (0) target = $region25
  $region24: #{_lambda_.1} parent=0 // pred_region
    _
  $region25: #{_lambda_.1} parent=0 // pred_fallthru
    _
  // Predicated region
  $region26: #{_lambda_.1} parent=0 // pred_check
    _
  $region27: #{_lambda_.1} parent=0 // pred_check_branch
    %27 = sbr.rel (0) target = $region29
  $region28: #{_lambda_.1} parent=0 // pred_region
    _
  $region29: #{_lambda_.1} parent=0 // pred_fallthru
    _
  // Predicated region
  $region30: #{_lambda_.1} parent=0 // pred_check
    _
  $region31: #{_lambda_.1} parent=0 // pred_check_branch
    %29 = sbr.rel (0) target = $region33
  $region32: #{_lambda_.1} parent=0 // pred_region
    _
  $region33: #{_lambda_.1} parent=0 // pred_fallthru
    _
  // Predicated region
  $region34: #{_lambda_.1} parent=0 // pred_check
    _
  $region35: #{_lambda_.1} parent=0 // pred_check_branch
    %31 = sbr.rel (0) target = $region37
  $region36: #{_lambda_.1} parent=0 // pred_region
    _
  $region37: #{_lambda_.1} parent=0 // pred_fallthru
    _
  %v33 = vld [vmem:[%s0] sm:$0xff]
  %v34 = vld [vmem:[%s0 + $0x8] sm:$0xff]
  %v35 = vld [vmem:[%s0 + $0x10] sm:$0xff]
  %v36 = vld [vmem:[%s0 + $0x18] sm:$0xf]
  %v37 = vld [vmem:[%s0 + $0x1c] sm:$0xff]
  %v38 = vld [vmem:[%s0 + $0x24] sm:$0xff]
  %v39 = vld [vmem:[%s0 + $0x2c] sm:$0xff]
  %v40 = vld [vmem:[%s0 + $0x34] sm:$0xf]
  %v41 = vld [vmem:[%s1] sm:$0xff]
  %v42 = vld [vmem:[%s1 + $0x8] sm:$0xff]
  %v43 = vld [vmem:[%s1 + $0x10] sm:$0xff]
  %v44 = vld [vmem:[%s1 + $0x18] sm:$0xff]
  %v45 = vld [vmem:[%s1 + $0x20] sm:$0xff]
  %v46 = vld [vmem:[%s1 + $0x28] sm:$0xff]
  %v47 = vld [vmem:[%s1 + $0x30] sm:$0xff]
  %v48 = vld [vmem:[%s1 + $0x38] sm:$0xff]
  %v49 = vld [vmem:[%s1 + $0x40] sm:$0xff]
  %v50 = vld [vmem:[%s1 + $0x48] sm:$0xff]
  %v51 = vld [vmem:[%s1 + $0x50] sm:$0xff]
  %v52 = vld [vmem:[%s1 + $0x58] sm:$0xff]
  %v53 = vld [vmem:[%s1 + $0x60] sm:$0xff]
  %v54 = vld [vmem:[%s1 + $0x68] sm:$0xff]
  %v55 = vld [vmem:[%s1 + $0x70] sm:$0xff]
  %v56 = vld [vmem:[%s1 + $0x78] sm:$0xff]
  %v57 = vld [vmem:[%s1 + $0x80] sm:$0xff]
  %v58 = vld [vmem:[%s1 + $0x88] sm:$0xff]
  %v59 = vld [vmem:[%s1 + $0x90] sm:$0xff]
  %v60 = vld [vmem:[%s1 + $0x98] sm:$0xff]
  %v61 = vld [vmem:[%s1 + $0xa0] sm:$0xff]
  %v62 = vld [vmem:[%s1 + $0xa8] sm:$0xff]
  %v63 = vld [vmem:[%s1 + $0xb0] sm:$0xff]
  %v64 = vld [vmem:[%s1 + $0xb8] sm:$0xff]
  %v65 = vld [vmem:[%s1 + $0xc0] sm:$0xff]
  %v66 = vld [vmem:[%s1 + $0xc8] sm:$0xff]
  %v67 = vld [vmem:[%s1 + $0xd0] sm:$0xff]
  %v68 = vld [vmem:[%s1 + $0xd8] sm:$0xff]
  %v69 = vld [vmem:[%s1 + $0xe0] sm:$0xff]
  %v70 = vld [vmem:[%s1 + $0xe8] sm:$0xff]
  %v71 = vld [vmem:[%s1 + $0xf0] sm:$0xff]
  %v72 = vld [vmem:[%s1 + $0xf8] sm:$0xff]
  %v73 = vld [vmem:[%s1 + $0x100] sm:$0xff]
  %v74 = vld [vmem:[%s1 + $0x108] sm:$0xff]
  %v75 = vld [vmem:[%s1 + $0x110] sm:$0xff]
  %v76 = vld [vmem:[%s1 + $0x118] sm:$0xff]
  %v77 = vld [vmem:[%s1 + $0x120] sm:$0xff]
  %v78 = vld [vmem:[%s1 + $0x128] sm:$0xff]
  %v79 = vld [vmem:[%s1 + $0x130] sm:$0xff]
  %v80 = vld [vmem:[%s1 + $0x138] sm:$0xff]
  %v81 = vld [vmem:[%s1 + $0x140] sm:$0xff]
  %v82 = vld [vmem:[%s1 + $0x148] sm:$0xff]
  %v83 = vld [vmem:[%s1 + $0x150] sm:$0xff]
  %v84 = vld [vmem:[%s1 + $0x158] sm:$0xff]
  %v85 = vld [vmem:[%s1 + $0x160] sm:$0xff]
  %v86 = vld [vmem:[%s1 + $0x168] sm:$0xff]
  %v87 = vld [vmem:[%s1 + $0x170] sm:$0xff]
  %v88 = vld [vmem:[%s1 + $0x178] sm:$0xff]
  %v89 = vld [vmem:[%s1 + $0x180] sm:$0xff]
  %v90 = vld [vmem:[%s1 + $0x188] sm:$0xff]
  %v91 = vld [vmem:[%s1 + $0x190] sm:$0xff]
  %v92 = vld [vmem:[%s1 + $0x198] sm:$0xff]
  %v93 = vld [vmem:[%s1 + $0x1a0] sm:$0xff]
  %v94 = vld [vmem:[%s1 + $0x1a8] sm:$0xff]
  %v95 = vld [vmem:[%s1 + $0x1b0] sm:$0xff]
  %v96 = vld [vmem:[%s1 + $0x1b8] sm:$0xff]
  %v97 = vld [vmem:[%s1 + $0x1c0] sm:$0xff]
  %v98 = vld [vmem:[%s1 + $0x1c8] sm:$0xff]
  %v99 = vld [vmem:[%s1 + $0x1d0] sm:$0xff]
  %v100 = vld [vmem:[%s1 + $0x1d8] sm:$0xff]
  %v101 = vld [vmem:[%s1 + $0x1e0] sm:$0xff]
  %v102 = vld [vmem:[%s1 + $0x1e8] sm:$0xff]
  %v103 = vld [vmem:[%s1 + $0x1f0] sm:$0xff]
  %v104 = vld [vmem:[%s1 + $0x1f8] sm:$0xff]
  %v105 = vld [vmem:[%s1 + $0x200] sm:$0xff]
  %v106 = vld [vmem:[%s1 + $0x208] sm:$0xff]
  %v107 = vld [vmem:[%s1 + $0x210] sm:$0xff]
  %v108 = vld [vmem:[%s1 + $0x218] sm:$0xff]
  %v109 = vld [vmem:[%s1 + $0x220] sm:$0xff]
  %v110 = vld [vmem:[%s1 + $0x228] sm:$0xff]
  %v111 = vld [vmem:[%s1 + $0x230] sm:$0xff]
  %v112 = vld [vmem:[%s1 + $0x238] sm:$0xff]
  %v113 = vld [vmem:[%s1 + $0x240] sm:$0xff]
  %v114 = vld [vmem:[%s1 + $0x248] sm:$0xff]
  %v115 = vld [vmem:[%s1 + $0x250] sm:$0xff]
  %v116 = vld [vmem:[%s1 + $0x258] sm:$0xff]
  %v117 = vld [vmem:[%s1 + $0x260] sm:$0xff]
  %v118 = vld [vmem:[%s1 + $0x268] sm:$0xff]
  %v119 = vld [vmem:[%s1 + $0x270] sm:$0xff]
  %v120 = vld [vmem:[%s1 + $0x278] sm:$0xff]
  %v121 = vld [vmem:[%s1 + $0x280] sm:$0xff]
  %v122 = vld [vmem:[%s1 + $0x288] sm:$0xff]
  %v123 = vld [vmem:[%s1 + $0x290] sm:$0xff]
  %v124 = vld [vmem:[%s1 + $0x298] sm:$0xff]
  %v125 = vld [vmem:[%s1 + $0x2a0] sm:$0xff]
  %v126 = vld [vmem:[%s1 + $0x2a8] sm:$0xff]
  %v127 = vld [vmem:[%s1 + $0x2b0] sm:$0xff]
  %v128 = vld [vmem:[%s1 + $0x2b8] sm:$0xff]
  %v129 = vld [vmem:[%s1 + $0x2c0] sm:$0xff]
  %v130 = vld [vmem:[%s1 + $0x2c8] sm:$0xff]
  %v131 = vld [vmem:[%s1 + $0x2d0] sm:$0xff]
  %v132 = vld [vmem:[%s1 + $0x2d8] sm:$0xff]
  %v133 = vld [vmem:[%s1 + $0x2e0] sm:$0xff]
  %v134 = vld [vmem:[%s1 + $0x2e8] sm:$0xff]
  %v135 = vld [vmem:[%s1 + $0x2f0] sm:$0xff]
  %v136 = vld [vmem:[%s1 + $0x2f8] sm:$0xff]
  %v137 = vld [vmem:[%s1 + $0x300] sm:$0xff]
  %v138 = vld [vmem:[%s1 + $0x308] sm:$0xff]
  %v139 = vld [vmem:[%s1 + $0x310] sm:$0xff]
  %v140 = vld [vmem:[%s1 + $0x318] sm:$0xff]
  %v141 = vld [vmem:[%s1 + $0x320] sm:$0xff]
  %v142 = vld [vmem:[%s1 + $0x328] sm:$0xff]
  %v143 = vld [vmem:[%s1 + $0x330] sm:$0xff]
  %v144 = vld [vmem:[%s1 + $0x338] sm:$0xff]
  %v145 = vld [vmem:[%s1 + $0x340] sm:$0xff]
  %v146 = vld [vmem:[%s1 + $0x348] sm:$0xff]
  %v147 = vld [vmem:[%s1 + $0x350] sm:$0xff]
  %v148 = vld [vmem:[%s1 + $0x358] sm:$0xff]
  %v149 = vld [vmem:[%s1 + $0x360] sm:$0xff]
  %v150 = vld [vmem:[%s1 + $0x368] sm:$0xff]
  %v151 = vld [vmem:[%s1 + $0x370] sm:$0xff]
  %v152 = vld [vmem:[%s1 + $0x378] sm:$0xff]
  %v153 = vld [vmem:[%s1 + $0x380] sm:$0xff]
  %v154 = vld [vmem:[%s1 + $0x388] sm:$0xff]
  %v155 = vld [vmem:[%s1 + $0x390] sm:$0xff]
  %v156 = vld [vmem:[%s1 + $0x398] sm:$0xff]
  %v157 = vld [vmem:[%s1 + $0x3a0] sm:$0xff]
  %v158 = vld [vmem:[%s1 + $0x3a8] sm:$0xff]
  %v159 = vld [vmem:[%s1 + $0x3b0] sm:$0xff]
  %v160 = vld [vmem:[%s1 + $0x3b8] sm:$0xff]
  %v161 = vld [vmem:[%s1 + $0x3c0] sm:$0xff]
  %v162 = vld [vmem:[%s1 + $0x3c8] sm:$0xff]
  %v163 = vld [vmem:[%s1 + $0x3d0] sm:$0xff]
  %v164 = vld [vmem:[%s1 + $0x3d8] sm:$0xff]
  %v165 = vld [vmem:[%s1 + $0x3e0] sm:$0xff]
  %v166 = vld [vmem:[%s1 + $0x3e8] sm:$0xff]
  %v167 = vld [vmem:[%s1 + $0x3f0] sm:$0xff]
  %v168 = vld [vmem:[%s1 + $0x3f8] sm:$0xff]
  %v169 = vld [vmem:[%s1 + $0x400] sm:$0xff]
  %v170 = vld [vmem:[%s1 + $0x408] sm:$0xff]
  %v171 = vld [vmem:[%s1 + $0x410] sm:$0xff]
  %v172 = vld [vmem:[%s1 + $0x418] sm:$0xff]
  %v173 = vld [vmem:[%s1 + $0x420] sm:$0xff]
  %v174 = vld [vmem:[%s1 + $0x428] sm:$0xff]
  %v175 = vld [vmem:[%s1 + $0x430] sm:$0xff]
  %v176 = vld [vmem:[%s1 + $0x438] sm:$0xff]
  %v177 = vld [vmem:[%s1 + $0x440] sm:$0xff]
  %v178 = vld [vmem:[%s1 + $0x448] sm:$0xff]
  %v179 = vld [vmem:[%s1 + $0x450] sm:$0xff]
  %v180 = vld [vmem:[%s1 + $0x458] sm:$0xff]
  %v181 = vld [vmem:[%s1 + $0x460] sm:$0xff]
  %v182 = vld [vmem:[%s1 + $0x468] sm:$0xff]
  %v183 = vld [vmem:[%s1 + $0x470] sm:$0xff]
  %v184 = vld [vmem:[%s1 + $0x478] sm:$0xff]
  %v185 = vld [vmem:[%s1 + $0x480] sm:$0xff]
  %v186 = vld [vmem:[%s1 + $0x488] sm:$0xff]
  %v187 = vld [vmem:[%s1 + $0x490] sm:$0xff]
  %v188 = vld [vmem:[%s1 + $0x498] sm:$0xff]
  %v189 = vld [vmem:[%s1 + $0x4a0] sm:$0xff]
  %v190 = vld [vmem:[%s1 + $0x4a8] sm:$0xff]
  %v191 = vld [vmem:[%s1 + $0x4b0] sm:$0xff]
  %v192 = vld [vmem:[%s1 + $0x4b8] sm:$0xff]
  %v193 = vld [vmem:[%s1 + $0x4c0] sm:$0xff]
  %v194 = vld [vmem:[%s1 + $0x4c8] sm:$0xff]
  %v195 = vld [vmem:[%s1 + $0x4d0] sm:$0xff]
  %v196 = vld [vmem:[%s1 + $0x4d8] sm:$0xff]
  %v197 = vld [vmem:[%s1 + $0x4e0] sm:$0xff]
  %v198 = vld [vmem:[%s1 + $0x4e8] sm:$0xff]
  %v199 = vld [vmem:[%s1 + $0x4f0] sm:$0xff]
  %v200 = vld [vmem:[%s1 + $0x4f8] sm:$0xff]
  %v201 = vld [vmem:[%s1 + $0x500] sm:$0xff]
  %v202 = vld [vmem:[%s1 + $0x508] sm:$0xff]
  %v203 = vld [vmem:[%s1 + $0x510] sm:$0xff]
  %v204 = vld [vmem:[%s1 + $0x518] sm:$0xff]
  %v205 = vld [vmem:[%s1 + $0x520] sm:$0xff]
  %v206 = vld [vmem:[%s1 + $0x528] sm:$0xff]
  %v207 = vld [vmem:[%s1 + $0x530] sm:$0xff]
  %v208 = vld [vmem:[%s1 + $0x538] sm:$0xff]
  %v209 = vld [vmem:[%s1 + $0x540] sm:$0xff]
  %v210 = vld [vmem:[%s1 + $0x548] sm:$0xff]
  %v211 = vld [vmem:[%s1 + $0x550] sm:$0xff]
  %v212 = vld [vmem:[%s1 + $0x558] sm:$0xff]
  %v213 = vld [vmem:[%s1 + $0x560] sm:$0xff]
  %v214 = vld [vmem:[%s1 + $0x568] sm:$0xff]
  %v215 = vld [vmem:[%s1 + $0x570] sm:$0xff]
  %v216 = vld [vmem:[%s1 + $0x578] sm:$0xff]
  %v217 = vld [vmem:[%s1 + $0x580] sm:$0xff]
  %v218 = vld [vmem:[%s1 + $0x588] sm:$0xff]
  %v219 = vld [vmem:[%s1 + $0x590] sm:$0xff]
  %v220 = vld [vmem:[%s1 + $0x598] sm:$0xff]
  %v221 = vld [vmem:[%s1 + $0x5a0] sm:$0xff]
  %v222 = vld [vmem:[%s1 + $0x5a8] sm:$0xff]
  %v223 = vld [vmem:[%s1 + $0x5b0] sm:$0xff]
  %v224 = vld [vmem:[%s1 + $0x5b8] sm:$0xff]
  %v225 = vld [vmem:[%s1 + $0x5c0] sm:$0xff]
  %v226 = vld [vmem:[%s1 + $0x5c8] sm:$0xff]
  %v227 = vld [vmem:[%s1 + $0x5d0] sm:$0xff]
  %v228 = vld [vmem:[%s1 + $0x5d8] sm:$0xff]
  %v229 = vld [vmem:[%s1 + $0x5e0] sm:$0xff]
  %v230 = vld [vmem:[%s1 + $0x5e8] sm:$0xff]
  %v231 = vld [vmem:[%s1 + $0x5f0] sm:$0xff]
  %v232 = vld [vmem:[%s1 + $0x5f8] sm:$0xff]
  %v233 = vld [vmem:[%s1 + $0x600] sm:$0xff]
  %v234 = vld [vmem:[%s1 + $0x608] sm:$0xff]
  %v235 = vld [vmem:[%s1 + $0x610] sm:$0xff]
  %v236 = vld [vmem:[%s1 + $0x618] sm:$0xff]
  %v237 = vld [vmem:[%s1 + $0x620] sm:$0xff]
  %v238 = vld [vmem:[%s1 + $0x628] sm:$0xff]
  %v239 = vld [vmem:[%s1 + $0x630] sm:$0xff]
  %v240 = vld [vmem:[%s1 + $0x638] sm:$0xff]
  %v241 = vld [vmem:[%s1 + $0x640] sm:$0xff]
  %v242 = vld [vmem:[%s1 + $0x648] sm:$0xff]
  %v243 = vld [vmem:[%s1 + $0x650] sm:$0xff]
  %v244 = vld [vmem:[%s1 + $0x658] sm:$0xff]
  %v245 = vld [vmem:[%s1 + $0x660] sm:$0xff]
  %v246 = vld [vmem:[%s1 + $0x668] sm:$0xff]
  %v247 = vld [vmem:[%s1 + $0x670] sm:$0xff]
  %v248 = vld [vmem:[%s1 + $0x678] sm:$0xff]
  %v249 = vld [vmem:[%s1 + $0x680] sm:$0xff]
  %v250 = vld [vmem:[%s1 + $0x688] sm:$0xff]
  %v251 = vld [vmem:[%s1 + $0x690] sm:$0xff]
  %v252 = vld [vmem:[%s1 + $0x698] sm:$0xff]
  %v253 = vld [vmem:[%s1 + $0x6a0] sm:$0xff]
  %v254 = vld [vmem:[%s1 + $0x6a8] sm:$0xff]
  %v255 = vld [vmem:[%s1 + $0x6b0] sm:$0xff]
  %v256 = vld [vmem:[%s1 + $0x6b8] sm:$0xff]
  %v257 = vld [vmem:[%s1 + $0x6c0] sm:$0xff]
  %v258 = vld [vmem:[%s1 + $0x6c8] sm:$0xff]
  %v259 = vld [vmem:[%s1 + $0x6d0] sm:$0xff]
  %v260 = vld [vmem:[%s1 + $0x6d8] sm:$0xff]
  %v261 = vld [vmem:[%s1 + $0x6e0] sm:$0xff]
  %v262 = vld [vmem:[%s1 + $0x6e8] sm:$0xff]
  %v263 = vld [vmem:[%s1 + $0x6f0] sm:$0xff]
  %v264 = vld [vmem:[%s1 + $0x6f8] sm:$0xff]
  %v265 = vld [vmem:[%s1 + $0x700] sm:$0xff]
  %v266 = vld [vmem:[%s1 + $0x708] sm:$0xff]
  %v267 = vld [vmem:[%s1 + $0x710] sm:$0xff]
  %v268 = vld [vmem:[%s1 + $0x718] sm:$0xff]
  %v269 = vld [vmem:[%s1 + $0x720] sm:$0xff]
  %v270 = vld [vmem:[%s1 + $0x728] sm:$0xff]
  %v271 = vld [vmem:[%s1 + $0x730] sm:$0xff]
  %v272 = vld [vmem:[%s1 + $0x738] sm:$0xff]
  %v273 = vld [vmem:[%s1 + $0x740] sm:$0xff]
  %v274 = vld [vmem:[%s1 + $0x748] sm:$0xff]
  %v275 = vld [vmem:[%s1 + $0x750] sm:$0xff]
  %v276 = vld [vmem:[%s1 + $0x758] sm:$0xff]
  %v277 = vld [vmem:[%s1 + $0x760] sm:$0xff]
  %v278 = vld [vmem:[%s1 + $0x768] sm:$0xff]
  %v279 = vld [vmem:[%s1 + $0x770] sm:$0xff]
  %v280 = vld [vmem:[%s1 + $0x778] sm:$0xff]
  %v281 = vld [vmem:[%s1 + $0x780] sm:$0xff]
  %v282 = vld [vmem:[%s1 + $0x788] sm:$0xff]
  %v283 = vld [vmem:[%s1 + $0x790] sm:$0xff]
  %v284 = vld [vmem:[%s1 + $0x798] sm:$0xff]
  %v285 = vld [vmem:[%s1 + $0x7a0] sm:$0xff]
  %v286 = vld [vmem:[%s1 + $0x7a8] sm:$0xff]
  %v287 = vld [vmem:[%s1 + $0x7b0] sm:$0xff]
  %v288 = vld [vmem:[%s1 + $0x7b8] sm:$0xff]
  %v289 = vld [vmem:[%s1 + $0x7c0] sm:$0xff]
  %v290 = vld [vmem:[%s1 + $0x7c8] sm:$0xff]
  %v291 = vld [vmem:[%s1 + $0x7d0] sm:$0xff]
  %v292 = vld [vmem:[%s1 + $0x7d8] sm:$0xff]
  %v293 = vld [vmem:[%s1 + $0x7e0] sm:$0xff]
  %v294 = vld [vmem:[%s1 + $0x7e8] sm:$0xff]
  %v295 = vld [vmem:[%s1 + $0x7f0] sm:$0xff]
  %v296 = vld [vmem:[%s1 + $0x7f8] sm:$0xff]
  %v297 = vld [vmem:[%s1 + $0x800] sm:$0xff]
  %v298 = vld [vmem:[%s1 + $0x808] sm:$0xff]
  %v299 = vld [vmem:[%s1 + $0x810] sm:$0xff]
  %v300 = vld [vmem:[%s1 + $0x818] sm:$0xff]
  %v301 = vld [vmem:[%s1 + $0x820] sm:$0xff]
  %v302 = vld [vmem:[%s1 + $0x828] sm:$0xff]
  %v303 = vld [vmem:[%s1 + $0x830] sm:$0xff]
  %v304 = vld [vmem:[%s1 + $0x838] sm:$0xff]
  %v305 = vld [vmem:[%s1 + $0x840] sm:$0xff]
  %v306 = vld [vmem:[%s1 + $0x848] sm:$0xff]
  %v307 = vld [vmem:[%s1 + $0x850] sm:$0xff]
  %v308 = vld [vmem:[%s1 + $0x858] sm:$0xff]
  %v309 = vld [vmem:[%s1 + $0x860] sm:$0xff]
  %v310 = vld [vmem:[%s1 + $0x868] sm:$0xff]
  %v311 = vld [vmem:[%s1 + $0x870] sm:$0xff]
  %v312 = vld [vmem:[%s1 + $0x878] sm:$0xff]
  %v313 = vld [vmem:[%s1 + $0x880] sm:$0xff]
  %v314 = vld [vmem:[%s1 + $0x888] sm:$0xff]
  %v315 = vld [vmem:[%s1 + $0x890] sm:$0xff]
  %v316 = vld [vmem:[%s1 + $0x898] sm:$0xff]
  %v317 = vld [vmem:[%s1 + $0x8a0] sm:$0xff]
  %v318 = vld [vmem:[%s1 + $0x8a8] sm:$0xff]
  %v319 = vld [vmem:[%s1 + $0x8b0] sm:$0xff]
  %v320 = vld [vmem:[%s1 + $0x8b8] sm:$0xff]
  %v321 = vld [vmem:[%s1 + $0x8c0] sm:$0xff]
  %v322 = vld [vmem:[%s1 + $0x8c8] sm:$0xff]
  %v323 = vld [vmem:[%s1 + $0x8d0] sm:$0xff]
  %v324 = vld [vmem:[%s1 + $0x8d8] sm:$0xff]
  %v325 = vld [vmem:[%s1 + $0x8e0] sm:$0xff]
  %v326 = vld [vmem:[%s1 + $0x8e8] sm:$0xff]
  %v327 = vld [vmem:[%s1 + $0x8f0] sm:$0xff]
  %v328 = vld [vmem:[%s1 + $0x8f8] sm:$0xff]
  %v329 = vld [vmem:[%s1 + $0x900] sm:$0xff]
  %v330 = vld [vmem:[%s1 + $0x908] sm:$0xff]
  %v331 = vld [vmem:[%s1 + $0x910] sm:$0xff]
  %v332 = vld [vmem:[%s1 + $0x918] sm:$0xff]
  %v333 = vld [vmem:[%s1 + $0x920] sm:$0xff]
  %v334 = vld [vmem:[%s1 + $0x928] sm:$0xff]
  %v335 = vld [vmem:[%s1 + $0x930] sm:$0xff]
  %v336 = vld [vmem:[%s1 + $0x938] sm:$0xff]
  %v337 = vld [vmem:[%s1 + $0x940] sm:$0xff]
  %v338 = vld [vmem:[%s1 + $0x948] sm:$0xff]
  %v339 = vld [vmem:[%s1 + $0x950] sm:$0xff]
  %v340 = vld [vmem:[%s1 + $0x958] sm:$0xff]
  %v341 = vld [vmem:[%s1 + $0x960] sm:$0xff]
  %v342 = vld [vmem:[%s1 + $0x968] sm:$0xff]
  %v343 = vld [vmem:[%s1 + $0x970] sm:$0xff]
  %v344 = vld [vmem:[%s1 + $0x978] sm:$0xff]
  %v345 = vld [vmem:[%s1 + $0x980] sm:$0xff]
  %v346 = vld [vmem:[%s1 + $0x988] sm:$0xff]
  %v347 = vld [vmem:[%s1 + $0x990] sm:$0xff]
  %v348 = vld [vmem:[%s1 + $0x998] sm:$0xff]
  %v349 = vld [vmem:[%s1 + $0x9a0] sm:$0xff]
  %v350 = vld [vmem:[%s1 + $0x9a8] sm:$0xff]
  %v351 = vld [vmem:[%s1 + $0x9b0] sm:$0xff]
  %v352 = vld [vmem:[%s1 + $0x9b8] sm:$0xff]
  %v353 = vld [vmem:[%s1 + $0x9c0] sm:$0xff]
  %v354 = vld [vmem:[%s1 + $0x9c8] sm:$0xff]
  %v355 = vld [vmem:[%s1 + $0x9d0] sm:$0xff]
  %v356 = vld [vmem:[%s1 + $0x9d8] sm:$0xff]
  %v357 = vld [vmem:[%s1 + $0x9e0] sm:$0xff]
  %v358 = vld [vmem:[%s1 + $0x9e8] sm:$0xff]
  %v359 = vld [vmem:[%s1 + $0x9f0] sm:$0xff]
  %v360 = vld [vmem:[%s1 + $0x9f8] sm:$0xff]
  %v361 = vld [vmem:[%s1 + $0xa00] sm:$0xff]
  %v362 = vld [vmem:[%s1 + $0xa08] sm:$0xff]
  %v363 = vld [vmem:[%s1 + $0xa10] sm:$0xff]
  %v364 = vld [vmem:[%s1 + $0xa18] sm:$0xff]
  %v365 = vld [vmem:[%s1 + $0xa20] sm:$0xff]
  %v366 = vld [vmem:[%s1 + $0xa28] sm:$0xff]
  %v367 = vld [vmem:[%s1 + $0xa30] sm:$0xff]
  %v368 = vld [vmem:[%s1 + $0xa38] sm:$0xff]
  %v369 = vld [vmem:[%s1 + $0xa40] sm:$0xff]
  %v370 = vld [vmem:[%s1 + $0xa48] sm:$0xff]
  %v371 = vld [vmem:[%s1 + $0xa50] sm:$0xff]
  %v372 = vld [vmem:[%s1 + $0xa58] sm:$0xff]
  %v373 = vld [vmem:[%s1 + $0xa60] sm:$0xff]
  %v374 = vld [vmem:[%s1 + $0xa68] sm:$0xff]
  %v375 = vld [vmem:[%s1 + $0xa70] sm:$0xff]
  %v376 = vld [vmem:[%s1 + $0xa78] sm:$0xff]
  %v377 = vld [vmem:[%s1 + $0xa80] sm:$0xff]
  %v378 = vld [vmem:[%s1 + $0xa88] sm:$0xff]
  %v379 = vld [vmem:[%s1 + $0xa90] sm:$0xff]
  %v380 = vld [vmem:[%s1 + $0xa98] sm:$0xff]
  %v381 = vld [vmem:[%s1 + $0xaa0] sm:$0xff]
  %v382 = vld [vmem:[%s1 + $0xaa8] sm:$0xff]
  %v383 = vld [vmem:[%s1 + $0xab0] sm:$0xff]
  %v384 = vld [vmem:[%s1 + $0xab8] sm:$0xff]
  %v385 = vld [vmem:[%s1 + $0xac0] sm:$0xff]
  %v386 = vld [vmem:[%s1 + $0xac8] sm:$0xff]
  %v387 = vld [vmem:[%s1 + $0xad0] sm:$0xff]
  %v388 = vld [vmem:[%s1 + $0xad8] sm:$0xff]
  %v389 = vld [vmem:[%s1 + $0xae0] sm:$0xff]
  %v390 = vld [vmem:[%s1 + $0xae8] sm:$0xff]
  %v391 = vld [vmem:[%s1 + $0xaf0] sm:$0xff]
  %v392 = vld [vmem:[%s1 + $0xaf8] sm:$0xff]
  %v393 = vld [vmem:[%s1 + $0xb00] sm:$0xff]
  %v394 = vld [vmem:[%s1 + $0xb08] sm:$0xff]
  %v395 = vld [vmem:[%s1 + $0xb10] sm:$0xff]
  %v396 = vld [vmem:[%s1 + $0xb18] sm:$0xff]
  %v397 = vld [vmem:[%s1 + $0xb20] sm:$0xff]
  %v398 = vld [vmem:[%s1 + $0xb28] sm:$0xff]
  %v399 = vld [vmem:[%s1 + $0xb30] sm:$0xff]
  %v400 = vld [vmem:[%s1 + $0xb38] sm:$0xff]
  %v401 = vld [vmem:[%s1 + $0xb40] sm:$0xff]
  %v402 = vld [vmem:[%s1 + $0xb48] sm:$0xff]
  %v403 = vld [vmem:[%s1 + $0xb50] sm:$0xff]
  %v404 = vld [vmem:[%s1 + $0xb58] sm:$0xff]
  %v405 = vld [vmem:[%s1 + $0xb60] sm:$0xff]
  %v406 = vld [vmem:[%s1 + $0xb68] sm:$0xff]
  %v407 = vld [vmem:[%s1 + $0xb70] sm:$0xff]
  %v408 = vld [vmem:[%s1 + $0xb78] sm:$0xff]
  %v409 = vld [vmem:[%s1 + $0xb80] sm:$0xff]
  %v410 = vld [vmem:[%s1 + $0xb88] sm:$0xff]
  %v411 = vld [vmem:[%s1 + $0xb90] sm:$0xff]
  %v412 = vld [vmem:[%s1 + $0xb98] sm:$0xff]
  %v413 = vld [vmem:[%s1 + $0xba0] sm:$0xff]
  %v414 = vld [vmem:[%s1 + $0xba8] sm:$0xff]
  %v415 = vld [vmem:[%s1 + $0xbb0] sm:$0xff]
  %v416 = vld [vmem:[%s1 + $0xbb8] sm:$0xff]
  %v417 = vld [vmem:[%s1 + $0xbc0] sm:$0xff]
  %v418 = vld [vmem:[%s1 + $0xbc8] sm:$0xff]
  %v419 = vld [vmem:[%s1 + $0xbd0] sm:$0xff]
  %v420 = vld [vmem:[%s1 + $0xbd8] sm:$0xff]
  %v421 = vld [vmem:[%s1 + $0xbe0] sm:$0xff]
  %v422 = vld [vmem:[%s1 + $0xbe8] sm:$0xff]
  %v423 = vld [vmem:[%s1 + $0xbf0] sm:$0xff]
  %v424 = vld [vmem:[%s1 + $0xbf8] sm:$0xff]
  %v425 = vld [vmem:[%s1 + $0xc00] sm:$0xff]
  %v426 = vld [vmem:[%s1 + $0xc08] sm:$0xff]
  %v427 = vld [vmem:[%s1 + $0xc10] sm:$0xff]
  %v428 = vld [vmem:[%s1 + $0xc18] sm:$0xff]
  %v429 = vld [vmem:[%s1 + $0xc20] sm:$0xff]
  %v430 = vld [vmem:[%s1 + $0xc28] sm:$0xff]
  %v431 = vld [vmem:[%s1 + $0xc30] sm:$0xff]
  %v432 = vld [vmem:[%s1 + $0xc38] sm:$0xff]
  %v433 = vld [vmem:[%s1 + $0xc40] sm:$0xff]
  %v434 = vld [vmem:[%s1 + $0xc48] sm:$0xff]
  %v435 = vld [vmem:[%s1 + $0xc50] sm:$0xff]
  %v436 = vld [vmem:[%s1 + $0xc58] sm:$0xff]
  %v437 = vld [vmem:[%s1 + $0xc60] sm:$0xff]
  %v438 = vld [vmem:[%s1 + $0xc68] sm:$0xff]
  %v439 = vld [vmem:[%s1 + $0xc70] sm:$0xff]
  %v440 = vld [vmem:[%s1 + $0xc78] sm:$0xff]
  %v441 = vld [vmem:[%s1 + $0xc80] sm:$0xff]
  %v442 = vld [vmem:[%s1 + $0xc88] sm:$0xff]
  %v443 = vld [vmem:[%s1 + $0xc90] sm:$0xff]
  %v444 = vld [vmem:[%s1 + $0xc98] sm:$0xff]
  %v445 = vld [vmem:[%s1 + $0xca0] sm:$0xff]
  %v446 = vld [vmem:[%s1 + $0xca8] sm:$0xff]
  %v447 = vld [vmem:[%s1 + $0xcb0] sm:$0xff]
  %v448 = vld [vmem:[%s1 + $0xcb8] sm:$0xff]
  %v449 = vld [vmem:[%s1 + $0xcc0] sm:$0xff]
  %v450 = vld [vmem:[%s1 + $0xcc8] sm:$0xff]
  %v451 = vld [vmem:[%s1 + $0xcd0] sm:$0xff]
  %v452 = vld [vmem:[%s1 + $0xcd8] sm:$0xff]
  %v453 = vld [vmem:[%s1 + $0xce0] sm:$0xff]
  %v454 = vld [vmem:[%s1 + $0xce8] sm:$0xff]
  %v455 = vld [vmem:[%s1 + $0xcf0] sm:$0xff]
  %v456 = vld [vmem:[%s1 + $0xcf8] sm:$0xff]
  %v457 = vld [vmem:[%s1 + $0xd00] sm:$0xff]
  %v458 = vld [vmem:[%s1 + $0xd08] sm:$0xff]
  %v459 = vld [vmem:[%s1 + $0xd10] sm:$0xff]
  %v460 = vld [vmem:[%s1 + $0xd18] sm:$0xff]
  %v461 = vld [vmem:[%s1 + $0xd20] sm:$0xff]
  %v462 = vld [vmem:[%s1 + $0xd28] sm:$0xff]
  %v463 = vld [vmem:[%s1 + $0xd30] sm:$0xff]
  %v464 = vld [vmem:[%s1 + $0xd38] sm:$0xff]
  %v465 = vld [vmem:[%s1 + $0xd40] sm:$0xff]
  %v466 = vld [vmem:[%s1 + $0xd48] sm:$0xff]
  %v467 = vld [vmem:[%s1 + $0xd50] sm:$0xff]
  %v468 = vld [vmem:[%s1 + $0xd58] sm:$0xff]
  %v469 = vld [vmem:[%s1 + $0xd60] sm:$0xff]
  %v470 = vld [vmem:[%s1 + $0xd68] sm:$0xff]
  %v471 = vld [vmem:[%s1 + $0xd70] sm:$0xff]
  %v472 = vld [vmem:[%s1 + $0xd78] sm:$0xff]
  %v473 = vld [vmem:[%s1 + $0xd80] sm:$0xff]
  %v474 = vld [vmem:[%s1 + $0xd88] sm:$0xff]
  %v475 = vld [vmem:[%s1 + $0xd90] sm:$0xff]
  %v476 = vld [vmem:[%s1 + $0xd98] sm:$0xff]
  %v477 = vld [vmem:[%s1 + $0xda0] sm:$0xff]
  %v478 = vld [vmem:[%s1 + $0xda8] sm:$0xff]
  %v479 = vld [vmem:[%s1 + $0xdb0] sm:$0xff]
  %v480 = vld [vmem:[%s1 + $0xdb8] sm:$0xff]
  %v481 = vld [vmem:[%s1 + $0xdc0] sm:$0xff]
  %v482 = vld [vmem:[%s1 + $0xdc8] sm:$0xff]
  %v483 = vld [vmem:[%s1 + $0xdd0] sm:$0xff]
  %v484 = vld [vmem:[%s1 + $0xdd8] sm:$0xff]
  %v485 = vld [vmem:[%s1 + $0xde0] sm:$0xff]
  %v486 = vld [vmem:[%s1 + $0xde8] sm:$0xff]
  %v487 = vld [vmem:[%s1 + $0xdf0] sm:$0xff]
  %v488 = vld [vmem:[%s1 + $0xdf8] sm:$0xff]
  %v489 = vld [vmem:[%s2] sm:$0xff]
  %v491 = vlaneseq
  %v492 = vshrl.u32 %v491, 7
  %v493 = vsub.s32 0, %v492
  %v494 = vrot.slane %v489, %v493
  %v495 = vlaneseq
  %v496 = vshrl.u32 %v495, 7
  %v497 = vsub.s32 1, %v496
  %v498 = vrot.slane %v489, %v497
  %v499 = vlaneseq
  %v500 = vshrl.u32 %v499, 7
  %v501 = vsub.s32 2, %v500
  %v502 = vrot.slane %v489, %v501
  %v503 = vlaneseq
  %v504 = vshrl.u32 %v503, 7
  %v505 = vsub.s32 3, %v504
  %v506 = vrot.slane %v489, %v505
  %v507 = vlaneseq
  %v508 = vshrl.u32 %v507, 7
  %v509 = vsub.s32 4, %v508
  %v510 = vrot.slane %v489, %v509
  %v511 = vlaneseq
  %v512 = vshrl.u32 %v511, 7
  %v513 = vsub.s32 5, %v512
  %v514 = vrot.slane %v489, %v513
  %v515 = vlaneseq
  %v516 = vshrl.u32 %v515, 7
  %v517 = vsub.s32 6, %v516
  %v518 = vrot.slane %v489, %v517
  %v519 = vlaneseq
  %v520 = vshrl.u32 %v519, 7
  %v521 = vsub.s32 7, %v520
  %v522 = vrot.slane %v489, %v521
  %v539 = vunpack.c.l.b16 %v33
  %v540 = vunpack.c.h.b16 %v33
  %v541 = vunpack.c.l.b16 %v34
  %v542 = vunpack.c.h.b16 %v34
  %v543 = vunpack.c.l.b16 %v35
  %v544 = vunpack.c.h.b16 %v35
  %v545 = vunpack.c.l.b16 %v36
  %v546 = vunpack.c.l.b16 %v37
  %v547 = vunpack.c.h.b16 %v37
  %v548 = vunpack.c.l.b16 %v38
  %v549 = vunpack.c.h.b16 %v38
  %v550 = vunpack.c.l.b16 %v39
  %v551 = vunpack.c.h.b16 %v39
  %v552 = vunpack.c.l.b16 %v40
  %v553 = vpack.c.b16 %v546, %v539
  %v554 = vpack.c.b16 %v547, %v540
  %v555 = vpack.c.b16 %v548, %v541
  %v556 = vpack.c.b16 %v549, %v542
  %v557 = vpack.c.b16 %v550, %v543
  %v558 = vpack.c.b16 %v551, %v544
  %v559 = vpack.c.b16 %v552, %v545
  %v1015 = vunpack.c.l.b16 %v41
  %v1016 = vunpack.c.h.b16 %v41
  %v1017 = vunpack.c.l.b16 %v42
  %v1018 = vunpack.c.h.b16 %v42
  %v1019 = vunpack.c.l.b16 %v43
  %v1020 = vunpack.c.h.b16 %v43
  %v1021 = vunpack.c.l.b16 %v44
  %v1022 = vunpack.c.h.b16 %v44
  %v1023 = vunpack.c.l.b16 %v45
  %v1024 = vunpack.c.h.b16 %v45
  %v1025 = vunpack.c.l.b16 %v46
  %v1026 = vunpack.c.h.b16 %v46
  %v1027 = vunpack.c.l.b16 %v47
  %v1028 = vunpack.c.h.b16 %v47
  %v1029 = vunpack.c.l.b16 %v48
  %v1030 = vunpack.c.h.b16 %v48
  %v1031 = vunpack.c.l.b16 %v49
  %v1032 = vunpack.c.h.b16 %v49
  %v1033 = vunpack.c.l.b16 %v50
  %v1034 = vunpack.c.h.b16 %v50
  %v1035 = vunpack.c.l.b16 %v51
  %v1036 = vunpack.c.h.b16 %v51
  %v1037 = vunpack.c.l.b16 %v52
  %v1038 = vunpack.c.h.b16 %v52
  %v1039 = vunpack.c.l.b16 %v53
  %v1040 = vunpack.c.h.b16 %v53
  %v1041 = vunpack.c.l.b16 %v54
  %v1042 = vunpack.c.h.b16 %v54
  %v1043 = vunpack.c.l.b16 %v55
  %v1044 = vunpack.c.h.b16 %v55
  %v1045 = vunpack.c.l.b16 %v56
  %v1046 = vunpack.c.h.b16 %v56
  %v1047 = vunpack.c.l.b16 %v57
  %v1048 = vunpack.c.h.b16 %v57
  %v1049 = vunpack.c.l.b16 %v58
  %v1050 = vunpack.c.h.b16 %v58
  %v1051 = vunpack.c.l.b16 %v59
  %v1052 = vunpack.c.h.b16 %v59
  %v1053 = vunpack.c.l.b16 %v60
  %v1054 = vunpack.c.h.b16 %v60
  %v1055 = vunpack.c.l.b16 %v61
  %v1056 = vunpack.c.h.b16 %v61
  %v1057 = vunpack.c.l.b16 %v62
  %v1058 = vunpack.c.h.b16 %v62
  %v1059 = vunpack.c.l.b16 %v63
  %v1060 = vunpack.c.h.b16 %v63
  %v1061 = vunpack.c.l.b16 %v64
  %v1062 = vunpack.c.h.b16 %v64
  %v1063 = vunpack.c.l.b16 %v65
  %v1064 = vunpack.c.h.b16 %v65
  %v1065 = vunpack.c.l.b16 %v66
  %v1066 = vunpack.c.h.b16 %v66
  %v1067 = vunpack.c.l.b16 %v67
  %v1068 = vunpack.c.h.b16 %v67
  %v1069 = vunpack.c.l.b16 %v68
  %v1070 = vunpack.c.h.b16 %v68
  %v1071 = vunpack.c.l.b16 %v69
  %v1072 = vunpack.c.h.b16 %v69
  %v1073 = vunpack.c.l.b16 %v70
  %v1074 = vunpack.c.h.b16 %v70
  %v1075 = vunpack.c.l.b16 %v71
  %v1076 = vunpack.c.h.b16 %v71
  %v1077 = vunpack.c.l.b16 %v72
  %v1078 = vunpack.c.h.b16 %v72
  %v1079 = vunpack.c.l.b16 %v73
  %v1080 = vunpack.c.h.b16 %v73
  %v1081 = vunpack.c.l.b16 %v74
  %v1082 = vunpack.c.h.b16 %v74
  %v1083 = vunpack.c.l.b16 %v75
  %v1084 = vunpack.c.h.b16 %v75
  %v1085 = vunpack.c.l.b16 %v76
  %v1086 = vunpack.c.h.b16 %v76
  %v1087 = vunpack.c.l.b16 %v77
  %v1088 = vunpack.c.h.b16 %v77
  %v1089 = vunpack.c.l.b16 %v78
  %v1090 = vunpack.c.h.b16 %v78
  %v1091 = vunpack.c.l.b16 %v79
  %v1092 = vunpack.c.h.b16 %v79
  %v1093 = vunpack.c.l.b16 %v80
  %v1094 = vunpack.c.h.b16 %v80
  %v1095 = vunpack.c.l.b16 %v81
  %v1096 = vunpack.c.h.b16 %v81
  %v1097 = vunpack.c.l.b16 %v82
  %v1098 = vunpack.c.h.b16 %v82
  %v1099 = vunpack.c.l.b16 %v83
  %v1100 = vunpack.c.h.b16 %v83
  %v1101 = vunpack.c.l.b16 %v84
  %v1102 = vunpack.c.h.b16 %v84
  %v1103 = vunpack.c.l.b16 %v85
  %v1104 = vunpack.c.h.b16 %v85
  %v1105 = vunpack.c.l.b16 %v86
  %v1106 = vunpack.c.h.b16 %v86
  %v1107 = vunpack.c.l.b16 %v87
  %v1108 = vunpack.c.h.b16 %v87
  %v1109 = vunpack.c.l.b16 %v88
  %v1110 = vunpack.c.h.b16 %v88
  %v1111 = vunpack.c.l.b16 %v89
  %v1112 = vunpack.c.h.b16 %v89
  %v1113 = vunpack.c.l.b16 %v90
  %v1114 = vunpack.c.h.b16 %v90
  %v1115 = vunpack.c.l.b16 %v91
  %v1116 = vunpack.c.h.b16 %v91
  %v1117 = vunpack.c.l.b16 %v92
  %v1118 = vunpack.c.h.b16 %v92
  %v1119 = vunpack.c.l.b16 %v93
  %v1120 = vunpack.c.h.b16 %v93
  %v1121 = vunpack.c.l.b16 %v94
  %v1122 = vunpack.c.h.b16 %v94
  %v1123 = vunpack.c.l.b16 %v95
  %v1124 = vunpack.c.h.b16 %v95
  %v1125 = vunpack.c.l.b16 %v96
  %v1126 = vunpack.c.h.b16 %v96
  %v1127 = vunpack.c.l.b16 %v97
  %v1128 = vunpack.c.h.b16 %v97
  %v1129 = vunpack.c.l.b16 %v98
  %v1130 = vunpack.c.h.b16 %v98
  %v1131 = vunpack.c.l.b16 %v99
  %v1132 = vunpack.c.h.b16 %v99
  %v1133 = vunpack.c.l.b16 %v100
  %v1134 = vunpack.c.h.b16 %v100
  %v1135 = vunpack.c.l.b16 %v101
  %v1136 = vunpack.c.h.b16 %v101
  %v1137 = vunpack.c.l.b16 %v102
  %v1138 = vunpack.c.h.b16 %v102
  %v1139 = vunpack.c.l.b16 %v103
  %v1140 = vunpack.c.h.b16 %v103
  %v1141 = vunpack.c.l.b16 %v104
  %v1142 = vunpack.c.h.b16 %v104
  %v1143 = vunpack.c.l.b16 %v105
  %v1144 = vunpack.c.h.b16 %v105
  %v1145 = vunpack.c.l.b16 %v106
  %v1146 = vunpack.c.h.b16 %v106
  %v1147 = vunpack.c.l.b16 %v107
  %v1148 = vunpack.c.h.b16 %v107
  %v1149 = vunpack.c.l.b16 %v108
  %v1150 = vunpack.c.h.b16 %v108
  %v1151 = vunpack.c.l.b16 %v109
  %v1152 = vunpack.c.h.b16 %v109
  %v1153 = vunpack.c.l.b16 %v110
  %v1154 = vunpack.c.h.b16 %v110
  %v1155 = vunpack.c.l.b16 %v111
  %v1156 = vunpack.c.h.b16 %v111
  %v1157 = vunpack.c.l.b16 %v112
  %v1158 = vunpack.c.h.b16 %v112
  %v1159 = vunpack.c.l.b16 %v113
  %v1160 = vunpack.c.h.b16 %v113
  %v1161 = vunpack.c.l.b16 %v114
  %v1162 = vunpack.c.h.b16 %v114
  %v1163 = vunpack.c.l.b16 %v115
  %v1164 = vunpack.c.h.b16 %v115
  %v1165 = vunpack.c.l.b16 %v116
  %v1166 = vunpack.c.h.b16 %v116
  %v1167 = vunpack.c.l.b16 %v117
  %v1168 = vunpack.c.h.b16 %v117
  %v1169 = vunpack.c.l.b16 %v118
  %v1170 = vunpack.c.h.b16 %v118
  %v1171 = vunpack.c.l.b16 %v119
  %v1172 = vunpack.c.h.b16 %v119
  %v1173 = vunpack.c.l.b16 %v120
  %v1174 = vunpack.c.h.b16 %v120
  %v1175 = vunpack.c.l.b16 %v121
  %v1176 = vunpack.c.h.b16 %v121
  %v1177 = vunpack.c.l.b16 %v122
  %v1178 = vunpack.c.h.b16 %v122
  %v1179 = vunpack.c.l.b16 %v123
  %v1180 = vunpack.c.h.b16 %v123
  %v1181 = vunpack.c.l.b16 %v124
  %v1182 = vunpack.c.h.b16 %v124
  %v1183 = vunpack.c.l.b16 %v125
  %v1184 = vunpack.c.h.b16 %v125
  %v1185 = vunpack.c.l.b16 %v126
  %v1186 = vunpack.c.h.b16 %v126
  %v1187 = vunpack.c.l.b16 %v127
  %v1188 = vunpack.c.h.b16 %v127
  %v1189 = vunpack.c.l.b16 %v128
  %v1190 = vunpack.c.h.b16 %v128
  %v1191 = vunpack.c.l.b16 %v129
  %v1192 = vunpack.c.h.b16 %v129
  %v1193 = vunpack.c.l.b16 %v130
  %v1194 = vunpack.c.h.b16 %v130
  %v1195 = vunpack.c.l.b16 %v131
  %v1196 = vunpack.c.h.b16 %v131
  %v1197 = vunpack.c.l.b16 %v132
  %v1198 = vunpack.c.h.b16 %v132
  %v1199 = vunpack.c.l.b16 %v133
  %v1200 = vunpack.c.h.b16 %v133
  %v1201 = vunpack.c.l.b16 %v134
  %v1202 = vunpack.c.h.b16 %v134
  %v1203 = vunpack.c.l.b16 %v135
  %v1204 = vunpack.c.h.b16 %v135
  %v1205 = vunpack.c.l.b16 %v136
  %v1206 = vunpack.c.h.b16 %v136
  %v1207 = vunpack.c.l.b16 %v137
  %v1208 = vunpack.c.h.b16 %v137
  %v1209 = vunpack.c.l.b16 %v138
  %v1210 = vunpack.c.h.b16 %v138
  %v1211 = vunpack.c.l.b16 %v139
  %v1212 = vunpack.c.h.b16 %v139
  %v1213 = vunpack.c.l.b16 %v140
  %v1214 = vunpack.c.h.b16 %v140
  %v1215 = vunpack.c.l.b16 %v141
  %v1216 = vunpack.c.h.b16 %v141
  %v1217 = vunpack.c.l.b16 %v142
  %v1218 = vunpack.c.h.b16 %v142
  %v1219 = vunpack.c.l.b16 %v143
  %v1220 = vunpack.c.h.b16 %v143
  %v1221 = vunpack.c.l.b16 %v144
  %v1222 = vunpack.c.h.b16 %v144
  %v1223 = vunpack.c.l.b16 %v145
  %v1224 = vunpack.c.h.b16 %v145
  %v1225 = vunpack.c.l.b16 %v146
  %v1226 = vunpack.c.h.b16 %v146
  %v1227 = vunpack.c.l.b16 %v147
  %v1228 = vunpack.c.h.b16 %v147
  %v1229 = vunpack.c.l.b16 %v148
  %v1230 = vunpack.c.h.b16 %v148
  %v1231 = vunpack.c.l.b16 %v149
  %v1232 = vunpack.c.h.b16 %v149
  %v1233 = vunpack.c.l.b16 %v150
  %v1234 = vunpack.c.h.b16 %v150
  %v1235 = vunpack.c.l.b16 %v151
  %v1236 = vunpack.c.h.b16 %v151
  %v1237 = vunpack.c.l.b16 %v152
  %v1238 = vunpack.c.h.b16 %v152
  %v1239 = vunpack.c.l.b16 %v153
  %v1240 = vunpack.c.h.b16 %v153
  %v1241 = vunpack.c.l.b16 %v154
  %v1242 = vunpack.c.h.b16 %v154
  %v1243 = vunpack.c.l.b16 %v155
  %v1244 = vunpack.c.h.b16 %v155
  %v1245 = vunpack.c.l.b16 %v156
  %v1246 = vunpack.c.h.b16 %v156
  %v1247 = vunpack.c.l.b16 %v157
  %v1248 = vunpack.c.h.b16 %v157
  %v1249 = vunpack.c.l.b16 %v158
  %v1250 = vunpack.c.h.b16 %v158
  %v1251 = vunpack.c.l.b16 %v159
  %v1252 = vunpack.c.h.b16 %v159
  %v1253 = vunpack.c.l.b16 %v160
  %v1254 = vunpack.c.h.b16 %v160
  %v1255 = vunpack.c.l.b16 %v161
  %v1256 = vunpack.c.h.b16 %v161
  %v1257 = vunpack.c.l.b16 %v162
  %v1258 = vunpack.c.h.b16 %v162
  %v1259 = vunpack.c.l.b16 %v163
  %v1260 = vunpack.c.h.b16 %v163
  %v1261 = vunpack.c.l.b16 %v164
  %v1262 = vunpack.c.h.b16 %v164
  %v1263 = vunpack.c.l.b16 %v165
  %v1264 = vunpack.c.h.b16 %v165
  %v1265 = vunpack.c.l.b16 %v166
  %v1266 = vunpack.c.h.b16 %v166
  %v1267 = vunpack.c.l.b16 %v167
  %v1268 = vunpack.c.h.b16 %v167
  %v1269 = vunpack.c.l.b16 %v168
  %v1270 = vunpack.c.h.b16 %v168
  %v1271 = vunpack.c.l.b16 %v169
  %v1272 = vunpack.c.h.b16 %v169
  %v1273 = vunpack.c.l.b16 %v170
  %v1274 = vunpack.c.h.b16 %v170
  %v1275 = vunpack.c.l.b16 %v171
  %v1276 = vunpack.c.h.b16 %v171
  %v1277 = vunpack.c.l.b16 %v172
  %v1278 = vunpack.c.h.b16 %v172
  %v1279 = vunpack.c.l.b16 %v173
  %v1280 = vunpack.c.h.b16 %v173
  %v1281 = vunpack.c.l.b16 %v174
  %v1282 = vunpack.c.h.b16 %v174
  %v1283 = vunpack.c.l.b16 %v175
  %v1284 = vunpack.c.h.b16 %v175
  %v1285 = vunpack.c.l.b16 %v176
  %v1286 = vunpack.c.h.b16 %v176
  %v1287 = vunpack.c.l.b16 %v177
  %v1288 = vunpack.c.h.b16 %v177
  %v1289 = vunpack.c.l.b16 %v178
  %v1290 = vunpack.c.h.b16 %v178
  %v1291 = vunpack.c.l.b16 %v179
  %v1292 = vunpack.c.h.b16 %v179
  %v1293 = vunpack.c.l.b16 %v180
  %v1294 = vunpack.c.h.b16 %v180
  %v1295 = vunpack.c.l.b16 %v181
  %v1296 = vunpack.c.h.b16 %v181
  %v1297 = vunpack.c.l.b16 %v182
  %v1298 = vunpack.c.h.b16 %v182
  %v1299 = vunpack.c.l.b16 %v183
  %v1300 = vunpack.c.h.b16 %v183
  %v1301 = vunpack.c.l.b16 %v184
  %v1302 = vunpack.c.h.b16 %v184
  %v1303 = vunpack.c.l.b16 %v185
  %v1304 = vunpack.c.h.b16 %v185
  %v1305 = vunpack.c.l.b16 %v186
  %v1306 = vunpack.c.h.b16 %v186
  %v1307 = vunpack.c.l.b16 %v187
  %v1308 = vunpack.c.h.b16 %v187
  %v1309 = vunpack.c.l.b16 %v188
  %v1310 = vunpack.c.h.b16 %v188
  %v1311 = vunpack.c.l.b16 %v189
  %v1312 = vunpack.c.h.b16 %v189
  %v1313 = vunpack.c.l.b16 %v190
  %v1314 = vunpack.c.h.b16 %v190
  %v1315 = vunpack.c.l.b16 %v191
  %v1316 = vunpack.c.h.b16 %v191
  %v1317 = vunpack.c.l.b16 %v192
  %v1318 = vunpack.c.h.b16 %v192
  %v1319 = vunpack.c.l.b16 %v193
  %v1320 = vunpack.c.h.b16 %v193
  %v1321 = vunpack.c.l.b16 %v194
  %v1322 = vunpack.c.h.b16 %v194
  %v1323 = vunpack.c.l.b16 %v195
  %v1324 = vunpack.c.h.b16 %v195
  %v1325 = vunpack.c.l.b16 %v196
  %v1326 = vunpack.c.h.b16 %v196
  %v1327 = vunpack.c.l.b16 %v197
  %v1328 = vunpack.c.h.b16 %v197
  %v1329 = vunpack.c.l.b16 %v198
  %v1330 = vunpack.c.h.b16 %v198
  %v1331 = vunpack.c.l.b16 %v199
  %v1332 = vunpack.c.h.b16 %v199
  %v1333 = vunpack.c.l.b16 %v200
  %v1334 = vunpack.c.h.b16 %v200
  %v1335 = vunpack.c.l.b16 %v201
  %v1336 = vunpack.c.h.b16 %v201
  %v1337 = vunpack.c.l.b16 %v202
  %v1338 = vunpack.c.h.b16 %v202
  %v1339 = vunpack.c.l.b16 %v203
  %v1340 = vunpack.c.h.b16 %v203
  %v1341 = vunpack.c.l.b16 %v204
  %v1342 = vunpack.c.h.b16 %v204
  %v1343 = vunpack.c.l.b16 %v205
  %v1344 = vunpack.c.h.b16 %v205
  %v1345 = vunpack.c.l.b16 %v206
  %v1346 = vunpack.c.h.b16 %v206
  %v1347 = vunpack.c.l.b16 %v207
  %v1348 = vunpack.c.h.b16 %v207
  %v1349 = vunpack.c.l.b16 %v208
  %v1350 = vunpack.c.h.b16 %v208
  %v1351 = vunpack.c.l.b16 %v209
  %v1352 = vunpack.c.h.b16 %v209
  %v1353 = vunpack.c.l.b16 %v210
  %v1354 = vunpack.c.h.b16 %v210
  %v1355 = vunpack.c.l.b16 %v211
  %v1356 = vunpack.c.h.b16 %v211
  %v1357 = vunpack.c.l.b16 %v212
  %v1358 = vunpack.c.h.b16 %v212
  %v1359 = vunpack.c.l.b16 %v213
  %v1360 = vunpack.c.h.b16 %v213
  %v1361 = vunpack.c.l.b16 %v214
  %v1362 = vunpack.c.h.b16 %v214
  %v1363 = vunpack.c.l.b16 %v215
  %v1364 = vunpack.c.h.b16 %v215
  %v1365 = vunpack.c.l.b16 %v216
  %v1366 = vunpack.c.h.b16 %v216
  %v1367 = vunpack.c.l.b16 %v217
  %v1368 = vunpack.c.h.b16 %v217
  %v1369 = vunpack.c.l.b16 %v218
  %v1370 = vunpack.c.h.b16 %v218
  %v1371 = vunpack.c.l.b16 %v219
  %v1372 = vunpack.c.h.b16 %v219
  %v1373 = vunpack.c.l.b16 %v220
  %v1374 = vunpack.c.h.b16 %v220
  %v1375 = vunpack.c.l.b16 %v221
  %v1376 = vunpack.c.h.b16 %v221
  %v1377 = vunpack.c.l.b16 %v222
  %v1378 = vunpack.c.h.b16 %v222
  %v1379 = vunpack.c.l.b16 %v223
  %v1380 = vunpack.c.h.b16 %v223
  %v1381 = vunpack.c.l.b16 %v224
  %v1382 = vunpack.c.h.b16 %v224
  %v1383 = vunpack.c.l.b16 %v225
  %v1384 = vunpack.c.h.b16 %v225
  %v1385 = vunpack.c.l.b16 %v226
  %v1386 = vunpack.c.h.b16 %v226
  %v1387 = vunpack.c.l.b16 %v227
  %v1388 = vunpack.c.h.b16 %v227
  %v1389 = vunpack.c.l.b16 %v228
  %v1390 = vunpack.c.h.b16 %v228
  %v1391 = vunpack.c.l.b16 %v229
  %v1392 = vunpack.c.h.b16 %v229
  %v1393 = vunpack.c.l.b16 %v230
  %v1394 = vunpack.c.h.b16 %v230
  %v1395 = vunpack.c.l.b16 %v231
  %v1396 = vunpack.c.h.b16 %v231
  %v1397 = vunpack.c.l.b16 %v232
  %v1398 = vunpack.c.h.b16 %v232
  %v1399 = vunpack.c.l.b16 %v233
  %v1400 = vunpack.c.h.b16 %v233
  %v1401 = vunpack.c.l.b16 %v234
  %v1402 = vunpack.c.h.b16 %v234
  %v1403 = vunpack.c.l.b16 %v235
  %v1404 = vunpack.c.h.b16 %v235
  %v1405 = vunpack.c.l.b16 %v236
  %v1406 = vunpack.c.h.b16 %v236
  %v1407 = vunpack.c.l.b16 %v237
  %v1408 = vunpack.c.h.b16 %v237
  %v1409 = vunpack.c.l.b16 %v238
  %v1410 = vunpack.c.h.b16 %v238
  %v1411 = vunpack.c.l.b16 %v239
  %v1412 = vunpack.c.h.b16 %v239
  %v1413 = vunpack.c.l.b16 %v240
  %v1414 = vunpack.c.h.b16 %v240
  %v1415 = vunpack.c.l.b16 %v241
  %v1416 = vunpack.c.h.b16 %v241
  %v1417 = vunpack.c.l.b16 %v242
  %v1418 = vunpack.c.h.b16 %v242
  %v1419 = vunpack.c.l.b16 %v243
  %v1420 = vunpack.c.h.b16 %v243
  %v1421 = vunpack.c.l.b16 %v244
  %v1422 = vunpack.c.h.b16 %v244
  %v1423 = vunpack.c.l.b16 %v245
  %v1424 = vunpack.c.h.b16 %v245
  %v1425 = vunpack.c.l.b16 %v246
  %v1426 = vunpack.c.h.b16 %v246
  %v1427 = vunpack.c.l.b16 %v247
  %v1428 = vunpack.c.h.b16 %v247
  %v1429 = vunpack.c.l.b16 %v248
  %v1430 = vunpack.c.h.b16 %v248
  %v1431 = vunpack.c.l.b16 %v249
  %v1432 = vunpack.c.h.b16 %v249
  %v1433 = vunpack.c.l.b16 %v250
  %v1434 = vunpack.c.h.b16 %v250
  %v1435 = vunpack.c.l.b16 %v251
  %v1436 = vunpack.c.h.b16 %v251
  %v1437 = vunpack.c.l.b16 %v252
  %v1438 = vunpack.c.h.b16 %v252
  %v1439 = vunpack.c.l.b16 %v253
  %v1440 = vunpack.c.h.b16 %v253
  %v1441 = vunpack.c.l.b16 %v254
  %v1442 = vunpack.c.h.b16 %v254
  %v1443 = vunpack.c.l.b16 %v255
  %v1444 = vunpack.c.h.b16 %v255
  %v1445 = vunpack.c.l.b16 %v256
  %v1446 = vunpack.c.h.b16 %v256
  %v1447 = vunpack.c.l.b16 %v257
  %v1448 = vunpack.c.h.b16 %v257
  %v1449 = vunpack.c.l.b16 %v258
  %v1450 = vunpack.c.h.b16 %v258
  %v1451 = vunpack.c.l.b16 %v259
  %v1452 = vunpack.c.h.b16 %v259
  %v1453 = vunpack.c.l.b16 %v260
  %v1454 = vunpack.c.h.b16 %v260
  %v1455 = vunpack.c.l.b16 %v261
  %v1456 = vunpack.c.h.b16 %v261
  %v1457 = vunpack.c.l.b16 %v262
  %v1458 = vunpack.c.h.b16 %v262
  %v1459 = vunpack.c.l.b16 %v263
  %v1460 = vunpack.c.h.b16 %v263
  %v1461 = vunpack.c.l.b16 %v264
  %v1462 = vunpack.c.h.b16 %v264
  %v1463 = vunpack.c.l.b16 %v265
  %v1464 = vunpack.c.h.b16 %v265
  %v1465 = vunpack.c.l.b16 %v266
  %v1466 = vunpack.c.h.b16 %v266
  %v1467 = vunpack.c.l.b16 %v267
  %v1468 = vunpack.c.h.b16 %v267
  %v1469 = vunpack.c.l.b16 %v268
  %v1470 = vunpack.c.h.b16 %v268
  %v1471 = vunpack.c.l.b16 %v269
  %v1472 = vunpack.c.h.b16 %v269
  %v1473 = vunpack.c.l.b16 %v270
  %v1474 = vunpack.c.h.b16 %v270
  %v1475 = vunpack.c.l.b16 %v271
  %v1476 = vunpack.c.h.b16 %v271
  %v1477 = vunpack.c.l.b16 %v272
  %v1478 = vunpack.c.h.b16 %v272
  %v1479 = vunpack.c.l.b16 %v273
  %v1480 = vunpack.c.h.b16 %v273
  %v1481 = vunpack.c.l.b16 %v274
  %v1482 = vunpack.c.h.b16 %v274
  %v1483 = vunpack.c.l.b16 %v275
  %v1484 = vunpack.c.h.b16 %v275
  %v1485 = vunpack.c.l.b16 %v276
  %v1486 = vunpack.c.h.b16 %v276
  %v1487 = vunpack.c.l.b16 %v277
  %v1488 = vunpack.c.h.b16 %v277
  %v1489 = vunpack.c.l.b16 %v278
  %v1490 = vunpack.c.h.b16 %v278
  %v1491 = vunpack.c.l.b16 %v279
  %v1492 = vunpack.c.h.b16 %v279
  %v1493 = vunpack.c.l.b16 %v280
  %v1494 = vunpack.c.h.b16 %v280
  %v1495 = vunpack.c.l.b16 %v281
  %v1496 = vunpack.c.h.b16 %v281
  %v1497 = vunpack.c.l.b16 %v282
  %v1498 = vunpack.c.h.b16 %v282
  %v1499 = vunpack.c.l.b16 %v283
  %v1500 = vunpack.c.h.b16 %v283
  %v1501 = vunpack.c.l.b16 %v284
  %v1502 = vunpack.c.h.b16 %v284
  %v1503 = vunpack.c.l.b16 %v285
  %v1504 = vunpack.c.h.b16 %v285
  %v1505 = vunpack.c.l.b16 %v286
  %v1506 = vunpack.c.h.b16 %v286
  %v1507 = vunpack.c.l.b16 %v287
  %v1508 = vunpack.c.h.b16 %v287
  %v1509 = vunpack.c.l.b16 %v288
  %v1510 = vunpack.c.h.b16 %v288
  %v1511 = vunpack.c.l.b16 %v289
  %v1512 = vunpack.c.h.b16 %v289
  %v1513 = vunpack.c.l.b16 %v290
  %v1514 = vunpack.c.h.b16 %v290
  %v1515 = vunpack.c.l.b16 %v291
  %v1516 = vunpack.c.h.b16 %v291
  %v1517 = vunpack.c.l.b16 %v292
  %v1518 = vunpack.c.h.b16 %v292
  %v1519 = vunpack.c.l.b16 %v293
  %v1520 = vunpack.c.h.b16 %v293
  %v1521 = vunpack.c.l.b16 %v294
  %v1522 = vunpack.c.h.b16 %v294
  %v1523 = vunpack.c.l.b16 %v295
  %v1524 = vunpack.c.h.b16 %v295
  %v1525 = vunpack.c.l.b16 %v296
  %v1526 = vunpack.c.h.b16 %v296
  %v1527 = vunpack.c.l.b16 %v297
  %v1528 = vunpack.c.h.b16 %v297
  %v1529 = vunpack.c.l.b16 %v298
  %v1530 = vunpack.c.h.b16 %v298
  %v1531 = vunpack.c.l.b16 %v299
  %v1532 = vunpack.c.h.b16 %v299
  %v1533 = vunpack.c.l.b16 %v300
  %v1534 = vunpack.c.h.b16 %v300
  %v1535 = vunpack.c.l.b16 %v301
  %v1536 = vunpack.c.h.b16 %v301
  %v1537 = vunpack.c.l.b16 %v302
  %v1538 = vunpack.c.h.b16 %v302
  %v1539 = vunpack.c.l.b16 %v303
  %v1540 = vunpack.c.h.b16 %v303
  %v1541 = vunpack.c.l.b16 %v304
  %v1542 = vunpack.c.h.b16 %v304
  %v1543 = vunpack.c.l.b16 %v305
  %v1544 = vunpack.c.h.b16 %v305
  %v1545 = vunpack.c.l.b16 %v306
  %v1546 = vunpack.c.h.b16 %v306
  %v1547 = vunpack.c.l.b16 %v307
  %v1548 = vunpack.c.h.b16 %v307
  %v1549 = vunpack.c.l.b16 %v308
  %v1550 = vunpack.c.h.b16 %v308
  %v1551 = vunpack.c.l.b16 %v309
  %v1552 = vunpack.c.h.b16 %v309
  %v1553 = vunpack.c.l.b16 %v310
  %v1554 = vunpack.c.h.b16 %v310
  %v1555 = vunpack.c.l.b16 %v311
  %v1556 = vunpack.c.h.b16 %v311
  %v1557 = vunpack.c.l.b16 %v312
  %v1558 = vunpack.c.h.b16 %v312
  %v1559 = vunpack.c.l.b16 %v313
  %v1560 = vunpack.c.h.b16 %v313
  %v1561 = vunpack.c.l.b16 %v314
  %v1562 = vunpack.c.h.b16 %v314
  %v1563 = vunpack.c.l.b16 %v315
  %v1564 = vunpack.c.h.b16 %v315
  %v1565 = vunpack.c.l.b16 %v316
  %v1566 = vunpack.c.h.b16 %v316
  %v1567 = vunpack.c.l.b16 %v317
  %v1568 = vunpack.c.h.b16 %v317
  %v1569 = vunpack.c.l.b16 %v318
  %v1570 = vunpack.c.h.b16 %v318
  %v1571 = vunpack.c.l.b16 %v319
  %v1572 = vunpack.c.h.b16 %v319
  %v1573 = vunpack.c.l.b16 %v320
  %v1574 = vunpack.c.h.b16 %v320
  %v1575 = vunpack.c.l.b16 %v321
  %v1576 = vunpack.c.h.b16 %v321
  %v1577 = vunpack.c.l.b16 %v322
  %v1578 = vunpack.c.h.b16 %v322
  %v1579 = vunpack.c.l.b16 %v323
  %v1580 = vunpack.c.h.b16 %v323
  %v1581 = vunpack.c.l.b16 %v324
  %v1582 = vunpack.c.h.b16 %v324
  %v1583 = vunpack.c.l.b16 %v325
  %v1584 = vunpack.c.h.b16 %v325
  %v1585 = vunpack.c.l.b16 %v326
  %v1586 = vunpack.c.h.b16 %v326
  %v1587 = vunpack.c.l.b16 %v327
  %v1588 = vunpack.c.h.b16 %v327
  %v1589 = vunpack.c.l.b16 %v328
  %v1590 = vunpack.c.h.b16 %v328
  %v1591 = vunpack.c.l.b16 %v329
  %v1592 = vunpack.c.h.b16 %v329
  %v1593 = vunpack.c.l.b16 %v330
  %v1594 = vunpack.c.h.b16 %v330
  %v1595 = vunpack.c.l.b16 %v331
  %v1596 = vunpack.c.h.b16 %v331
  %v1597 = vunpack.c.l.b16 %v332
  %v1598 = vunpack.c.h.b16 %v332
  %v1599 = vunpack.c.l.b16 %v333
  %v1600 = vunpack.c.h.b16 %v333
  %v1601 = vunpack.c.l.b16 %v334
  %v1602 = vunpack.c.h.b16 %v334
  %v1603 = vunpack.c.l.b16 %v335
  %v1604 = vunpack.c.h.b16 %v335
  %v1605 = vunpack.c.l.b16 %v336
  %v1606 = vunpack.c.h.b16 %v336
  %v1607 = vunpack.c.l.b16 %v337
  %v1608 = vunpack.c.h.b16 %v337
  %v1609 = vunpack.c.l.b16 %v338
  %v1610 = vunpack.c.h.b16 %v338
  %v1611 = vunpack.c.l.b16 %v339
  %v1612 = vunpack.c.h.b16 %v339
  %v1613 = vunpack.c.l.b16 %v340
  %v1614 = vunpack.c.h.b16 %v340
  %v1615 = vunpack.c.l.b16 %v341
  %v1616 = vunpack.c.h.b16 %v341
  %v1617 = vunpack.c.l.b16 %v342
  %v1618 = vunpack.c.h.b16 %v342
  %v1619 = vunpack.c.l.b16 %v343
  %v1620 = vunpack.c.h.b16 %v343
  %v1621 = vunpack.c.l.b16 %v344
  %v1622 = vunpack.c.h.b16 %v344
  %v1623 = vunpack.c.l.b16 %v345
  %v1624 = vunpack.c.h.b16 %v345
  %v1625 = vunpack.c.l.b16 %v346
  %v1626 = vunpack.c.h.b16 %v346
  %v1627 = vunpack.c.l.b16 %v347
  %v1628 = vunpack.c.h.b16 %v347
  %v1629 = vunpack.c.l.b16 %v348
  %v1630 = vunpack.c.h.b16 %v348
  %v1631 = vunpack.c.l.b16 %v349
  %v1632 = vunpack.c.h.b16 %v349
  %v1633 = vunpack.c.l.b16 %v350
  %v1634 = vunpack.c.h.b16 %v350
  %v1635 = vunpack.c.l.b16 %v351
  %v1636 = vunpack.c.h.b16 %v351
  %v1637 = vunpack.c.l.b16 %v352
  %v1638 = vunpack.c.h.b16 %v352
  %v1639 = vunpack.c.l.b16 %v353
  %v1640 = vunpack.c.h.b16 %v353
  %v1641 = vunpack.c.l.b16 %v354
  %v1642 = vunpack.c.h.b16 %v354
  %v1643 = vunpack.c.l.b16 %v355
  %v1644 = vunpack.c.h.b16 %v355
  %v1645 = vunpack.c.l.b16 %v356
  %v1646 = vunpack.c.h.b16 %v356
  %v1647 = vunpack.c.l.b16 %v357
  %v1648 = vunpack.c.h.b16 %v357
  %v1649 = vunpack.c.l.b16 %v358
  %v1650 = vunpack.c.h.b16 %v358
  %v1651 = vunpack.c.l.b16 %v359
  %v1652 = vunpack.c.h.b16 %v359
  %v1653 = vunpack.c.l.b16 %v360
  %v1654 = vunpack.c.h.b16 %v360
  %v1655 = vunpack.c.l.b16 %v361
  %v1656 = vunpack.c.h.b16 %v361
  %v1657 = vunpack.c.l.b16 %v362
  %v1658 = vunpack.c.h.b16 %v362
  %v1659 = vunpack.c.l.b16 %v363
  %v1660 = vunpack.c.h.b16 %v363
  %v1661 = vunpack.c.l.b16 %v364
  %v1662 = vunpack.c.h.b16 %v364
  %v1663 = vunpack.c.l.b16 %v365
  %v1664 = vunpack.c.h.b16 %v365
  %v1665 = vunpack.c.l.b16 %v366
  %v1666 = vunpack.c.h.b16 %v366
  %v1667 = vunpack.c.l.b16 %v367
  %v1668 = vunpack.c.h.b16 %v367
  %v1669 = vunpack.c.l.b16 %v368
  %v1670 = vunpack.c.h.b16 %v368
  %v1671 = vunpack.c.l.b16 %v369
  %v1672 = vunpack.c.h.b16 %v369
  %v1673 = vunpack.c.l.b16 %v370
  %v1674 = vunpack.c.h.b16 %v370
  %v1675 = vunpack.c.l.b16 %v371
  %v1676 = vunpack.c.h.b16 %v371
  %v1677 = vunpack.c.l.b16 %v372
  %v1678 = vunpack.c.h.b16 %v372
  %v1679 = vunpack.c.l.b16 %v373
  %v1680 = vunpack.c.h.b16 %v373
  %v1681 = vunpack.c.l.b16 %v374
  %v1682 = vunpack.c.h.b16 %v374
  %v1683 = vunpack.c.l.b16 %v375
  %v1684 = vunpack.c.h.b16 %v375
  %v1685 = vunpack.c.l.b16 %v376
  %v1686 = vunpack.c.h.b16 %v376
  %v1687 = vunpack.c.l.b16 %v377
  %v1688 = vunpack.c.h.b16 %v377
  %v1689 = vunpack.c.l.b16 %v378
  %v1690 = vunpack.c.h.b16 %v378
  %v1691 = vunpack.c.l.b16 %v379
  %v1692 = vunpack.c.h.b16 %v379
  %v1693 = vunpack.c.l.b16 %v380
  %v1694 = vunpack.c.h.b16 %v380
  %v1695 = vunpack.c.l.b16 %v381
  %v1696 = vunpack.c.h.b16 %v381
  %v1697 = vunpack.c.l.b16 %v382
  %v1698 = vunpack.c.h.b16 %v382
  %v1699 = vunpack.c.l.b16 %v383
  %v1700 = vunpack.c.h.b16 %v383
  %v1701 = vunpack.c.l.b16 %v384
  %v1702 = vunpack.c.h.b16 %v384
  %v1703 = vunpack.c.l.b16 %v385
  %v1704 = vunpack.c.h.b16 %v385
  %v1705 = vunpack.c.l.b16 %v386
  %v1706 = vunpack.c.h.b16 %v386
  %v1707 = vunpack.c.l.b16 %v387
  %v1708 = vunpack.c.h.b16 %v387
  %v1709 = vunpack.c.l.b16 %v388
  %v1710 = vunpack.c.h.b16 %v388
  %v1711 = vunpack.c.l.b16 %v389
  %v1712 = vunpack.c.h.b16 %v389
  %v1713 = vunpack.c.l.b16 %v390
  %v1714 = vunpack.c.h.b16 %v390
  %v1715 = vunpack.c.l.b16 %v391
  %v1716 = vunpack.c.h.b16 %v391
  %v1717 = vunpack.c.l.b16 %v392
  %v1718 = vunpack.c.h.b16 %v392
  %v1719 = vunpack.c.l.b16 %v393
  %v1720 = vunpack.c.h.b16 %v393
  %v1721 = vunpack.c.l.b16 %v394
  %v1722 = vunpack.c.h.b16 %v394
  %v1723 = vunpack.c.l.b16 %v395
  %v1724 = vunpack.c.h.b16 %v395
  %v1725 = vunpack.c.l.b16 %v396
  %v1726 = vunpack.c.h.b16 %v396
  %v1727 = vunpack.c.l.b16 %v397
  %v1728 = vunpack.c.h.b16 %v397
  %v1729 = vunpack.c.l.b16 %v398
  %v1730 = vunpack.c.h.b16 %v398
  %v1731 = vunpack.c.l.b16 %v399
  %v1732 = vunpack.c.h.b16 %v399
  %v1733 = vunpack.c.l.b16 %v400
  %v1734 = vunpack.c.h.b16 %v400
  %v1735 = vunpack.c.l.b16 %v401
  %v1736 = vunpack.c.h.b16 %v401
  %v1737 = vunpack.c.l.b16 %v402
  %v1738 = vunpack.c.h.b16 %v402
  %v1739 = vunpack.c.l.b16 %v403
  %v1740 = vunpack.c.h.b16 %v403
  %v1741 = vunpack.c.l.b16 %v404
  %v1742 = vunpack.c.h.b16 %v404
  %v1743 = vunpack.c.l.b16 %v405
  %v1744 = vunpack.c.h.b16 %v405
  %v1745 = vunpack.c.l.b16 %v406
  %v1746 = vunpack.c.h.b16 %v406
  %v1747 = vunpack.c.l.b16 %v407
  %v1748 = vunpack.c.h.b16 %v407
  %v1749 = vunpack.c.l.b16 %v408
  %v1750 = vunpack.c.h.b16 %v408
  %v1751 = vunpack.c.l.b16 %v409
  %v1752 = vunpack.c.h.b16 %v409
  %v1753 = vunpack.c.l.b16 %v410
  %v1754 = vunpack.c.h.b16 %v410
  %v1755 = vunpack.c.l.b16 %v411
  %v1756 = vunpack.c.h.b16 %v411
  %v1757 = vunpack.c.l.b16 %v412
  %v1758 = vunpack.c.h.b16 %v412
  %v1759 = vunpack.c.l.b16 %v413
  %v1760 = vunpack.c.h.b16 %v413
  %v1761 = vunpack.c.l.b16 %v414
  %v1762 = vunpack.c.h.b16 %v414
  %v1763 = vunpack.c.l.b16 %v415
  %v1764 = vunpack.c.h.b16 %v415
  %v1765 = vunpack.c.l.b16 %v416
  %v1766 = vunpack.c.h.b16 %v416
  %v1767 = vunpack.c.l.b16 %v417
  %v1768 = vunpack.c.h.b16 %v417
  %v1769 = vunpack.c.l.b16 %v418
  %v1770 = vunpack.c.h.b16 %v418
  %v1771 = vunpack.c.l.b16 %v419
  %v1772 = vunpack.c.h.b16 %v419
  %v1773 = vunpack.c.l.b16 %v420
  %v1774 = vunpack.c.h.b16 %v420
  %v1775 = vunpack.c.l.b16 %v421
  %v1776 = vunpack.c.h.b16 %v421
  %v1777 = vunpack.c.l.b16 %v422
  %v1778 = vunpack.c.h.b16 %v422
  %v1779 = vunpack.c.l.b16 %v423
  %v1780 = vunpack.c.h.b16 %v423
  %v1781 = vunpack.c.l.b16 %v424
  %v1782 = vunpack.c.h.b16 %v424
  %v1783 = vunpack.c.l.b16 %v425
  %v1784 = vunpack.c.h.b16 %v425
  %v1785 = vunpack.c.l.b16 %v426
  %v1786 = vunpack.c.h.b16 %v426
  %v1787 = vunpack.c.l.b16 %v427
  %v1788 = vunpack.c.h.b16 %v427
  %v1789 = vunpack.c.l.b16 %v428
  %v1790 = vunpack.c.h.b16 %v428
  %v1791 = vunpack.c.l.b16 %v429
  %v1792 = vunpack.c.h.b16 %v429
  %v1793 = vunpack.c.l.b16 %v430
  %v1794 = vunpack.c.h.b16 %v430
  %v1795 = vunpack.c.l.b16 %v431
  %v1796 = vunpack.c.h.b16 %v431
  %v1797 = vunpack.c.l.b16 %v432
  %v1798 = vunpack.c.h.b16 %v432
  %v1799 = vunpack.c.l.b16 %v433
  %v1800 = vunpack.c.h.b16 %v433
  %v1801 = vunpack.c.l.b16 %v434
  %v1802 = vunpack.c.h.b16 %v434
  %v1803 = vunpack.c.l.b16 %v435
  %v1804 = vunpack.c.h.b16 %v435
  %v1805 = vunpack.c.l.b16 %v436
  %v1806 = vunpack.c.h.b16 %v436
  %v1807 = vunpack.c.l.b16 %v437
  %v1808 = vunpack.c.h.b16 %v437
  %v1809 = vunpack.c.l.b16 %v438
  %v1810 = vunpack.c.h.b16 %v438
  %v1811 = vunpack.c.l.b16 %v439
  %v1812 = vunpack.c.h.b16 %v439
  %v1813 = vunpack.c.l.b16 %v440
  %v1814 = vunpack.c.h.b16 %v440
  %v1815 = vunpack.c.l.b16 %v441
  %v1816 = vunpack.c.h.b16 %v441
  %v1817 = vunpack.c.l.b16 %v442
  %v1818 = vunpack.c.h.b16 %v442
  %v1819 = vunpack.c.l.b16 %v443
  %v1820 = vunpack.c.h.b16 %v443
  %v1821 = vunpack.c.l.b16 %v444
  %v1822 = vunpack.c.h.b16 %v444
  %v1823 = vunpack.c.l.b16 %v445
  %v1824 = vunpack.c.h.b16 %v445
  %v1825 = vunpack.c.l.b16 %v446
  %v1826 = vunpack.c.h.b16 %v446
  %v1827 = vunpack.c.l.b16 %v447
  %v1828 = vunpack.c.h.b16 %v447
  %v1829 = vunpack.c.l.b16 %v448
  %v1830 = vunpack.c.h.b16 %v448
  %v1831 = vunpack.c.l.b16 %v449
  %v1832 = vunpack.c.h.b16 %v449
  %v1833 = vunpack.c.l.b16 %v450
  %v1834 = vunpack.c.h.b16 %v450
  %v1835 = vunpack.c.l.b16 %v451
  %v1836 = vunpack.c.h.b16 %v451
  %v1837 = vunpack.c.l.b16 %v452
  %v1838 = vunpack.c.h.b16 %v452
  %v1839 = vunpack.c.l.b16 %v453
  %v1840 = vunpack.c.h.b16 %v453
  %v1841 = vunpack.c.l.b16 %v454
  %v1842 = vunpack.c.h.b16 %v454
  %v1843 = vunpack.c.l.b16 %v455
  %v1844 = vunpack.c.h.b16 %v455
  %v1845 = vunpack.c.l.b16 %v456
  %v1846 = vunpack.c.h.b16 %v456
  %v1847 = vunpack.c.l.b16 %v457
  %v1848 = vunpack.c.h.b16 %v457
  %v1849 = vunpack.c.l.b16 %v458
  %v1850 = vunpack.c.h.b16 %v458
  %v1851 = vunpack.c.l.b16 %v459
  %v1852 = vunpack.c.h.b16 %v459
  %v1853 = vunpack.c.l.b16 %v460
  %v1854 = vunpack.c.h.b16 %v460
  %v1855 = vunpack.c.l.b16 %v461
  %v1856 = vunpack.c.h.b16 %v461
  %v1857 = vunpack.c.l.b16 %v462
  %v1858 = vunpack.c.h.b16 %v462
  %v1859 = vunpack.c.l.b16 %v463
  %v1860 = vunpack.c.h.b16 %v463
  %v1861 = vunpack.c.l.b16 %v464
  %v1862 = vunpack.c.h.b16 %v464
  %v1863 = vunpack.c.l.b16 %v465
  %v1864 = vunpack.c.h.b16 %v465
  %v1865 = vunpack.c.l.b16 %v466
  %v1866 = vunpack.c.h.b16 %v466
  %v1867 = vunpack.c.l.b16 %v467
  %v1868 = vunpack.c.h.b16 %v467
  %v1869 = vunpack.c.l.b16 %v468
  %v1870 = vunpack.c.h.b16 %v468
  %v1871 = vunpack.c.l.b16 %v469
  %v1872 = vunpack.c.h.b16 %v469
  %v1873 = vunpack.c.l.b16 %v470
  %v1874 = vunpack.c.h.b16 %v470
  %v1875 = vunpack.c.l.b16 %v471
  %v1876 = vunpack.c.h.b16 %v471
  %v1877 = vunpack.c.l.b16 %v472
  %v1878 = vunpack.c.h.b16 %v472
  %v1879 = vunpack.c.l.b16 %v473
  %v1880 = vunpack.c.h.b16 %v473
  %v1881 = vunpack.c.l.b16 %v474
  %v1882 = vunpack.c.h.b16 %v474
  %v1883 = vunpack.c.l.b16 %v475
  %v1884 = vunpack.c.h.b16 %v475
  %v1885 = vunpack.c.l.b16 %v476
  %v1886 = vunpack.c.h.b16 %v476
  %v1887 = vunpack.c.l.b16 %v477
  %v1888 = vunpack.c.h.b16 %v477
  %v1889 = vunpack.c.l.b16 %v478
  %v1890 = vunpack.c.h.b16 %v478
  %v1891 = vunpack.c.l.b16 %v479
  %v1892 = vunpack.c.h.b16 %v479
  %v1893 = vunpack.c.l.b16 %v480
  %v1894 = vunpack.c.h.b16 %v480
  %v1895 = vunpack.c.l.b16 %v481
  %v1896 = vunpack.c.h.b16 %v481
  %v1897 = vunpack.c.l.b16 %v482
  %v1898 = vunpack.c.h.b16 %v482
  %v1899 = vunpack.c.l.b16 %v483
  %v1900 = vunpack.c.h.b16 %v483
  %v1901 = vunpack.c.l.b16 %v484
  %v1902 = vunpack.c.h.b16 %v484
  %v1903 = vunpack.c.l.b16 %v485
  %v1904 = vunpack.c.h.b16 %v485
  %v1905 = vunpack.c.l.b16 %v486
  %v1906 = vunpack.c.h.b16 %v486
  %v1907 = vunpack.c.l.b16 %v487
  %v1908 = vunpack.c.h.b16 %v487
  %v1909 = vunpack.c.l.b16 %v488
  %v1910 = vunpack.c.h.b16 %v488
  %v1911 = vpack.c.b16 %v1023, %v1015
  %v1912 = vpack.c.b16 %v1024, %v1016
  %v1913 = vpack.c.b16 %v1025, %v1017
  %v1914 = vpack.c.b16 %v1026, %v1018
  %v1915 = vpack.c.b16 %v1027, %v1019
  %v1916 = vpack.c.b16 %v1028, %v1020
  %v1917 = vpack.c.b16 %v1029, %v1021
  %v1918 = vpack.c.b16 %v1030, %v1022
  %v1919 = vpack.c.b16 %v1039, %v1031
  %v1920 = vpack.c.b16 %v1040, %v1032
  %v1921 = vpack.c.b16 %v1041, %v1033
  %v1922 = vpack.c.b16 %v1042, %v1034
  %v1923 = vpack.c.b16 %v1043, %v1035
  %v1924 = vpack.c.b16 %v1044, %v1036
  %v1925 = vpack.c.b16 %v1045, %v1037
  %v1926 = vpack.c.b16 %v1046, %v1038
  %v1927 = vpack.c.b16 %v1055, %v1047
  %v1928 = vpack.c.b16 %v1056, %v1048
  %v1929 = vpack.c.b16 %v1057, %v1049
  %v1930 = vpack.c.b16 %v1058, %v1050
  %v1931 = vpack.c.b16 %v1059, %v1051
  %v1932 = vpack.c.b16 %v1060, %v1052
  %v1933 = vpack.c.b16 %v1061, %v1053
  %v1934 = vpack.c.b16 %v1062, %v1054
  %v1935 = vpack.c.b16 %v1071, %v1063
  %v1936 = vpack.c.b16 %v1072, %v1064
  %v1937 = vpack.c.b16 %v1073, %v1065
  %v1938 = vpack.c.b16 %v1074, %v1066
  %v1939 = vpack.c.b16 %v1075, %v1067
  %v1940 = vpack.c.b16 %v1076, %v1068
  %v1941 = vpack.c.b16 %v1077, %v1069
  %v1942 = vpack.c.b16 %v1078, %v1070
  %v1943 = vpack.c.b16 %v1087, %v1079
  %v1944 = vpack.c.b16 %v1088, %v1080
  %v1945 = vpack.c.b16 %v1089, %v1081
  %v1946 = vpack.c.b16 %v1090, %v1082
  %v1947 = vpack.c.b16 %v1091, %v1083
  %v1948 = vpack.c.b16 %v1092, %v1084
  %v1949 = vpack.c.b16 %v1093, %v1085
  %v1950 = vpack.c.b16 %v1094, %v1086
  %v1951 = vpack.c.b16 %v1103, %v1095
  %v1952 = vpack.c.b16 %v1104, %v1096
  %v1953 = vpack.c.b16 %v1105, %v1097
  %v1954 = vpack.c.b16 %v1106, %v1098
  %v1955 = vpack.c.b16 %v1107, %v1099
  %v1956 = vpack.c.b16 %v1108, %v1100
  %v1957 = vpack.c.b16 %v1109, %v1101
  %v1958 = vpack.c.b16 %v1110, %v1102
  %v1959 = vpack.c.b16 %v1119, %v1111
  %v1960 = vpack.c.b16 %v1120, %v1112
  %v1961 = vpack.c.b16 %v1121, %v1113
  %v1962 = vpack.c.b16 %v1122, %v1114
  %v1963 = vpack.c.b16 %v1123, %v1115
  %v1964 = vpack.c.b16 %v1124, %v1116
  %v1965 = vpack.c.b16 %v1125, %v1117
  %v1966 = vpack.c.b16 %v1126, %v1118
  %v1967 = vpack.c.b16 %v1135, %v1127
  %v1968 = vpack.c.b16 %v1136, %v1128
  %v1969 = vpack.c.b16 %v1137, %v1129
  %v1970 = vpack.c.b16 %v1138, %v1130
  %v1971 = vpack.c.b16 %v1139, %v1131
  %v1972 = vpack.c.b16 %v1140, %v1132
  %v1973 = vpack.c.b16 %v1141, %v1133
  %v1974 = vpack.c.b16 %v1142, %v1134
  %v1975 = vpack.c.b16 %v1151, %v1143
  %v1976 = vpack.c.b16 %v1152, %v1144
  %v1977 = vpack.c.b16 %v1153, %v1145
  %v1978 = vpack.c.b16 %v1154, %v1146
  %v1979 = vpack.c.b16 %v1155, %v1147
  %v1980 = vpack.c.b16 %v1156, %v1148
  %v1981 = vpack.c.b16 %v1157, %v1149
  %v1982 = vpack.c.b16 %v1158, %v1150
  %v1983 = vpack.c.b16 %v1167, %v1159
  %v1984 = vpack.c.b16 %v1168, %v1160
  %v1985 = vpack.c.b16 %v1169, %v1161
  %v1986 = vpack.c.b16 %v1170, %v1162
  %v1987 = vpack.c.b16 %v1171, %v1163
  %v1988 = vpack.c.b16 %v1172, %v1164
  %v1989 = vpack.c.b16 %v1173, %v1165
  %v1990 = vpack.c.b16 %v1174, %v1166
  %v1991 = vpack.c.b16 %v1183, %v1175
  %v1992 = vpack.c.b16 %v1184, %v1176
  %v1993 = vpack.c.b16 %v1185, %v1177
  %v1994 = vpack.c.b16 %v1186, %v1178
  %v1995 = vpack.c.b16 %v1187, %v1179
  %v1996 = vpack.c.b16 %v1188, %v1180
  %v1997 = vpack.c.b16 %v1189, %v1181
  %v1998 = vpack.c.b16 %v1190, %v1182
  %v1999 = vpack.c.b16 %v1199, %v1191
  %v2000 = vpack.c.b16 %v1200, %v1192
  %v2001 = vpack.c.b16 %v1201, %v1193
  %v2002 = vpack.c.b16 %v1202, %v1194
  %v2003 = vpack.c.b16 %v1203, %v1195
  %v2004 = vpack.c.b16 %v1204, %v1196
  %v2005 = vpack.c.b16 %v1205, %v1197
  %v2006 = vpack.c.b16 %v1206, %v1198
  %v2007 = vpack.c.b16 %v1215, %v1207
  %v2008 = vpack.c.b16 %v1216, %v1208
  %v2009 = vpack.c.b16 %v1217, %v1209
  %v2010 = vpack.c.b16 %v1218, %v1210
  %v2011 = vpack.c.b16 %v1219, %v1211
  %v2012 = vpack.c.b16 %v1220, %v1212
  %v2013 = vpack.c.b16 %v1221, %v1213
  %v2014 = vpack.c.b16 %v1222, %v1214
  %v2015 = vpack.c.b16 %v1231, %v1223
  %v2016 = vpack.c.b16 %v1232, %v1224
  %v2017 = vpack.c.b16 %v1233, %v1225
  %v2018 = vpack.c.b16 %v1234, %v1226
  %v2019 = vpack.c.b16 %v1235, %v1227
  %v2020 = vpack.c.b16 %v1236, %v1228
  %v2021 = vpack.c.b16 %v1237, %v1229
  %v2022 = vpack.c.b16 %v1238, %v1230
  %v2023 = vpack.c.b16 %v1247, %v1239
  %v2024 = vpack.c.b16 %v1248, %v1240
  %v2025 = vpack.c.b16 %v1249, %v1241
  %v2026 = vpack.c.b16 %v1250, %v1242
  %v2027 = vpack.c.b16 %v1251, %v1243
  %v2028 = vpack.c.b16 %v1252, %v1244
  %v2029 = vpack.c.b16 %v1253, %v1245
  %v2030 = vpack.c.b16 %v1254, %v1246
  %v2031 = vpack.c.b16 %v1263, %v1255
  %v2032 = vpack.c.b16 %v1264, %v1256
  %v2033 = vpack.c.b16 %v1265, %v1257
  %v2034 = vpack.c.b16 %v1266, %v1258
  %v2035 = vpack.c.b16 %v1267, %v1259
  %v2036 = vpack.c.b16 %v1268, %v1260
  %v2037 = vpack.c.b16 %v1269, %v1261
  %v2038 = vpack.c.b16 %v1270, %v1262
  %v2039 = vpack.c.b16 %v1279, %v1271
  %v2040 = vpack.c.b16 %v1280, %v1272
  %v2041 = vpack.c.b16 %v1281, %v1273
  %v2042 = vpack.c.b16 %v1282, %v1274
  %v2043 = vpack.c.b16 %v1283, %v1275
  %v2044 = vpack.c.b16 %v1284, %v1276
  %v2045 = vpack.c.b16 %v1285, %v1277
  %v2046 = vpack.c.b16 %v1286, %v1278
  %v2047 = vpack.c.b16 %v1295, %v1287
  %v2048 = vpack.c.b16 %v1296, %v1288
  %v2049 = vpack.c.b16 %v1297, %v1289
  %v2050 = vpack.c.b16 %v1298, %v1290
  %v2051 = vpack.c.b16 %v1299, %v1291
  %v2052 = vpack.c.b16 %v1300, %v1292
  %v2053 = vpack.c.b16 %v1301, %v1293
  %v2054 = vpack.c.b16 %v1302, %v1294
  %v2055 = vpack.c.b16 %v1311, %v1303
  %v2056 = vpack.c.b16 %v1312, %v1304
  %v2057 = vpack.c.b16 %v1313, %v1305
  %v2058 = vpack.c.b16 %v1314, %v1306
  %v2059 = vpack.c.b16 %v1315, %v1307
  %v2060 = vpack.c.b16 %v1316, %v1308
  %v2061 = vpack.c.b16 %v1317, %v1309
  %v2062 = vpack.c.b16 %v1318, %v1310
  %v2063 = vpack.c.b16 %v1327, %v1319
  %v2064 = vpack.c.b16 %v1328, %v1320
  %v2065 = vpack.c.b16 %v1329, %v1321
  %v2066 = vpack.c.b16 %v1330, %v1322
  %v2067 = vpack.c.b16 %v1331, %v1323
  %v2068 = vpack.c.b16 %v1332, %v1324
  %v2069 = vpack.c.b16 %v1333, %v1325
  %v2070 = vpack.c.b16 %v1334, %v1326
  %v2071 = vpack.c.b16 %v1343, %v1335
  %v2072 = vpack.c.b16 %v1344, %v1336
  %v2073 = vpack.c.b16 %v1345, %v1337
  %v2074 = vpack.c.b16 %v1346, %v1338
  %v2075 = vpack.c.b16 %v1347, %v1339
  %v2076 = vpack.c.b16 %v1348, %v1340
  %v2077 = vpack.c.b16 %v1349, %v1341
  %v2078 = vpack.c.b16 %v1350, %v1342
  %v2079 = vpack.c.b16 %v1359, %v1351
  %v2080 = vpack.c.b16 %v1360, %v1352
  %v2081 = vpack.c.b16 %v1361, %v1353
  %v2082 = vpack.c.b16 %v1362, %v1354
  %v2083 = vpack.c.b16 %v1363, %v1355
  %v2084 = vpack.c.b16 %v1364, %v1356
  %v2085 = vpack.c.b16 %v1365, %v1357
  %v2086 = vpack.c.b16 %v1366, %v1358
  %v2087 = vpack.c.b16 %v1375, %v1367
  %v2088 = vpack.c.b16 %v1376, %v1368
  %v2089 = vpack.c.b16 %v1377, %v1369
  %v2090 = vpack.c.b16 %v1378, %v1370
  %v2091 = vpack.c.b16 %v1379, %v1371
  %v2092 = vpack.c.b16 %v1380, %v1372
  %v2093 = vpack.c.b16 %v1381, %v1373
  %v2094 = vpack.c.b16 %v1382, %v1374
  %v2095 = vpack.c.b16 %v1391, %v1383
  %v2096 = vpack.c.b16 %v1392, %v1384
  %v2097 = vpack.c.b16 %v1393, %v1385
  %v2098 = vpack.c.b16 %v1394, %v1386
  %v2099 = vpack.c.b16 %v1395, %v1387
  %v2100 = vpack.c.b16 %v1396, %v1388
  %v2101 = vpack.c.b16 %v1397, %v1389
  %v2102 = vpack.c.b16 %v1398, %v1390
  %v2103 = vpack.c.b16 %v1407, %v1399
  %v2104 = vpack.c.b16 %v1408, %v1400
  %v2105 = vpack.c.b16 %v1409, %v1401
  %v2106 = vpack.c.b16 %v1410, %v1402
  %v2107 = vpack.c.b16 %v1411, %v1403
  %v2108 = vpack.c.b16 %v1412, %v1404
  %v2109 = vpack.c.b16 %v1413, %v1405
  %v2110 = vpack.c.b16 %v1414, %v1406
  %v2111 = vpack.c.b16 %v1423, %v1415
  %v2112 = vpack.c.b16 %v1424, %v1416
  %v2113 = vpack.c.b16 %v1425, %v1417
  %v2114 = vpack.c.b16 %v1426, %v1418
  %v2115 = vpack.c.b16 %v1427, %v1419
  %v2116 = vpack.c.b16 %v1428, %v1420
  %v2117 = vpack.c.b16 %v1429, %v1421
  %v2118 = vpack.c.b16 %v1430, %v1422
  %v2119 = vpack.c.b16 %v1439, %v1431
  %v2120 = vpack.c.b16 %v1440, %v1432
  %v2121 = vpack.c.b16 %v1441, %v1433
  %v2122 = vpack.c.b16 %v1442, %v1434
  %v2123 = vpack.c.b16 %v1443, %v1435
  %v2124 = vpack.c.b16 %v1444, %v1436
  %v2125 = vpack.c.b16 %v1445, %v1437
  %v2126 = vpack.c.b16 %v1446, %v1438
  %v2127 = vpack.c.b16 %v1455, %v1447
  %v2128 = vpack.c.b16 %v1456, %v1448
  %v2129 = vpack.c.b16 %v1457, %v1449
  %v2130 = vpack.c.b16 %v1458, %v1450
  %v2131 = vpack.c.b16 %v1459, %v1451
  %v2132 = vpack.c.b16 %v1460, %v1452
  %v2133 = vpack.c.b16 %v1461, %v1453
  %v2134 = vpack.c.b16 %v1462, %v1454
  %v2135 = vpack.c.b16 %v1471, %v1463
  %v2136 = vpack.c.b16 %v1472, %v1464
  %v2137 = vpack.c.b16 %v1473, %v1465
  %v2138 = vpack.c.b16 %v1474, %v1466
  %v2139 = vpack.c.b16 %v1475, %v1467
  %v2140 = vpack.c.b16 %v1476, %v1468
  %v2141 = vpack.c.b16 %v1477, %v1469
  %v2142 = vpack.c.b16 %v1478, %v1470
  %v2143 = vpack.c.b16 %v1487, %v1479
  %v2144 = vpack.c.b16 %v1488, %v1480
  %v2145 = vpack.c.b16 %v1489, %v1481
  %v2146 = vpack.c.b16 %v1490, %v1482
  %v2147 = vpack.c.b16 %v1491, %v1483
  %v2148 = vpack.c.b16 %v1492, %v1484
  %v2149 = vpack.c.b16 %v1493, %v1485
  %v2150 = vpack.c.b16 %v1494, %v1486
  %v2151 = vpack.c.b16 %v1503, %v1495
  %v2152 = vpack.c.b16 %v1504, %v1496
  %v2153 = vpack.c.b16 %v1505, %v1497
  %v2154 = vpack.c.b16 %v1506, %v1498
  %v2155 = vpack.c.b16 %v1507, %v1499
  %v2156 = vpack.c.b16 %v1508, %v1500
  %v2157 = vpack.c.b16 %v1509, %v1501
  %v2158 = vpack.c.b16 %v1510, %v1502
  %v2159 = vpack.c.b16 %v1519, %v1511
  %v2160 = vpack.c.b16 %v1520, %v1512
  %v2161 = vpack.c.b16 %v1521, %v1513
  %v2162 = vpack.c.b16 %v1522, %v1514
  %v2163 = vpack.c.b16 %v1523, %v1515
  %v2164 = vpack.c.b16 %v1524, %v1516
  %v2165 = vpack.c.b16 %v1525, %v1517
  %v2166 = vpack.c.b16 %v1526, %v1518
  %v2167 = vpack.c.b16 %v1535, %v1527
  %v2168 = vpack.c.b16 %v1536, %v1528
  %v2169 = vpack.c.b16 %v1537, %v1529
  %v2170 = vpack.c.b16 %v1538, %v1530
  %v2171 = vpack.c.b16 %v1539, %v1531
  %v2172 = vpack.c.b16 %v1540, %v1532
  %v2173 = vpack.c.b16 %v1541, %v1533
  %v2174 = vpack.c.b16 %v1542, %v1534
  %v2175 = vpack.c.b16 %v1551, %v1543
  %v2176 = vpack.c.b16 %v1552, %v1544
  %v2177 = vpack.c.b16 %v1553, %v1545
  %v2178 = vpack.c.b16 %v1554, %v1546
  %v2179 = vpack.c.b16 %v1555, %v1547
  %v2180 = vpack.c.b16 %v1556, %v1548
  %v2181 = vpack.c.b16 %v1557, %v1549
  %v2182 = vpack.c.b16 %v1558, %v1550
  %v2183 = vpack.c.b16 %v1567, %v1559
  %v2184 = vpack.c.b16 %v1568, %v1560
  %v2185 = vpack.c.b16 %v1569, %v1561
  %v2186 = vpack.c.b16 %v1570, %v1562
  %v2187 = vpack.c.b16 %v1571, %v1563
  %v2188 = vpack.c.b16 %v1572, %v1564
  %v2189 = vpack.c.b16 %v1573, %v1565
  %v2190 = vpack.c.b16 %v1574, %v1566
  %v2191 = vpack.c.b16 %v1583, %v1575
  %v2192 = vpack.c.b16 %v1584, %v1576
  %v2193 = vpack.c.b16 %v1585, %v1577
  %v2194 = vpack.c.b16 %v1586, %v1578
  %v2195 = vpack.c.b16 %v1587, %v1579
  %v2196 = vpack.c.b16 %v1588, %v1580
  %v2197 = vpack.c.b16 %v1589, %v1581
  %v2198 = vpack.c.b16 %v1590, %v1582
  %v2199 = vpack.c.b16 %v1599, %v1591
  %v2200 = vpack.c.b16 %v1600, %v1592
  %v2201 = vpack.c.b16 %v1601, %v1593
  %v2202 = vpack.c.b16 %v1602, %v1594
  %v2203 = vpack.c.b16 %v1603, %v1595
  %v2204 = vpack.c.b16 %v1604, %v1596
  %v2205 = vpack.c.b16 %v1605, %v1597
  %v2206 = vpack.c.b16 %v1606, %v1598
  %v2207 = vpack.c.b16 %v1615, %v1607
  %v2208 = vpack.c.b16 %v1616, %v1608
  %v2209 = vpack.c.b16 %v1617, %v1609
  %v2210 = vpack.c.b16 %v1618, %v1610
  %v2211 = vpack.c.b16 %v1619, %v1611
  %v2212 = vpack.c.b16 %v1620, %v1612
  %v2213 = vpack.c.b16 %v1621, %v1613
  %v2214 = vpack.c.b16 %v1622, %v1614
  %v2215 = vpack.c.b16 %v1631, %v1623
  %v2216 = vpack.c.b16 %v1632, %v1624
  %v2217 = vpack.c.b16 %v1633, %v1625
  %v2218 = vpack.c.b16 %v1634, %v1626
  %v2219 = vpack.c.b16 %v1635, %v1627
  %v2220 = vpack.c.b16 %v1636, %v1628
  %v2221 = vpack.c.b16 %v1637, %v1629
  %v2222 = vpack.c.b16 %v1638, %v1630
  %v2223 = vpack.c.b16 %v1647, %v1639
  %v2224 = vpack.c.b16 %v1648, %v1640
  %v2225 = vpack.c.b16 %v1649, %v1641
  %v2226 = vpack.c.b16 %v1650, %v1642
  %v2227 = vpack.c.b16 %v1651, %v1643
  %v2228 = vpack.c.b16 %v1652, %v1644
  %v2229 = vpack.c.b16 %v1653, %v1645
  %v2230 = vpack.c.b16 %v1654, %v1646
  %v2231 = vpack.c.b16 %v1663, %v1655
  %v2232 = vpack.c.b16 %v1664, %v1656
  %v2233 = vpack.c.b16 %v1665, %v1657
  %v2234 = vpack.c.b16 %v1666, %v1658
  %v2235 = vpack.c.b16 %v1667, %v1659
  %v2236 = vpack.c.b16 %v1668, %v1660
  %v2237 = vpack.c.b16 %v1669, %v1661
  %v2238 = vpack.c.b16 %v1670, %v1662
  %v2239 = vpack.c.b16 %v1679, %v1671
  %v2240 = vpack.c.b16 %v1680, %v1672
  %v2241 = vpack.c.b16 %v1681, %v1673
  %v2242 = vpack.c.b16 %v1682, %v1674
  %v2243 = vpack.c.b16 %v1683, %v1675
  %v2244 = vpack.c.b16 %v1684, %v1676
  %v2245 = vpack.c.b16 %v1685, %v1677
  %v2246 = vpack.c.b16 %v1686, %v1678
  %v2247 = vpack.c.b16 %v1695, %v1687
  %v2248 = vpack.c.b16 %v1696, %v1688
  %v2249 = vpack.c.b16 %v1697, %v1689
  %v2250 = vpack.c.b16 %v1698, %v1690
  %v2251 = vpack.c.b16 %v1699, %v1691
  %v2252 = vpack.c.b16 %v1700, %v1692
  %v2253 = vpack.c.b16 %v1701, %v1693
  %v2254 = vpack.c.b16 %v1702, %v1694
  %v2255 = vpack.c.b16 %v1711, %v1703
  %v2256 = vpack.c.b16 %v1712, %v1704
  %v2257 = vpack.c.b16 %v1713, %v1705
  %v2258 = vpack.c.b16 %v1714, %v1706
  %v2259 = vpack.c.b16 %v1715, %v1707
  %v2260 = vpack.c.b16 %v1716, %v1708
  %v2261 = vpack.c.b16 %v1717, %v1709
  %v2262 = vpack.c.b16 %v1718, %v1710
  %v2263 = vpack.c.b16 %v1727, %v1719
  %v2264 = vpack.c.b16 %v1728, %v1720
  %v2265 = vpack.c.b16 %v1729, %v1721
  %v2266 = vpack.c.b16 %v1730, %v1722
  %v2267 = vpack.c.b16 %v1731, %v1723
  %v2268 = vpack.c.b16 %v1732, %v1724
  %v2269 = vpack.c.b16 %v1733, %v1725
  %v2270 = vpack.c.b16 %v1734, %v1726
  %v2271 = vpack.c.b16 %v1743, %v1735
  %v2272 = vpack.c.b16 %v1744, %v1736
  %v2273 = vpack.c.b16 %v1745, %v1737
  %v2274 = vpack.c.b16 %v1746, %v1738
  %v2275 = vpack.c.b16 %v1747, %v1739
  %v2276 = vpack.c.b16 %v1748, %v1740
  %v2277 = vpack.c.b16 %v1749, %v1741
  %v2278 = vpack.c.b16 %v1750, %v1742
  %v2279 = vpack.c.b16 %v1759, %v1751
  %v2280 = vpack.c.b16 %v1760, %v1752
  %v2281 = vpack.c.b16 %v1761, %v1753
  %v2282 = vpack.c.b16 %v1762, %v1754
  %v2283 = vpack.c.b16 %v1763, %v1755
  %v2284 = vpack.c.b16 %v1764, %v1756
  %v2285 = vpack.c.b16 %v1765, %v1757
  %v2286 = vpack.c.b16 %v1766, %v1758
  %v2287 = vpack.c.b16 %v1775, %v1767
  %v2288 = vpack.c.b16 %v1776, %v1768
  %v2289 = vpack.c.b16 %v1777, %v1769
  %v2290 = vpack.c.b16 %v1778, %v1770
  %v2291 = vpack.c.b16 %v1779, %v1771
  %v2292 = vpack.c.b16 %v1780, %v1772
  %v2293 = vpack.c.b16 %v1781, %v1773
  %v2294 = vpack.c.b16 %v1782, %v1774
  %v2295 = vpack.c.b16 %v1791, %v1783
  %v2296 = vpack.c.b16 %v1792, %v1784
  %v2297 = vpack.c.b16 %v1793, %v1785
  %v2298 = vpack.c.b16 %v1794, %v1786
  %v2299 = vpack.c.b16 %v1795, %v1787
  %v2300 = vpack.c.b16 %v1796, %v1788
  %v2301 = vpack.c.b16 %v1797, %v1789
  %v2302 = vpack.c.b16 %v1798, %v1790
  %v2303 = vpack.c.b16 %v1807, %v1799
  %v2304 = vpack.c.b16 %v1808, %v1800
  %v2305 = vpack.c.b16 %v1809, %v1801
  %v2306 = vpack.c.b16 %v1810, %v1802
  %v2307 = vpack.c.b16 %v1811, %v1803
  %v2308 = vpack.c.b16 %v1812, %v1804
  %v2309 = vpack.c.b16 %v1813, %v1805
  %v2310 = vpack.c.b16 %v1814, %v1806
  %v2311 = vpack.c.b16 %v1823, %v1815
  %v2312 = vpack.c.b16 %v1824, %v1816
  %v2313 = vpack.c.b16 %v1825, %v1817
  %v2314 = vpack.c.b16 %v1826, %v1818
  %v2315 = vpack.c.b16 %v1827, %v1819
  %v2316 = vpack.c.b16 %v1828, %v1820
  %v2317 = vpack.c.b16 %v1829, %v1821
  %v2318 = vpack.c.b16 %v1830, %v1822
  %v2319 = vpack.c.b16 %v1839, %v1831
  %v2320 = vpack.c.b16 %v1840, %v1832
  %v2321 = vpack.c.b16 %v1841, %v1833
  %v2322 = vpack.c.b16 %v1842, %v1834
  %v2323 = vpack.c.b16 %v1843, %v1835
  %v2324 = vpack.c.b16 %v1844, %v1836
  %v2325 = vpack.c.b16 %v1845, %v1837
  %v2326 = vpack.c.b16 %v1846, %v1838
  %v2327 = vpack.c.b16 %v1855, %v1847
  %v2328 = vpack.c.b16 %v1856, %v1848
  %v2329 = vpack.c.b16 %v1857, %v1849
  %v2330 = vpack.c.b16 %v1858, %v1850
  %v2331 = vpack.c.b16 %v1859, %v1851
  %v2332 = vpack.c.b16 %v1860, %v1852
  %v2333 = vpack.c.b16 %v1861, %v1853
  %v2334 = vpack.c.b16 %v1862, %v1854
  %v2335 = vpack.c.b16 %v1871, %v1863
  %v2336 = vpack.c.b16 %v1872, %v1864
  %v2337 = vpack.c.b16 %v1873, %v1865
  %v2338 = vpack.c.b16 %v1874, %v1866
  %v2339 = vpack.c.b16 %v1875, %v1867
  %v2340 = vpack.c.b16 %v1876, %v1868
  %v2341 = vpack.c.b16 %v1877, %v1869
  %v2342 = vpack.c.b16 %v1878, %v1870
  %v2343 = vpack.c.b16 %v1887, %v1879
  %v2344 = vpack.c.b16 %v1888, %v1880
  %v2345 = vpack.c.b16 %v1889, %v1881
  %v2346 = vpack.c.b16 %v1890, %v1882
  %v2347 = vpack.c.b16 %v1891, %v1883
  %v2348 = vpack.c.b16 %v1892, %v1884
  %v2349 = vpack.c.b16 %v1893, %v1885
  %v2350 = vpack.c.b16 %v1894, %v1886
  %v2351 = vpack.c.b16 %v1903, %v1895
  %v2352 = vpack.c.b16 %v1904, %v1896
  %v2353 = vpack.c.b16 %v1905, %v1897
  %v2354 = vpack.c.b16 %v1906, %v1898
  %v2355 = vpack.c.b16 %v1907, %v1899
  %v2356 = vpack.c.b16 %v1908, %v1900
  %v2357 = vpack.c.b16 %v1909, %v1901
  %v2358 = vpack.c.b16 %v1910, %v1902
  %2807 = vmatprep.subr.bf16.mxu0 %v1912
  %2808 = vmatpush1.bf16.msra.mxu0 %v1911
  %2809 = vmatprep.subr.bf16.mxu0 %v1920
  %2810 = vmatpush1.bf16.msra.mxu0 %v1919
  %2811 = vmatprep.subr.bf16.mxu0 %v1928
  %2812 = vmatpush1.bf16.msra.mxu0 %v1927
  %2813 = vmatprep.subr.bf16.mxu0 %v1936
  %2814 = vmatpush1.bf16.msra.mxu0 %v1935
  %2815 = vmatprep.subr.bf16.mxu0 %v1944
  %2816 = vmatpush1.bf16.msra.mxu0 %v1943
  %2817 = vmatprep.subr.bf16.mxu0 %v1952
  %2818 = vmatpush1.bf16.msra.mxu0 %v1951
  %2819 = vmatprep.subr.bf16.mxu0 %v1960
  %2820 = vmatpush1.bf16.msra.mxu0 %v1959
  %2821 = vmatprep.subr.bf16.mxu0 %v1968
  %2822 = vmatpush1.bf16.msra.mxu0 %v1967
  %2823 = vmatprep.subr.bf16.mxu0 %v1976
  %2824 = vmatpush1.bf16.msra.mxu0 %v1975
  %2825 = vmatprep.subr.bf16.mxu0 %v1984
  %2826 = vmatpush1.bf16.msra.mxu0 %v1983
  %2827 = vmatprep.subr.bf16.mxu0 %v1992
  %2828 = vmatpush1.bf16.msra.mxu0 %v1991
  %2829 = vmatprep.subr.bf16.mxu0 %v2000
  %2830 = vmatpush1.bf16.msra.mxu0 %v1999
  %2831 = vmatprep.subr.bf16.mxu0 %v2008
  %2832 = vmatpush1.bf16.msra.mxu0 %v2007
  %2833 = vmatprep.subr.bf16.mxu0 %v2016
  %2834 = vmatpush1.bf16.msra.mxu0 %v2015
  %2835 = vmatprep.subr.bf16.mxu0 %v2024
  %2836 = vmatpush1.bf16.msra.mxu0 %v2023
  %2837 = vmatprep.subr.bf16.mxu0 %v2032
  %2838 = vmatpush1.bf16.msra.mxu0 %v2031
  %2839 = vmatprep.mubr.bf16.mxu0 %v554
  %2840 = vmatmul.mubr.bf16.gmra.mrb[0].mxu0 %v553
  %v2841 = vpop.f32.mrb[0].mxu0
  %v2842 = vadd.f32 %v494, %v2841
  %v2843 = vpop.f32.mrb[0].mxu0
  %v2844 = vadd.f32 %v498, %v2843
  %v2845 = vpop.f32.mrb[0].mxu0
  %v2846 = vadd.f32 %v494, %v2845
  %v2847 = vpop.f32.mrb[0].mxu0
  %v2848 = vadd.f32 %v498, %v2847
  %2849 = vdwg.mxu0
  %2850 = vmatprep.subr.bf16.mxu0 %v2040
  %2851 = vmatpush1.bf16.msra.mxu0 %v2039
  %2852 = vmatprep.subr.bf16.mxu0 %v2048
  %2853 = vmatpush1.bf16.msra.mxu0 %v2047
  %2854 = vmatprep.subr.bf16.mxu0 %v2056
  %2855 = vmatpush1.bf16.msra.mxu0 %v2055
  %2856 = vmatprep.subr.bf16.mxu0 %v2064
  %2857 = vmatpush1.bf16.msra.mxu0 %v2063
  %2858 = vmatprep.subr.bf16.mxu0 %v2072
  %2859 = vmatpush1.bf16.msra.mxu0 %v2071
  %2860 = vmatprep.subr.bf16.mxu0 %v2080
  %2861 = vmatpush1.bf16.msra.mxu0 %v2079
  %2862 = vmatprep.subr.bf16.mxu0 %v2088
  %2863 = vmatpush1.bf16.msra.mxu0 %v2087
  %2864 = vmatprep.subr.bf16.mxu0 %v2096
  %2865 = vmatpush1.bf16.msra.mxu0 %v2095
  %2866 = vmatprep.subr.bf16.mxu0 %v2104
  %2867 = vmatpush1.bf16.msra.mxu0 %v2103
  %2868 = vmatprep.subr.bf16.mxu0 %v2112
  %2869 = vmatpush1.bf16.msra.mxu0 %v2111
  %2870 = vmatprep.subr.bf16.mxu0 %v2120
  %2871 = vmatpush1.bf16.msra.mxu0 %v2119
  %2872 = vmatprep.subr.bf16.mxu0 %v2128
  %2873 = vmatpush1.bf16.msra.mxu0 %v2127
  %2874 = vmatprep.subr.bf16.mxu0 %v2136
  %2875 = vmatpush1.bf16.msra.mxu0 %v2135
  %2876 = vmatprep.subr.bf16.mxu0 %v2144
  %2877 = vmatpush1.bf16.msra.mxu0 %v2143
  %2878 = vmatprep.subr.bf16.mxu0 %v2152
  %2879 = vmatpush1.bf16.msra.mxu0 %v2151
  %2880 = vmatprep.subr.bf16.mxu0 %v2160
  %2881 = vmatpush1.bf16.msra.mxu0 %v2159
  %2882 = vmatprep.mubr.bf16.mxu0 %v556
  %2883 = vmatmul.mubr.bf16.gmra.mrb[0].mxu0 %v555
  %v2884 = vpop.f32.mrb[0].mxu0
  %v2885 = vadd.f32 %v2842, %v2884
  %v2886 = vpop.f32.mrb[0].mxu0
  %v2887 = vadd.f32 %v2844, %v2886
  %v2888 = vpop.f32.mrb[0].mxu0
  %v2889 = vadd.f32 %v2846, %v2888
  %v2890 = vpop.f32.mrb[0].mxu0
  %v2891 = vadd.f32 %v2848, %v2890
  %2892 = vdwg.mxu0
  %2893 = vmatprep.subr.bf16.mxu0 %v2168
  %2894 = vmatpush1.bf16.msra.mxu0 %v2167
  %2895 = vmatprep.subr.bf16.mxu0 %v2176
  %2896 = vmatpush1.bf16.msra.mxu0 %v2175
  %2897 = vmatprep.subr.bf16.mxu0 %v2184
  %2898 = vmatpush1.bf16.msra.mxu0 %v2183
  %2899 = vmatprep.subr.bf16.mxu0 %v2192
  %2900 = vmatpush1.bf16.msra.mxu0 %v2191
  %2901 = vmatprep.subr.bf16.mxu0 %v2200
  %2902 = vmatpush1.bf16.msra.mxu0 %v2199
  %2903 = vmatprep.subr.bf16.mxu0 %v2208
  %2904 = vmatpush1.bf16.msra.mxu0 %v2207
  %2905 = vmatprep.subr.bf16.mxu0 %v2216
  %2906 = vmatpush1.bf16.msra.mxu0 %v2215
  %2907 = vmatprep.subr.bf16.mxu0 %v2224
  %2908 = vmatpush1.bf16.msra.mxu0 %v2223
  %2909 = vmatprep.subr.bf16.mxu0 %v2232
  %2910 = vmatpush1.bf16.msra.mxu0 %v2231
  %2911 = vmatprep.subr.bf16.mxu0 %v2240
  %2912 = vmatpush1.bf16.msra.mxu0 %v2239
  %2913 = vmatprep.subr.bf16.mxu0 %v2248
  %2914 = vmatpush1.bf16.msra.mxu0 %v2247
  %2915 = vmatprep.subr.bf16.mxu0 %v2256
  %2916 = vmatpush1.bf16.msra.mxu0 %v2255
  %2917 = vmatprep.subr.bf16.mxu0 %v2264
  %2918 = vmatpush1.bf16.msra.mxu0 %v2263
  %2919 = vmatprep.subr.bf16.mxu0 %v2272
  %2920 = vmatpush1.bf16.msra.mxu0 %v2271
  %2921 = vmatprep.subr.bf16.mxu0 %v2280
  %2922 = vmatpush1.bf16.msra.mxu0 %v2279
  %2923 = vmatprep.subr.bf16.mxu0 %v2288
  %2924 = vmatpush1.bf16.msra.mxu0 %v2287
  %2925 = vmatprep.mubr.bf16.mxu0 %v558
  %2926 = vmatmul.mubr.bf16.gmra.mrb[0].mxu0 %v557
  %v2927 = vpop.f32.mrb[0].mxu0
  %v2928 = vadd.f32 %v2885, %v2927
  %v2929 = vpop.f32.mrb[0].mxu0
  %v2930 = vadd.f32 %v2887, %v2929
  %v2931 = vpop.f32.mrb[0].mxu0
  %v2932 = vadd.f32 %v2889, %v2931
  %v2933 = vpop.f32.mrb[0].mxu0
  %v2934 = vadd.f32 %v2891, %v2933
  %2935 = vdwg.mxu0
  %2936 = vmatprep.subr.bf16.mxu0 %v2296
  %2937 = vmatpush1.bf16.msra.mxu0 %v2295
  %2938 = vmatprep.subr.bf16.mxu0 %v2304
  %2939 = vmatpush1.bf16.msra.mxu0 %v2303
  %2940 = vmatprep.subr.bf16.mxu0 %v2312
  %2941 = vmatpush1.bf16.msra.mxu0 %v2311
  %2942 = vmatprep.subr.bf16.mxu0 %v2320
  %2943 = vmatpush1.bf16.msra.mxu0 %v2319
  %2944 = vmatprep.subr.bf16.mxu0 %v2328
  %2945 = vmatpush1.bf16.msra.mxu0 %v2327
  %2946 = vmatprep.subr.bf16.mxu0 %v2336
  %2947 = vmatpush1.bf16.msra.mxu0 %v2335
  %2948 = vmatprep.subr.bf16.mxu0 %v2344
  %2949 = vmatpush1.bf16.msra.mxu0 %v2343
  %2950 = vmatprep.subr.bf16.mxu0 %v2352
  %2951 = vmatpush1.bf16.msra.mxu0 %v2351
  %2952 = vmatprep.subr.bf16.mxu0 0
  %2953 = vmatpush1.bf16.msra.mxu0 0
  %2954 = vmatprep.subr.bf16.mxu0 0
  %2955 = vmatpush1.bf16.msra.mxu0 0
  %2956 = vmatprep.subr.bf16.mxu0 0
  %2957 = vmatpush1.bf16.msra.mxu0 0
  %2958 = vmatprep.subr.bf16.mxu0 0
  %2959 = vmatpush1.bf16.msra.mxu0 0
  %2960 = vmatprep.subr.bf16.mxu0 0
  %2961 = vmatpush1.bf16.msra.mxu0 0
  %2962 = vmatprep.subr.bf16.mxu0 0
  %2963 = vmatpush1.bf16.msra.mxu0 0
  %2964 = vmatprep.subr.bf16.mxu0 0
  %2965 = vmatpush1.bf16.msra.mxu0 0
  %2966 = vmatprep.subr.bf16.mxu0 0
  %2967 = vmatpush1.bf16.msra.mxu0 0
  %2968 = vmatprep.mubr.bf16.mxu0 0
  %2969 = vmatmul.mubr.bf16.gmra.mrb[0].mxu0 %v559
  %v2970 = vpop.f32.mrb[0].mxu0
  %v2971 = vadd.f32 %v2928, %v2970
  %v2972 = vpop.f32.mrb[0].mxu0
  %v2973 = vadd.f32 %v2930, %v2972
  %v2974 = vpop.f32.mrb[0].mxu0
  %v2975 = vadd.f32 %v2932, %v2974
  %v2976 = vpop.f32.mrb[0].mxu0
  %v2977 = vadd.f32 %v2934, %v2976
  %2978 = vdwg.mxu0
  %2979 = vmatprep.subr.bf16.mxu0 %v1914
  %2980 = vmatpush1.bf16.msra.mxu0 %v1913
  %2981 = vmatprep.subr.bf16.mxu0 %v1922
  %2982 = vmatpush1.bf16.msra.mxu0 %v1921
  %2983 = vmatprep.subr.bf16.mxu0 %v1930
  %2984 = vmatpush1.bf16.msra.mxu0 %v1929
  %2985 = vmatprep.subr.bf16.mxu0 %v1938
  %2986 = vmatpush1.bf16.msra.mxu0 %v1937
  %2987 = vmatprep.subr.bf16.mxu0 %v1946
  %2988 = vmatpush1.bf16.msra.mxu0 %v1945
  %2989 = vmatprep.subr.bf16.mxu0 %v1954
  %2990 = vmatpush1.bf16.msra.mxu0 %v1953
  %2991 = vmatprep.subr.bf16.mxu0 %v1962
  %2992 = vmatpush1.bf16.msra.mxu0 %v1961
  %2993 = vmatprep.subr.bf16.mxu0 %v1970
  %2994 = vmatpush1.bf16.msra.mxu0 %v1969
  %2995 = vmatprep.subr.bf16.mxu0 %v1978
  %2996 = vmatpush1.bf16.msra.mxu0 %v1977
  %2997 = vmatprep.subr.bf16.mxu0 %v1986
  %2998 = vmatpush1.bf16.msra.mxu0 %v1985
  %2999 = vmatprep.subr.bf16.mxu0 %v1994
  %3000 = vmatpush1.bf16.msra.mxu0 %v1993
  %3001 = vmatprep.subr.bf16.mxu0 %v2002
  %3002 = vmatpush1.bf16.msra.mxu0 %v2001
  %3003 = vmatprep.subr.bf16.mxu0 %v2010
  %3004 = vmatpush1.bf16.msra.mxu0 %v2009
  %3005 = vmatprep.subr.bf16.mxu0 %v2018
  %3006 = vmatpush1.bf16.msra.mxu0 %v2017
  %3007 = vmatprep.subr.bf16.mxu0 %v2026
  %3008 = vmatpush1.bf16.msra.mxu0 %v2025
  %3009 = vmatprep.subr.bf16.mxu0 %v2034
  %3010 = vmatpush1.bf16.msra.mxu0 %v2033
  %3011 = vmatprep.mubr.bf16.mxu0 %v554
  %3012 = vmatmul.mubr.bf16.gmra.mrb[0].mxu0 %v553
  %v3013 = vpop.f32.mrb[0].mxu0
  %v3014 = vadd.f32 %v502, %v3013
  %v3015 = vpop.f32.mrb[0].mxu0
  %v3016 = vadd.f32 %v506, %v3015
  %v3017 = vpop.f32.mrb[0].mxu0
  %v3018 = vadd.f32 %v502, %v3017
  %v3019 = vpop.f32.mrb[0].mxu0
  %v3020 = vadd.f32 %v506, %v3019
  %3021 = vdwg.mxu0
  %3022 = vmatprep.subr.bf16.mxu0 %v2042
  %3023 = vmatpush1.bf16.msra.mxu0 %v2041
  %3024 = vmatprep.subr.bf16.mxu0 %v2050
  %3025 = vmatpush1.bf16.msra.mxu0 %v2049
  %3026 = vmatprep.subr.bf16.mxu0 %v2058
  %3027 = vmatpush1.bf16.msra.mxu0 %v2057
  %3028 = vmatprep.subr.bf16.mxu0 %v2066
  %3029 = vmatpush1.bf16.msra.mxu0 %v2065
  %3030 = vmatprep.subr.bf16.mxu0 %v2074
  %3031 = vmatpush1.bf16.msra.mxu0 %v2073
  %3032 = vmatprep.subr.bf16.mxu0 %v2082
  %3033 = vmatpush1.bf16.msra.mxu0 %v2081
  %3034 = vmatprep.subr.bf16.mxu0 %v2090
  %3035 = vmatpush1.bf16.msra.mxu0 %v2089
  %3036 = vmatprep.subr.bf16.mxu0 %v2098
  %3037 = vmatpush1.bf16.msra.mxu0 %v2097
  %3038 = vmatprep.subr.bf16.mxu0 %v2106
  %3039 = vmatpush1.bf16.msra.mxu0 %v2105
  %3040 = vmatprep.subr.bf16.mxu0 %v2114
  %3041 = vmatpush1.bf16.msra.mxu0 %v2113
  %3042 = vmatprep.subr.bf16.mxu0 %v2122
  %3043 = vmatpush1.bf16.msra.mxu0 %v2121
  %3044 = vmatprep.subr.bf16.mxu0 %v2130
  %3045 = vmatpush1.bf16.msra.mxu0 %v2129
  %3046 = vmatprep.subr.bf16.mxu0 %v2138
  %3047 = vmatpush1.bf16.msra.mxu0 %v2137
  %3048 = vmatprep.subr.bf16.mxu0 %v2146
  %3049 = vmatpush1.bf16.msra.mxu0 %v2145
  %3050 = vmatprep.subr.bf16.mxu0 %v2154
  %3051 = vmatpush1.bf16.msra.mxu0 %v2153
  %3052 = vmatprep.subr.bf16.mxu0 %v2162
  %3053 = vmatpush1.bf16.msra.mxu0 %v2161
  %3054 = vmatprep.mubr.bf16.mxu0 %v556
  %3055 = vmatmul.mubr.bf16.gmra.mrb[0].mxu0 %v555
  %v3056 = vpop.f32.mrb[0].mxu0
  %v3057 = vadd.f32 %v3014, %v3056
  %v3058 = vpop.f32.mrb[0].mxu0
  %v3059 = vadd.f32 %v3016, %v3058
  %v3060 = vpop.f32.mrb[0].mxu0
  %v3061 = vadd.f32 %v3018, %v3060
  %v3062 = vpop.f32.mrb[0].mxu0
  %v3063 = vadd.f32 %v3020, %v3062
  %3064 = vdwg.mxu0
  %3065 = vmatprep.subr.bf16.mxu0 %v2170
  %3066 = vmatpush1.bf16.msra.mxu0 %v2169
  %3067 = vmatprep.subr.bf16.mxu0 %v2178
  %3068 = vmatpush1.bf16.msra.mxu0 %v2177
  %3069 = vmatprep.subr.bf16.mxu0 %v2186
  %3070 = vmatpush1.bf16.msra.mxu0 %v2185
  %3071 = vmatprep.subr.bf16.mxu0 %v2194
  %3072 = vmatpush1.bf16.msra.mxu0 %v2193
  %3073 = vmatprep.subr.bf16.mxu0 %v2202
  %3074 = vmatpush1.bf16.msra.mxu0 %v2201
  %3075 = vmatprep.subr.bf16.mxu0 %v2210
  %3076 = vmatpush1.bf16.msra.mxu0 %v2209
  %3077 = vmatprep.subr.bf16.mxu0 %v2218
  %3078 = vmatpush1.bf16.msra.mxu0 %v2217
  %3079 = vmatprep.subr.bf16.mxu0 %v2226
  %3080 = vmatpush1.bf16.msra.mxu0 %v2225
  %3081 = vmatprep.subr.bf16.mxu0 %v2234
  %3082 = vmatpush1.bf16.msra.mxu0 %v2233
  %3083 = vmatprep.subr.bf16.mxu0 %v2242
  %3084 = vmatpush1.bf16.msra.mxu0 %v2241
  %3085 = vmatprep.subr.bf16.mxu0 %v2250
  %3086 = vmatpush1.bf16.msra.mxu0 %v2249
  %3087 = vmatprep.subr.bf16.mxu0 %v2258
  %3088 = vmatpush1.bf16.msra.mxu0 %v2257
  %3089 = vmatprep.subr.bf16.mxu0 %v2266
  %3090 = vmatpush1.bf16.msra.mxu0 %v2265
  %3091 = vmatprep.subr.bf16.mxu0 %v2274
  %3092 = vmatpush1.bf16.msra.mxu0 %v2273
  %3093 = vmatprep.subr.bf16.mxu0 %v2282
  %3094 = vmatpush1.bf16.msra.mxu0 %v2281
  %3095 = vmatprep.subr.bf16.mxu0 %v2290
  %3096 = vmatpush1.bf16.msra.mxu0 %v2289
  %3097 = vmatprep.mubr.bf16.mxu0 %v558
  %3098 = vmatmul.mubr.bf16.gmra.mrb[0].mxu0 %v557
  %v3099 = vpop.f32.mrb[0].mxu0
  %v3100 = vadd.f32 %v3057, %v3099
  %v3101 = vpop.f32.mrb[0].mxu0
  %v3102 = vadd.f32 %v3059, %v3101
  %v3103 = vpop.f32.mrb[0].mxu0
  %v3104 = vadd.f32 %v3061, %v3103
  %v3105 = vpop.f32.mrb[0].mxu0
  %v3106 = vadd.f32 %v3063, %v3105
  %3107 = vdwg.mxu0
  %3108 = vmatprep.subr.bf16.mxu0 %v2298
  %3109 = vmatpush1.bf16.msra.mxu0 %v2297
  %3110 = vmatprep.subr.bf16.mxu0 %v2306
  %3111 = vmatpush1.bf16.msra.mxu0 %v2305
  %3112 = vmatprep.subr.bf16.mxu0 %v2314
  %3113 = vmatpush1.bf16.msra.mxu0 %v2313
  %3114 = vmatprep.subr.bf16.mxu0 %v2322
  %3115 = vmatpush1.bf16.msra.mxu0 %v2321
  %3116 = vmatprep.subr.bf16.mxu0 %v2330
  %3117 = vmatpush1.bf16.msra.mxu0 %v2329
  %3118 = vmatprep.subr.bf16.mxu0 %v2338
  %3119 = vmatpush1.bf16.msra.mxu0 %v2337
  %3120 = vmatprep.subr.bf16.mxu0 %v2346
  %3121 = vmatpush1.bf16.msra.mxu0 %v2345
  %3122 = vmatprep.subr.bf16.mxu0 %v2354
  %3123 = vmatpush1.bf16.msra.mxu0 %v2353
  %3124 = vmatprep.subr.bf16.mxu0 0
  %3125 = vmatpush1.bf16.msra.mxu0 0
  %3126 = vmatprep.subr.bf16.mxu0 0
  %3127 = vmatpush1.bf16.msra.mxu0 0
  %3128 = vmatprep.subr.bf16.mxu0 0
  %3129 = vmatpush1.bf16.msra.mxu0 0
  %3130 = vmatprep.subr.bf16.mxu0 0
  %3131 = vmatpush1.bf16.msra.mxu0 0
  %3132 = vmatprep.subr.bf16.mxu0 0
  %3133 = vmatpush1.bf16.msra.mxu0 0
  %3134 = vmatprep.subr.bf16.mxu0 0
  %3135 = vmatpush1.bf16.msra.mxu0 0
  %3136 = vmatprep.subr.bf16.mxu0 0
  %3137 = vmatpush1.bf16.msra.mxu0 0
  %3138 = vmatprep.subr.bf16.mxu0 0
  %3139 = vmatpush1.bf16.msra.mxu0 0
  %3140 = vmatprep.mubr.bf16.mxu0 0
  %3141 = vmatmul.mubr.bf16.gmra.mrb[0].mxu0 %v559
  %v3142 = vpop.f32.mrb[0].mxu0
  %v3143 = vadd.f32 %v3100, %v3142
  %v3144 = vpop.f32.mrb[0].mxu0
  %v3145 = vadd.f32 %v3102, %v3144
  %v3146 = vpop.f32.mrb[0].mxu0
  %v3147 = vadd.f32 %v3104, %v3146
  %v3148 = vpop.f32.mrb[0].mxu0
  %v3149 = vadd.f32 %v3106, %v3148
  %3150 = vdwg.mxu0
  %3151 = vmatprep.subr.bf16.mxu0 %v1916
  %3152 = vmatpush1.bf16.msra.mxu0 %v1915
  %3153 = vmatprep.subr.bf16.mxu0 %v1924
  %3154 = vmatpush1.bf16.msra.mxu0 %v1923
  %3155 = vmatprep.subr.bf16.mxu0 %v1932
  %3156 = vmatpush1.bf16.msra.mxu0 %v1931
  %3157 = vmatprep.subr.bf16.mxu0 %v1940
  %3158 = vmatpush1.bf16.msra.mxu0 %v1939
  %3159 = vmatprep.subr.bf16.mxu0 %v1948
  %3160 = vmatpush1.bf16.msra.mxu0 %v1947
  %3161 = vmatprep.subr.bf16.mxu0 %v1956
  %3162 = vmatpush1.bf16.msra.mxu0 %v1955
  %3163 = vmatprep.subr.bf16.mxu0 %v1964
  %3164 = vmatpush1.bf16.msra.mxu0 %v1963
  %3165 = vmatprep.subr.bf16.mxu0 %v1972
  %3166 = vmatpush1.bf16.msra.mxu0 %v1971
  %3167 = vmatprep.subr.bf16.mxu0 %v1980
  %3168 = vmatpush1.bf16.msra.mxu0 %v1979
  %3169 = vmatprep.subr.bf16.mxu0 %v1988
  %3170 = vmatpush1.bf16.msra.mxu0 %v1987
  %3171 = vmatprep.subr.bf16.mxu0 %v1996
  %3172 = vmatpush1.bf16.msra.mxu0 %v1995
  %3173 = vmatprep.subr.bf16.mxu0 %v2004
  %3174 = vmatpush1.bf16.msra.mxu0 %v2003
  %3175 = vmatprep.subr.bf16.mxu0 %v2012
  %3176 = vmatpush1.bf16.msra.mxu0 %v2011
  %3177 = vmatprep.subr.bf16.mxu0 %v2020
  %3178 = vmatpush1.bf16.msra.mxu0 %v2019
  %3179 = vmatprep.subr.bf16.mxu0 %v2028
  %3180 = vmatpush1.bf16.msra.mxu0 %v2027
  %3181 = vmatprep.subr.bf16.mxu0 %v2036
  %3182 = vmatpush1.bf16.msra.mxu0 %v2035
  %3183 = vmatprep.mubr.bf16.mxu0 %v554
  %3184 = vmatmul.mubr.bf16.gmra.mrb[0].mxu0 %v553
  %v3185 = vpop.f32.mrb[0].mxu0
  %v3186 = vadd.f32 %v510, %v3185
  %v3187 = vpop.f32.mrb[0].mxu0
  %v3188 = vadd.f32 %v514, %v3187
  %v3189 = vpop.f32.mrb[0].mxu0
  %v3190 = vadd.f32 %v510, %v3189
  %v3191 = vpop.f32.mrb[0].mxu0
  %v3192 = vadd.f32 %v514, %v3191
  %3193 = vdwg.mxu0
  %3194 = vmatprep.subr.bf16.mxu0 %v2044
  %3195 = vmatpush1.bf16.msra.mxu0 %v2043
  %3196 = vmatprep.subr.bf16.mxu0 %v2052
  %3197 = vmatpush1.bf16.msra.mxu0 %v2051
  %3198 = vmatprep.subr.bf16.mxu0 %v2060
  %3199 = vmatpush1.bf16.msra.mxu0 %v2059
  %3200 = vmatprep.subr.bf16.mxu0 %v2068
  %3201 = vmatpush1.bf16.msra.mxu0 %v2067
  %3202 = vmatprep.subr.bf16.mxu0 %v2076
  %3203 = vmatpush1.bf16.msra.mxu0 %v2075
  %3204 = vmatprep.subr.bf16.mxu0 %v2084
  %3205 = vmatpush1.bf16.msra.mxu0 %v2083
  %3206 = vmatprep.subr.bf16.mxu0 %v2092
  %3207 = vmatpush1.bf16.msra.mxu0 %v2091
  %3208 = vmatprep.subr.bf16.mxu0 %v2100
  %3209 = vmatpush1.bf16.msra.mxu0 %v2099
  %3210 = vmatprep.subr.bf16.mxu0 %v2108
  %3211 = vmatpush1.bf16.msra.mxu0 %v2107
  %3212 = vmatprep.subr.bf16.mxu0 %v2116
  %3213 = vmatpush1.bf16.msra.mxu0 %v2115
  %3214 = vmatprep.subr.bf16.mxu0 %v2124
  %3215 = vmatpush1.bf16.msra.mxu0 %v2123
  %3216 = vmatprep.subr.bf16.mxu0 %v2132
  %3217 = vmatpush1.bf16.msra.mxu0 %v2131
  %3218 = vmatprep.subr.bf16.mxu0 %v2140
  %3219 = vmatpush1.bf16.msra.mxu0 %v2139
  %3220 = vmatprep.subr.bf16.mxu0 %v2148
  %3221 = vmatpush1.bf16.msra.mxu0 %v2147
  %3222 = vmatprep.subr.bf16.mxu0 %v2156
  %3223 = vmatpush1.bf16.msra.mxu0 %v2155
  %3224 = vmatprep.subr.bf16.mxu0 %v2164
  %3225 = vmatpush1.bf16.msra.mxu0 %v2163
  %3226 = vmatprep.mubr.bf16.mxu0 %v556
  %3227 = vmatmul.mubr.bf16.gmra.mrb[0].mxu0 %v555
  %v3228 = vpop.f32.mrb[0].mxu0
  %v3229 = vadd.f32 %v3186, %v3228
  %v3230 = vpop.f32.mrb[0].mxu0
  %v3231 = vadd.f32 %v3188, %v3230
  %v3232 = vpop.f32.mrb[0].mxu0
  %v3233 = vadd.f32 %v3190, %v3232
  %v3234 = vpop.f32.mrb[0].mxu0
  %v3235 = vadd.f32 %v3192, %v3234
  %3236 = vdwg.mxu0
  %3237 = vmatprep.subr.bf16.mxu0 %v2172
  %3238 = vmatpush1.bf16.msra.mxu0 %v2171
  %3239 = vmatprep.subr.bf16.mxu0 %v2180
  %3240 = vmatpush1.bf16.msra.mxu0 %v2179
  %3241 = vmatprep.subr.bf16.mxu0 %v2188
  %3242 = vmatpush1.bf16.msra.mxu0 %v2187
  %3243 = vmatprep.subr.bf16.mxu0 %v2196
  %3244 = vmatpush1.bf16.msra.mxu0 %v2195
  %3245 = vmatprep.subr.bf16.mxu0 %v2204
  %3246 = vmatpush1.bf16.msra.mxu0 %v2203
  %3247 = vmatprep.subr.bf16.mxu0 %v2212
  %3248 = vmatpush1.bf16.msra.mxu0 %v2211
  %3249 = vmatprep.subr.bf16.mxu0 %v2220
  %3250 = vmatpush1.bf16.msra.mxu0 %v2219
  %3251 = vmatprep.subr.bf16.mxu0 %v2228
  %3252 = vmatpush1.bf16.msra.mxu0 %v2227
  %3253 = vmatprep.subr.bf16.mxu0 %v2236
  %3254 = vmatpush1.bf16.msra.mxu0 %v2235
  %3255 = vmatprep.subr.bf16.mxu0 %v2244
  %3256 = vmatpush1.bf16.msra.mxu0 %v2243
  %3257 = vmatprep.subr.bf16.mxu0 %v2252
  %3258 = vmatpush1.bf16.msra.mxu0 %v2251
  %3259 = vmatprep.subr.bf16.mxu0 %v2260
  %3260 = vmatpush1.bf16.msra.mxu0 %v2259
  %3261 = vmatprep.subr.bf16.mxu0 %v2268
  %3262 = vmatpush1.bf16.msra.mxu0 %v2267
  %3263 = vmatprep.subr.bf16.mxu0 %v2276
  %3264 = vmatpush1.bf16.msra.mxu0 %v2275
  %3265 = vmatprep.subr.bf16.mxu0 %v2284
  %3266 = vmatpush1.bf16.msra.mxu0 %v2283
  %3267 = vmatprep.subr.bf16.mxu0 %v2292
  %3268 = vmatpush1.bf16.msra.mxu0 %v2291
  %3269 = vmatprep.mubr.bf16.mxu0 %v558
  %3270 = vmatmul.mubr.bf16.gmra.mrb[0].mxu0 %v557
  %v3271 = vpop.f32.mrb[0].mxu0
  %v3272 = vadd.f32 %v3229, %v3271
  %v3273 = vpop.f32.mrb[0].mxu0
  %v3274 = vadd.f32 %v3231, %v3273
  %v3275 = vpop.f32.mrb[0].mxu0
  %v3276 = vadd.f32 %v3233, %v3275
  %v3277 = vpop.f32.mrb[0].mxu0
  %v3278 = vadd.f32 %v3235, %v3277
  %3279 = vdwg.mxu0
  %3280 = vmatprep.subr.bf16.mxu0 %v2300
  %3281 = vmatpush1.bf16.msra.mxu0 %v2299
  %3282 = vmatprep.subr.bf16.mxu0 %v2308
  %3283 = vmatpush1.bf16.msra.mxu0 %v2307
  %3284 = vmatprep.subr.bf16.mxu0 %v2316
  %3285 = vmatpush1.bf16.msra.mxu0 %v2315
  %3286 = vmatprep.subr.bf16.mxu0 %v2324
  %3287 = vmatpush1.bf16.msra.mxu0 %v2323
  %3288 = vmatprep.subr.bf16.mxu0 %v2332
  %3289 = vmatpush1.bf16.msra.mxu0 %v2331
  %3290 = vmatprep.subr.bf16.mxu0 %v2340
  %3291 = vmatpush1.bf16.msra.mxu0 %v2339
  %3292 = vmatprep.subr.bf16.mxu0 %v2348
  %3293 = vmatpush1.bf16.msra.mxu0 %v2347
  %3294 = vmatprep.subr.bf16.mxu0 %v2356
  %3295 = vmatpush1.bf16.msra.mxu0 %v2355
  %3296 = vmatprep.subr.bf16.mxu0 0
  %3297 = vmatpush1.bf16.msra.mxu0 0
  %3298 = vmatprep.subr.bf16.mxu0 0
  %3299 = vmatpush1.bf16.msra.mxu0 0
  %3300 = vmatprep.subr.bf16.mxu0 0
  %3301 = vmatpush1.bf16.msra.mxu0 0
  %3302 = vmatprep.subr.bf16.mxu0 0
  %3303 = vmatpush1.bf16.msra.mxu0 0
  %3304 = vmatprep.subr.bf16.mxu0 0
  %3305 = vmatpush1.bf16.msra.mxu0 0
  %3306 = vmatprep.subr.bf16.mxu0 0
  %3307 = vmatpush1.bf16.msra.mxu0 0
  %3308 = vmatprep.subr.bf16.mxu0 0
  %3309 = vmatpush1.bf16.msra.mxu0 0
  %3310 = vmatprep.subr.bf16.mxu0 0
  %3311 = vmatpush1.bf16.msra.mxu0 0
  %3312 = vmatprep.mubr.bf16.mxu0 0
  %3313 = vmatmul.mubr.bf16.gmra.mrb[0].mxu0 %v559
  %v3314 = vpop.f32.mrb[0].mxu0
  %v3315 = vadd.f32 %v3272, %v3314
  %v3316 = vpop.f32.mrb[0].mxu0
  %v3317 = vadd.f32 %v3274, %v3316
  %v3318 = vpop.f32.mrb[0].mxu0
  %v3319 = vadd.f32 %v3276, %v3318
  %v3320 = vpop.f32.mrb[0].mxu0
  %v3321 = vadd.f32 %v3278, %v3320
  %3322 = vdwg.mxu0
  %3323 = vmatprep.subr.bf16.mxu0 %v1918
  %3324 = vmatpush1.bf16.msra.mxu0 %v1917
  %3325 = vmatprep.subr.bf16.mxu0 %v1926
  %3326 = vmatpush1.bf16.msra.mxu0 %v1925
  %3327 = vmatprep.subr.bf16.mxu0 %v1934
  %3328 = vmatpush1.bf16.msra.mxu0 %v1933
  %3329 = vmatprep.subr.bf16.mxu0 %v1942
  %3330 = vmatpush1.bf16.msra.mxu0 %v1941
  %3331 = vmatprep.subr.bf16.mxu0 %v1950
  %3332 = vmatpush1.bf16.msra.mxu0 %v1949
  %3333 = vmatprep.subr.bf16.mxu0 %v1958
  %3334 = vmatpush1.bf16.msra.mxu0 %v1957
  %3335 = vmatprep.subr.bf16.mxu0 %v1966
  %3336 = vmatpush1.bf16.msra.mxu0 %v1965
  %3337 = vmatprep.subr.bf16.mxu0 %v1974
  %3338 = vmatpush1.bf16.msra.mxu0 %v1973
  %3339 = vmatprep.subr.bf16.mxu0 %v1982
  %3340 = vmatpush1.bf16.msra.mxu0 %v1981
  %3341 = vmatprep.subr.bf16.mxu0 %v1990
  %3342 = vmatpush1.bf16.msra.mxu0 %v1989
  %3343 = vmatprep.subr.bf16.mxu0 %v1998
  %3344 = vmatpush1.bf16.msra.mxu0 %v1997
  %3345 = vmatprep.subr.bf16.mxu0 %v2006
  %3346 = vmatpush1.bf16.msra.mxu0 %v2005
  %3347 = vmatprep.subr.bf16.mxu0 %v2014
  %3348 = vmatpush1.bf16.msra.mxu0 %v2013
  %3349 = vmatprep.subr.bf16.mxu0 %v2022
  %3350 = vmatpush1.bf16.msra.mxu0 %v2021
  %3351 = vmatprep.subr.bf16.mxu0 %v2030
  %3352 = vmatpush1.bf16.msra.mxu0 %v2029
  %3353 = vmatprep.subr.bf16.mxu0 %v2038
  %3354 = vmatpush1.bf16.msra.mxu0 %v2037
  %3355 = vmatprep.mubr.bf16.mxu0 %v554
  %3356 = vmatmul.mubr.bf16.gmra.mrb[0].mxu0 %v553
  %v3357 = vpop.f32.mrb[0].mxu0
  %v3358 = vadd.f32 %v518, %v3357
  %v3359 = vpop.f32.mrb[0].mxu0
  %v3360 = vadd.f32 %v522, %v3359
  %v3361 = vpop.f32.mrb[0].mxu0
  %v3362 = vadd.f32 %v518, %v3361
  %v3363 = vpop.f32.mrb[0].mxu0
  %v3364 = vadd.f32 %v522, %v3363
  %3365 = vdwg.mxu0
  %3366 = vmatprep.subr.bf16.mxu0 %v2046
  %3367 = vmatpush1.bf16.msra.mxu0 %v2045
  %3368 = vmatprep.subr.bf16.mxu0 %v2054
  %3369 = vmatpush1.bf16.msra.mxu0 %v2053
  %3370 = vmatprep.subr.bf16.mxu0 %v2062
  %3371 = vmatpush1.bf16.msra.mxu0 %v2061
  %3372 = vmatprep.subr.bf16.mxu0 %v2070
  %3373 = vmatpush1.bf16.msra.mxu0 %v2069
  %3374 = vmatprep.subr.bf16.mxu0 %v2078
  %3375 = vmatpush1.bf16.msra.mxu0 %v2077
  %3376 = vmatprep.subr.bf16.mxu0 %v2086
  %3377 = vmatpush1.bf16.msra.mxu0 %v2085
  %3378 = vmatprep.subr.bf16.mxu0 %v2094
  %3379 = vmatpush1.bf16.msra.mxu0 %v2093
  %3380 = vmatprep.subr.bf16.mxu0 %v2102
  %3381 = vmatpush1.bf16.msra.mxu0 %v2101
  %3382 = vmatprep.subr.bf16.mxu0 %v2110
  %3383 = vmatpush1.bf16.msra.mxu0 %v2109
  %3384 = vmatprep.subr.bf16.mxu0 %v2118
  %3385 = vmatpush1.bf16.msra.mxu0 %v2117
  %3386 = vmatprep.subr.bf16.mxu0 %v2126
  %3387 = vmatpush1.bf16.msra.mxu0 %v2125
  %3388 = vmatprep.subr.bf16.mxu0 %v2134
  %3389 = vmatpush1.bf16.msra.mxu0 %v2133
  %3390 = vmatprep.subr.bf16.mxu0 %v2142
  %3391 = vmatpush1.bf16.msra.mxu0 %v2141
  %3392 = vmatprep.subr.bf16.mxu0 %v2150
  %3393 = vmatpush1.bf16.msra.mxu0 %v2149
  %3394 = vmatprep.subr.bf16.mxu0 %v2158
  %3395 = vmatpush1.bf16.msra.mxu0 %v2157
  %3396 = vmatprep.subr.bf16.mxu0 %v2166
  %3397 = vmatpush1.bf16.msra.mxu0 %v2165
  %3398 = vmatprep.mubr.bf16.mxu0 %v556
  %3399 = vmatmul.mubr.bf16.gmra.mrb[0].mxu0 %v555
  %v3400 = vpop.f32.mrb[0].mxu0
  %v3401 = vadd.f32 %v3358, %v3400
  %v3402 = vpop.f32.mrb[0].mxu0
  %v3403 = vadd.f32 %v3360, %v3402
  %v3404 = vpop.f32.mrb[0].mxu0
  %v3405 = vadd.f32 %v3362, %v3404
  %v3406 = vpop.f32.mrb[0].mxu0
  %v3407 = vadd.f32 %v3364, %v3406
  %3408 = vdwg.mxu0
  %3409 = vmatprep.subr.bf16.mxu0 %v2174
  %3410 = vmatpush1.bf16.msra.mxu0 %v2173
  %3411 = vmatprep.subr.bf16.mxu0 %v2182
  %3412 = vmatpush1.bf16.msra.mxu0 %v2181
  %3413 = vmatprep.subr.bf16.mxu0 %v2190
  %3414 = vmatpush1.bf16.msra.mxu0 %v2189
  %3415 = vmatprep.subr.bf16.mxu0 %v2198
  %3416 = vmatpush1.bf16.msra.mxu0 %v2197
  %3417 = vmatprep.subr.bf16.mxu0 %v2206
  %3418 = vmatpush1.bf16.msra.mxu0 %v2205
  %3419 = vmatprep.subr.bf16.mxu0 %v2214
  %3420 = vmatpush1.bf16.msra.mxu0 %v2213
  %3421 = vmatprep.subr.bf16.mxu0 %v2222
  %3422 = vmatpush1.bf16.msra.mxu0 %v2221
  %3423 = vmatprep.subr.bf16.mxu0 %v2230
  %3424 = vmatpush1.bf16.msra.mxu0 %v2229
  %3425 = vmatprep.subr.bf16.mxu0 %v2238
  %3426 = vmatpush1.bf16.msra.mxu0 %v2237
  %3427 = vmatprep.subr.bf16.mxu0 %v2246
  %3428 = vmatpush1.bf16.msra.mxu0 %v2245
  %3429 = vmatprep.subr.bf16.mxu0 %v2254
  %3430 = vmatpush1.bf16.msra.mxu0 %v2253
  %3431 = vmatprep.subr.bf16.mxu0 %v2262
  %3432 = vmatpush1.bf16.msra.mxu0 %v2261
  %3433 = vmatprep.subr.bf16.mxu0 %v2270
  %3434 = vmatpush1.bf16.msra.mxu0 %v2269
  %3435 = vmatprep.subr.bf16.mxu0 %v2278
  %3436 = vmatpush1.bf16.msra.mxu0 %v2277
  %3437 = vmatprep.subr.bf16.mxu0 %v2286
  %3438 = vmatpush1.bf16.msra.mxu0 %v2285
  %3439 = vmatprep.subr.bf16.mxu0 %v2294
  %3440 = vmatpush1.bf16.msra.mxu0 %v2293
  %3441 = vmatprep.mubr.bf16.mxu0 %v558
  %3442 = vmatmul.mubr.bf16.gmra.mrb[0].mxu0 %v557
  %v3443 = vpop.f32.mrb[0].mxu0
  %v3444 = vadd.f32 %v3401, %v3443
  %v3445 = vpop.f32.mrb[0].mxu0
  %v3446 = vadd.f32 %v3403, %v3445
  %v3447 = vpop.f32.mrb[0].mxu0
  %v3448 = vadd.f32 %v3405, %v3447
  %v3449 = vpop.f32.mrb[0].mxu0
  %v3450 = vadd.f32 %v3407, %v3449
  %3451 = vdwg.mxu0
  %3452 = vmatprep.subr.bf16.mxu0 %v2302
  %3453 = vmatpush1.bf16.msra.mxu0 %v2301
  %3454 = vmatprep.subr.bf16.mxu0 %v2310
  %3455 = vmatpush1.bf16.msra.mxu0 %v2309
  %3456 = vmatprep.subr.bf16.mxu0 %v2318
  %3457 = vmatpush1.bf16.msra.mxu0 %v2317
  %3458 = vmatprep.subr.bf16.mxu0 %v2326
  %3459 = vmatpush1.bf16.msra.mxu0 %v2325
  %3460 = vmatprep.subr.bf16.mxu0 %v2334
  %3461 = vmatpush1.bf16.msra.mxu0 %v2333
  %3462 = vmatprep.subr.bf16.mxu0 %v2342
  %3463 = vmatpush1.bf16.msra.mxu0 %v2341
  %3464 = vmatprep.subr.bf16.mxu0 %v2350
  %3465 = vmatpush1.bf16.msra.mxu0 %v2349
  %3466 = vmatprep.subr.bf16.mxu0 %v2358
  %3467 = vmatpush1.bf16.msra.mxu0 %v2357
  %3468 = vmatprep.subr.bf16.mxu0 0
  %3469 = vmatpush1.bf16.msra.mxu0 0
  %3470 = vmatprep.subr.bf16.mxu0 0
  %3471 = vmatpush1.bf16.msra.mxu0 0
  %3472 = vmatprep.subr.bf16.mxu0 0
  %3473 = vmatpush1.bf16.msra.mxu0 0
  %3474 = vmatprep.subr.bf16.mxu0 0
  %3475 = vmatpush1.bf16.msra.mxu0 0
  %3476 = vmatprep.subr.bf16.mxu0 0
  %3477 = vmatpush1.bf16.msra.mxu0 0
  %3478 = vmatprep.subr.bf16.mxu0 0
  %3479 = vmatpush1.bf16.msra.mxu0 0
  %3480 = vmatprep.subr.bf16.mxu0 0
  %3481 = vmatpush1.bf16.msra.mxu0 0
  %3482 = vmatprep.subr.bf16.mxu0 0
  %3483 = vmatpush1.bf16.msra.mxu0 0
  %3484 = vmatprep.mubr.bf16.mxu0 0
  %3485 = vmatmul.mubr.bf16.gmra.mrb[0].mxu0 %v559
  %v3486 = vpop.f32.mrb[0].mxu0
  %v3487 = vadd.f32 %v3444, %v3486
  %v3488 = vpop.f32.mrb[0].mxu0
  %v3489 = vadd.f32 %v3446, %v3488
  %v3490 = vpop.f32.mrb[0].mxu0
  %v3491 = vadd.f32 %v3448, %v3490
  %v3492 = vpop.f32.mrb[0].mxu0
  %v3493 = vadd.f32 %v3450, %v3492
  %3494 = vdwg.mxu0
  %v3495 = vmax.f32 %v2971, 0.0
  %v3496 = vmax.f32 %v2973, 0.0
  %v3497 = vmax.f32 %v3143, 0.0
  %v3498 = vmax.f32 %v3145, 0.0
  %v3499 = vmax.f32 %v3315, 0.0
  %v3500 = vmax.f32 %v3317, 0.0
  %v3501 = vmax.f32 %v3487, 0.0
  %v3502 = vmax.f32 %v3489, 0.0
  %v3503 = vmax.f32 %v2975, 0.0
  %v3504 = vmax.f32 %v2977, 0.0
  %v3505 = vmax.f32 %v3147, 0.0
  %v3506 = vmax.f32 %v3149, 0.0
  %v3507 = vmax.f32 %v3319, 0.0
  %v3508 = vmax.f32 %v3321, 0.0
  %v3509 = vmax.f32 %v3491, 0.0
  %v3510 = vmax.f32 %v3493, 0.0
  %v3511 = vpack.c.bf16 %v3503, %v3495
  %v3512 = vpack.c.bf16 %v3504, %v3496
  %v3513 = vpack.c.bf16 %v3505, %v3497
  %v3514 = vpack.c.bf16 %v3506, %v3498
  %v3515 = vpack.c.bf16 %v3507, %v3499
  %v3516 = vpack.c.bf16 %v3508, %v3500
  %v3517 = vpack.c.bf16 %v3509, %v3501
  %v3518 = vpack.c.bf16 %v3510, %v3502
  %v3519 = vld [vmem:[%s3] sm:$0xff]
  %v3520 = vld [vmem:[%s3 + $0x8] sm:$0xff]
  %v3521 = vld [vmem:[%s3 + $0x10] sm:$0xff]
  %v3522 = vld [vmem:[%s3 + $0x18] sm:$0xff]
  %v3523 = vld [vmem:[%s3 + $0x20] sm:$0xff]
  %v3524 = vld [vmem:[%s3 + $0x28] sm:$0xff]
  %v3525 = vld [vmem:[%s3 + $0x30] sm:$0xff]
  %v3526 = vld [vmem:[%s3 + $0x38] sm:$0xff]
  %v3527 = vld [vmem:[%s3 + $0x40] sm:$0xff]
  %v3528 = vld [vmem:[%s3 + $0x48] sm:$0xff]
  %v3529 = vld [vmem:[%s3 + $0x50] sm:$0xff]
  %v3530 = vld [vmem:[%s3 + $0x58] sm:$0xff]
  %v3531 = vld [vmem:[%s3 + $0x60] sm:$0xff]
  %v3532 = vld [vmem:[%s3 + $0x68] sm:$0xff]
  %v3533 = vld [vmem:[%s3 + $0x70] sm:$0xff]
  %v3534 = vld [vmem:[%s3 + $0x78] sm:$0xff]
  %v3535 = vld [vmem:[%s3 + $0x80] sm:$0xff]
  %v3536 = vld [vmem:[%s3 + $0x88] sm:$0xff]
  %v3537 = vld [vmem:[%s3 + $0x90] sm:$0xff]
  %v3538 = vld [vmem:[%s3 + $0x98] sm:$0xff]
  %v3539 = vld [vmem:[%s3 + $0xa0] sm:$0xff]
  %v3540 = vld [vmem:[%s3 + $0xa8] sm:$0xff]
  %v3541 = vld [vmem:[%s3 + $0xb0] sm:$0xff]
  %v3542 = vld [vmem:[%s3 + $0xb8] sm:$0xff]
  %v3543 = vld [vmem:[%s3 + $0xc0] sm:$0xff]
  %v3544 = vld [vmem:[%s3 + $0xc8] sm:$0xff]
  %v3545 = vld [vmem:[%s3 + $0xd0] sm:$0xff]
  %v3546 = vld [vmem:[%s3 + $0xd8] sm:$0xff]
  %v3547 = vld [vmem:[%s3 + $0xe0] sm:$0xff]
  %v3548 = vld [vmem:[%s3 + $0xe8] sm:$0xff]
  %v3549 = vld [vmem:[%s3 + $0xf0] sm:$0xff]
  %v3550 = vld [vmem:[%s3 + $0xf8] sm:$0xff]
  %v3551 = vld [vmem:[%s3 + $0x100] sm:$0xff]
  %v3552 = vld [vmem:[%s3 + $0x108] sm:$0xff]
  %v3553 = vld [vmem:[%s3 + $0x110] sm:$0xff]
  %v3554 = vld [vmem:[%s3 + $0x118] sm:$0xff]
  %v3555 = vld [vmem:[%s3 + $0x120] sm:$0xff]
  %v3556 = vld [vmem:[%s3 + $0x128] sm:$0xff]
  %v3557 = vld [vmem:[%s3 + $0x130] sm:$0xff]
  %v3558 = vld [vmem:[%s3 + $0x138] sm:$0xff]
  %v3559 = vld [vmem:[%s3 + $0x140] sm:$0xff]
  %v3560 = vld [vmem:[%s3 + $0x148] sm:$0xff]
  %v3561 = vld [vmem:[%s3 + $0x150] sm:$0xff]
  %v3562 = vld [vmem:[%s3 + $0x158] sm:$0xff]
  %v3563 = vld [vmem:[%s3 + $0x160] sm:$0xff]
  %v3564 = vld [vmem:[%s3 + $0x168] sm:$0xff]
  %v3565 = vld [vmem:[%s3 + $0x170] sm:$0xff]
  %v3566 = vld [vmem:[%s3 + $0x178] sm:$0xff]
  %v3567 = vld [vmem:[%s3 + $0x180] sm:$0xff]
  %v3568 = vld [vmem:[%s3 + $0x188] sm:$0xff]
  %v3569 = vld [vmem:[%s3 + $0x190] sm:$0xff]
  %v3570 = vld [vmem:[%s3 + $0x198] sm:$0xff]
  %v3571 = vld [vmem:[%s3 + $0x1a0] sm:$0xff]
  %v3572 = vld [vmem:[%s3 + $0x1a8] sm:$0xff]
  %v3573 = vld [vmem:[%s3 + $0x1b0] sm:$0xff]
  %v3574 = vld [vmem:[%s3 + $0x1b8] sm:$0xff]
  %v3575 = vld [vmem:[%s3 + $0x1c0] sm:$0xff]
  %v3576 = vld [vmem:[%s3 + $0x1c8] sm:$0xff]
  %v3577 = vld [vmem:[%s3 + $0x1d0] sm:$0xff]
  %v3578 = vld [vmem:[%s3 + $0x1d8] sm:$0xff]
  %v3579 = vld [vmem:[%s3 + $0x1e0] sm:$0xff]
  %v3580 = vld [vmem:[%s3 + $0x1e8] sm:$0xff]
  %v3581 = vld [vmem:[%s3 + $0x1f0] sm:$0xff]
  %v3582 = vld [vmem:[%s3 + $0x1f8] sm:$0xff]
  %v3583 = vld [vmem:[%s3 + $0x200] sm:$0xff]
  %v3584 = vld [vmem:[%s3 + $0x208] sm:$0xff]
  %v3585 = vld [vmem:[%s3 + $0x210] sm:$0xff]
  %v3586 = vld [vmem:[%s3 + $0x218] sm:$0xff]
  %v3587 = vld [vmem:[%s3 + $0x220] sm:$0xff]
  %v3588 = vld [vmem:[%s3 + $0x228] sm:$0xff]
  %v3589 = vld [vmem:[%s3 + $0x230] sm:$0xff]
  %v3590 = vld [vmem:[%s3 + $0x238] sm:$0xff]
  %v3591 = vld [vmem:[%s3 + $0x240] sm:$0xff]
  %v3592 = vld [vmem:[%s3 + $0x248] sm:$0xff]
  %v3593 = vld [vmem:[%s3 + $0x250] sm:$0xff]
  %v3594 = vld [vmem:[%s3 + $0x258] sm:$0xff]
  %v3595 = vld [vmem:[%s3 + $0x260] sm:$0xff]
  %v3596 = vld [vmem:[%s3 + $0x268] sm:$0xff]
  %v3597 = vld [vmem:[%s3 + $0x270] sm:$0xff]
  %v3598 = vld [vmem:[%s3 + $0x278] sm:$0xff]
  %v3599 = vld [vmem:[%s3 + $0x280] sm:$0xff]
  %v3600 = vld [vmem:[%s3 + $0x288] sm:$0xff]
  %v3601 = vld [vmem:[%s3 + $0x290] sm:$0xff]
  %v3602 = vld [vmem:[%s3 + $0x298] sm:$0xff]
  %v3603 = vld [vmem:[%s3 + $0x2a0] sm:$0xff]
  %v3604 = vld [vmem:[%s3 + $0x2a8] sm:$0xff]
  %v3605 = vld [vmem:[%s3 + $0x2b0] sm:$0xff]
  %v3606 = vld [vmem:[%s3 + $0x2b8] sm:$0xff]
  %v3607 = vld [vmem:[%s3 + $0x2c0] sm:$0xff]
  %v3608 = vld [vmem:[%s3 + $0x2c8] sm:$0xff]
  %v3609 = vld [vmem:[%s3 + $0x2d0] sm:$0xff]
  %v3610 = vld [vmem:[%s3 + $0x2d8] sm:$0xff]
  %v3611 = vld [vmem:[%s3 + $0x2e0] sm:$0xff]
  %v3612 = vld [vmem:[%s3 + $0x2e8] sm:$0xff]
  %v3613 = vld [vmem:[%s3 + $0x2f0] sm:$0xff]
  %v3614 = vld [vmem:[%s3 + $0x2f8] sm:$0xff]
  %v3615 = vld [vmem:[%s3 + $0x300] sm:$0xff]
  %v3616 = vld [vmem:[%s3 + $0x308] sm:$0xff]
  %v3617 = vld [vmem:[%s3 + $0x310] sm:$0xff]
  %v3618 = vld [vmem:[%s3 + $0x318] sm:$0xff]
  %v3619 = vld [vmem:[%s3 + $0x320] sm:$0xff]
  %v3620 = vld [vmem:[%s3 + $0x328] sm:$0xff]
  %v3621 = vld [vmem:[%s3 + $0x330] sm:$0xff]
  %v3622 = vld [vmem:[%s3 + $0x338] sm:$0xff]
  %v3623 = vld [vmem:[%s3 + $0x340] sm:$0xff]
  %v3624 = vld [vmem:[%s3 + $0x348] sm:$0xff]
  %v3625 = vld [vmem:[%s3 + $0x350] sm:$0xff]
  %v3626 = vld [vmem:[%s3 + $0x358] sm:$0xff]
  %v3627 = vld [vmem:[%s3 + $0x360] sm:$0xff]
  %v3628 = vld [vmem:[%s3 + $0x368] sm:$0xff]
  %v3629 = vld [vmem:[%s3 + $0x370] sm:$0xff]
  %v3630 = vld [vmem:[%s3 + $0x378] sm:$0xff]
  %v3631 = vld [vmem:[%s3 + $0x380] sm:$0xff]
  %v3632 = vld [vmem:[%s3 + $0x388] sm:$0xff]
  %v3633 = vld [vmem:[%s3 + $0x390] sm:$0xff]
  %v3634 = vld [vmem:[%s3 + $0x398] sm:$0xff]
  %v3635 = vld [vmem:[%s3 + $0x3a0] sm:$0xff]
  %v3636 = vld [vmem:[%s3 + $0x3a8] sm:$0xff]
  %v3637 = vld [vmem:[%s3 + $0x3b0] sm:$0xff]
  %v3638 = vld [vmem:[%s3 + $0x3b8] sm:$0xff]
  %v3639 = vld [vmem:[%s3 + $0x3c0] sm:$0xff]
  %v3640 = vld [vmem:[%s3 + $0x3c8] sm:$0xff]
  %v3641 = vld [vmem:[%s3 + $0x3d0] sm:$0xff]
  %v3642 = vld [vmem:[%s3 + $0x3d8] sm:$0xff]
  %v3643 = vld [vmem:[%s3 + $0x3e0] sm:$0xff]
  %v3644 = vld [vmem:[%s3 + $0x3e8] sm:$0xff]
  %v3645 = vld [vmem:[%s3 + $0x3f0] sm:$0xff]
  %v3646 = vld [vmem:[%s3 + $0x3f8] sm:$0xff]
  %v3647 = vld [vmem:[%s4] sm:$0x3]
  %v3649 = vlaneseq
  %v3650 = vshrl.u32 %v3649, 7
  %v3651 = vsub.s32 0, %v3650
  %v3652 = vrot.slane %v3647, %v3651
  %v3653 = vlaneseq
  %v3654 = vshrl.u32 %v3653, 7
  %v3655 = vsub.s32 1, %v3654
  %v3656 = vrot.slane %v3647, %v3655
  %v3787 = vunpack.c.l.b16 %v3519
  %v3788 = vunpack.c.h.b16 %v3519
  %v3789 = vunpack.c.l.b16 %v3520
  %v3790 = vunpack.c.h.b16 %v3520
  %v3791 = vunpack.c.l.b16 %v3521
  %v3792 = vunpack.c.h.b16 %v3521
  %v3793 = vunpack.c.l.b16 %v3522
  %v3794 = vunpack.c.h.b16 %v3522
  %v3795 = vunpack.c.l.b16 %v3523
  %v3796 = vunpack.c.h.b16 %v3523
  %v3797 = vunpack.c.l.b16 %v3524
  %v3798 = vunpack.c.h.b16 %v3524
  %v3799 = vunpack.c.l.b16 %v3525
  %v3800 = vunpack.c.h.b16 %v3525
  %v3801 = vunpack.c.l.b16 %v3526
  %v3802 = vunpack.c.h.b16 %v3526
  %v3803 = vunpack.c.l.b16 %v3527
  %v3804 = vunpack.c.h.b16 %v3527
  %v3805 = vunpack.c.l.b16 %v3528
  %v3806 = vunpack.c.h.b16 %v3528
  %v3807 = vunpack.c.l.b16 %v3529
  %v3808 = vunpack.c.h.b16 %v3529
  %v3809 = vunpack.c.l.b16 %v3530
  %v3810 = vunpack.c.h.b16 %v3530
  %v3811 = vunpack.c.l.b16 %v3531
  %v3812 = vunpack.c.h.b16 %v3531
  %v3813 = vunpack.c.l.b16 %v3532
  %v3814 = vunpack.c.h.b16 %v3532
  %v3815 = vunpack.c.l.b16 %v3533
  %v3816 = vunpack.c.h.b16 %v3533
  %v3817 = vunpack.c.l.b16 %v3534
  %v3818 = vunpack.c.h.b16 %v3534
  %v3819 = vunpack.c.l.b16 %v3535
  %v3820 = vunpack.c.h.b16 %v3535
  %v3821 = vunpack.c.l.b16 %v3536
  %v3822 = vunpack.c.h.b16 %v3536
  %v3823 = vunpack.c.l.b16 %v3537
  %v3824 = vunpack.c.h.b16 %v3537
  %v3825 = vunpack.c.l.b16 %v3538
  %v3826 = vunpack.c.h.b16 %v3538
  %v3827 = vunpack.c.l.b16 %v3539
  %v3828 = vunpack.c.h.b16 %v3539
  %v3829 = vunpack.c.l.b16 %v3540
  %v3830 = vunpack.c.h.b16 %v3540
  %v3831 = vunpack.c.l.b16 %v3541
  %v3832 = vunpack.c.h.b16 %v3541
  %v3833 = vunpack.c.l.b16 %v3542
  %v3834 = vunpack.c.h.b16 %v3542
  %v3835 = vunpack.c.l.b16 %v3543
  %v3836 = vunpack.c.h.b16 %v3543
  %v3837 = vunpack.c.l.b16 %v3544
  %v3838 = vunpack.c.h.b16 %v3544
  %v3839 = vunpack.c.l.b16 %v3545
  %v3840 = vunpack.c.h.b16 %v3545
  %v3841 = vunpack.c.l.b16 %v3546
  %v3842 = vunpack.c.h.b16 %v3546
  %v3843 = vunpack.c.l.b16 %v3547
  %v3844 = vunpack.c.h.b16 %v3547
  %v3845 = vunpack.c.l.b16 %v3548
  %v3846 = vunpack.c.h.b16 %v3548
  %v3847 = vunpack.c.l.b16 %v3549
  %v3848 = vunpack.c.h.b16 %v3549
  %v3849 = vunpack.c.l.b16 %v3550
  %v3850 = vunpack.c.h.b16 %v3550
  %v3851 = vunpack.c.l.b16 %v3551
  %v3852 = vunpack.c.h.b16 %v3551
  %v3853 = vunpack.c.l.b16 %v3552
  %v3854 = vunpack.c.h.b16 %v3552
  %v3855 = vunpack.c.l.b16 %v3553
  %v3856 = vunpack.c.h.b16 %v3553
  %v3857 = vunpack.c.l.b16 %v3554
  %v3858 = vunpack.c.h.b16 %v3554
  %v3859 = vunpack.c.l.b16 %v3555
  %v3860 = vunpack.c.h.b16 %v3555
  %v3861 = vunpack.c.l.b16 %v3556
  %v3862 = vunpack.c.h.b16 %v3556
  %v3863 = vunpack.c.l.b16 %v3557
  %v3864 = vunpack.c.h.b16 %v3557
  %v3865 = vunpack.c.l.b16 %v3558
  %v3866 = vunpack.c.h.b16 %v3558
  %v3867 = vunpack.c.l.b16 %v3559
  %v3868 = vunpack.c.h.b16 %v3559
  %v3869 = vunpack.c.l.b16 %v3560
  %v3870 = vunpack.c.h.b16 %v3560
  %v3871 = vunpack.c.l.b16 %v3561
  %v3872 = vunpack.c.h.b16 %v3561
  %v3873 = vunpack.c.l.b16 %v3562
  %v3874 = vunpack.c.h.b16 %v3562
  %v3875 = vunpack.c.l.b16 %v3563
  %v3876 = vunpack.c.h.b16 %v3563
  %v3877 = vunpack.c.l.b16 %v3564
  %v3878 = vunpack.c.h.b16 %v3564
  %v3879 = vunpack.c.l.b16 %v3565
  %v3880 = vunpack.c.h.b16 %v3565
  %v3881 = vunpack.c.l.b16 %v3566
  %v3882 = vunpack.c.h.b16 %v3566
  %v3883 = vunpack.c.l.b16 %v3567
  %v3884 = vunpack.c.h.b16 %v3567
  %v3885 = vunpack.c.l.b16 %v3568
  %v3886 = vunpack.c.h.b16 %v3568
  %v3887 = vunpack.c.l.b16 %v3569
  %v3888 = vunpack.c.h.b16 %v3569
  %v3889 = vunpack.c.l.b16 %v3570
  %v3890 = vunpack.c.h.b16 %v3570
  %v3891 = vunpack.c.l.b16 %v3571
  %v3892 = vunpack.c.h.b16 %v3571
  %v3893 = vunpack.c.l.b16 %v3572
  %v3894 = vunpack.c.h.b16 %v3572
  %v3895 = vunpack.c.l.b16 %v3573
  %v3896 = vunpack.c.h.b16 %v3573
  %v3897 = vunpack.c.l.b16 %v3574
  %v3898 = vunpack.c.h.b16 %v3574
  %v3899 = vunpack.c.l.b16 %v3575
  %v3900 = vunpack.c.h.b16 %v3575
  %v3901 = vunpack.c.l.b16 %v3576
  %v3902 = vunpack.c.h.b16 %v3576
  %v3903 = vunpack.c.l.b16 %v3577
  %v3904 = vunpack.c.h.b16 %v3577
  %v3905 = vunpack.c.l.b16 %v3578
  %v3906 = vunpack.c.h.b16 %v3578
  %v3907 = vunpack.c.l.b16 %v3579
  %v3908 = vunpack.c.h.b16 %v3579
  %v3909 = vunpack.c.l.b16 %v3580
  %v3910 = vunpack.c.h.b16 %v3580
  %v3911 = vunpack.c.l.b16 %v3581
  %v3912 = vunpack.c.h.b16 %v3581
  %v3913 = vunpack.c.l.b16 %v3582
  %v3914 = vunpack.c.h.b16 %v3582
  %v3915 = vunpack.c.l.b16 %v3583
  %v3916 = vunpack.c.h.b16 %v3583
  %v3917 = vunpack.c.l.b16 %v3584
  %v3918 = vunpack.c.h.b16 %v3584
  %v3919 = vunpack.c.l.b16 %v3585
  %v3920 = vunpack.c.h.b16 %v3585
  %v3921 = vunpack.c.l.b16 %v3586
  %v3922 = vunpack.c.h.b16 %v3586
  %v3923 = vunpack.c.l.b16 %v3587
  %v3924 = vunpack.c.h.b16 %v3587
  %v3925 = vunpack.c.l.b16 %v3588
  %v3926 = vunpack.c.h.b16 %v3588
  %v3927 = vunpack.c.l.b16 %v3589
  %v3928 = vunpack.c.h.b16 %v3589
  %v3929 = vunpack.c.l.b16 %v3590
  %v3930 = vunpack.c.h.b16 %v3590
  %v3931 = vunpack.c.l.b16 %v3591
  %v3932 = vunpack.c.h.b16 %v3591
  %v3933 = vunpack.c.l.b16 %v3592
  %v3934 = vunpack.c.h.b16 %v3592
  %v3935 = vunpack.c.l.b16 %v3593
  %v3936 = vunpack.c.h.b16 %v3593
  %v3937 = vunpack.c.l.b16 %v3594
  %v3938 = vunpack.c.h.b16 %v3594
  %v3939 = vunpack.c.l.b16 %v3595
  %v3940 = vunpack.c.h.b16 %v3595
  %v3941 = vunpack.c.l.b16 %v3596
  %v3942 = vunpack.c.h.b16 %v3596
  %v3943 = vunpack.c.l.b16 %v3597
  %v3944 = vunpack.c.h.b16 %v3597
  %v3945 = vunpack.c.l.b16 %v3598
  %v3946 = vunpack.c.h.b16 %v3598
  %v3947 = vunpack.c.l.b16 %v3599
  %v3948 = vunpack.c.h.b16 %v3599
  %v3949 = vunpack.c.l.b16 %v3600
  %v3950 = vunpack.c.h.b16 %v3600
  %v3951 = vunpack.c.l.b16 %v3601
  %v3952 = vunpack.c.h.b16 %v3601
  %v3953 = vunpack.c.l.b16 %v3602
  %v3954 = vunpack.c.h.b16 %v3602
  %v3955 = vunpack.c.l.b16 %v3603
  %v3956 = vunpack.c.h.b16 %v3603
  %v3957 = vunpack.c.l.b16 %v3604
  %v3958 = vunpack.c.h.b16 %v3604
  %v3959 = vunpack.c.l.b16 %v3605
  %v3960 = vunpack.c.h.b16 %v3605
  %v3961 = vunpack.c.l.b16 %v3606
  %v3962 = vunpack.c.h.b16 %v3606
  %v3963 = vunpack.c.l.b16 %v3607
  %v3964 = vunpack.c.h.b16 %v3607
  %v3965 = vunpack.c.l.b16 %v3608
  %v3966 = vunpack.c.h.b16 %v3608
  %v3967 = vunpack.c.l.b16 %v3609
  %v3968 = vunpack.c.h.b16 %v3609
  %v3969 = vunpack.c.l.b16 %v3610
  %v3970 = vunpack.c.h.b16 %v3610
  %v3971 = vunpack.c.l.b16 %v3611
  %v3972 = vunpack.c.h.b16 %v3611
  %v3973 = vunpack.c.l.b16 %v3612
  %v3974 = vunpack.c.h.b16 %v3612
  %v3975 = vunpack.c.l.b16 %v3613
  %v3976 = vunpack.c.h.b16 %v3613
  %v3977 = vunpack.c.l.b16 %v3614
  %v3978 = vunpack.c.h.b16 %v3614
  %v3979 = vunpack.c.l.b16 %v3615
  %v3980 = vunpack.c.h.b16 %v3615
  %v3981 = vunpack.c.l.b16 %v3616
  %v3982 = vunpack.c.h.b16 %v3616
  %v3983 = vunpack.c.l.b16 %v3617
  %v3984 = vunpack.c.h.b16 %v3617
  %v3985 = vunpack.c.l.b16 %v3618
  %v3986 = vunpack.c.h.b16 %v3618
  %v3987 = vunpack.c.l.b16 %v3619
  %v3988 = vunpack.c.h.b16 %v3619
  %v3989 = vunpack.c.l.b16 %v3620
  %v3990 = vunpack.c.h.b16 %v3620
  %v3991 = vunpack.c.l.b16 %v3621
  %v3992 = vunpack.c.h.b16 %v3621
  %v3993 = vunpack.c.l.b16 %v3622
  %v3994 = vunpack.c.h.b16 %v3622
  %v3995 = vunpack.c.l.b16 %v3623
  %v3996 = vunpack.c.h.b16 %v3623
  %v3997 = vunpack.c.l.b16 %v3624
  %v3998 = vunpack.c.h.b16 %v3624
  %v3999 = vunpack.c.l.b16 %v3625
  %v4000 = vunpack.c.h.b16 %v3625
  %v4001 = vunpack.c.l.b16 %v3626
  %v4002 = vunpack.c.h.b16 %v3626
  %v4003 = vunpack.c.l.b16 %v3627
  %v4004 = vunpack.c.h.b16 %v3627
  %v4005 = vunpack.c.l.b16 %v3628
  %v4006 = vunpack.c.h.b16 %v3628
  %v4007 = vunpack.c.l.b16 %v3629
  %v4008 = vunpack.c.h.b16 %v3629
  %v4009 = vunpack.c.l.b16 %v3630
  %v4010 = vunpack.c.h.b16 %v3630
  %v4011 = vunpack.c.l.b16 %v3631
  %v4012 = vunpack.c.h.b16 %v3631
  %v4013 = vunpack.c.l.b16 %v3632
  %v4014 = vunpack.c.h.b16 %v3632
  %v4015 = vunpack.c.l.b16 %v3633
  %v4016 = vunpack.c.h.b16 %v3633
  %v4017 = vunpack.c.l.b16 %v3634
  %v4018 = vunpack.c.h.b16 %v3634
  %v4019 = vunpack.c.l.b16 %v3635
  %v4020 = vunpack.c.h.b16 %v3635
  %v4021 = vunpack.c.l.b16 %v3636
  %v4022 = vunpack.c.h.b16 %v3636
  %v4023 = vunpack.c.l.b16 %v3637
  %v4024 = vunpack.c.h.b16 %v3637
  %v4025 = vunpack.c.l.b16 %v3638
  %v4026 = vunpack.c.h.b16 %v3638
  %v4027 = vunpack.c.l.b16 %v3639
  %v4028 = vunpack.c.h.b16 %v3639
  %v4029 = vunpack.c.l.b16 %v3640
  %v4030 = vunpack.c.h.b16 %v3640
  %v4031 = vunpack.c.l.b16 %v3641
  %v4032 = vunpack.c.h.b16 %v3641
  %v4033 = vunpack.c.l.b16 %v3642
  %v4034 = vunpack.c.h.b16 %v3642
  %v4035 = vunpack.c.l.b16 %v3643
  %v4036 = vunpack.c.h.b16 %v3643
  %v4037 = vunpack.c.l.b16 %v3644
  %v4038 = vunpack.c.h.b16 %v3644
  %v4039 = vunpack.c.l.b16 %v3645
  %v4040 = vunpack.c.h.b16 %v3645
  %v4041 = vunpack.c.l.b16 %v3646
  %v4042 = vunpack.c.h.b16 %v3646
  %v4043 = vpack.c.b16 %v3789, %v3787
  %v4044 = vpack.c.b16 %v3790, %v3788
  %v4045 = vpack.c.b16 %v3793, %v3791
  %v4046 = vpack.c.b16 %v3794, %v3792
  %v4047 = vpack.c.b16 %v3797, %v3795
  %v4048 = vpack.c.b16 %v3798, %v3796
  %v4049 = vpack.c.b16 %v3801, %v3799
  %v4050 = vpack.c.b16 %v3802, %v3800
  %v4051 = vpack.c.b16 %v3805, %v3803
  %v4052 = vpack.c.b16 %v3806, %v3804
  %v4053 = vpack.c.b16 %v3809, %v3807
  %v4054 = vpack.c.b16 %v3810, %v3808
  %v4055 = vpack.c.b16 %v3813, %v3811
  %v4056 = vpack.c.b16 %v3814, %v3812
  %v4057 = vpack.c.b16 %v3817, %v3815
  %v4058 = vpack.c.b16 %v3818, %v3816
  %v4059 = vpack.c.b16 %v3821, %v3819
  %v4060 = vpack.c.b16 %v3822, %v3820
  %v4061 = vpack.c.b16 %v3825, %v3823
  %v4062 = vpack.c.b16 %v3826, %v3824
  %v4063 = vpack.c.b16 %v3829, %v3827
  %v4064 = vpack.c.b16 %v3830, %v3828
  %v4065 = vpack.c.b16 %v3833, %v3831
  %v4066 = vpack.c.b16 %v3834, %v3832
  %v4067 = vpack.c.b16 %v3837, %v3835
  %v4068 = vpack.c.b16 %v3838, %v3836
  %v4069 = vpack.c.b16 %v3841, %v3839
  %v4070 = vpack.c.b16 %v3842, %v3840
  %v4071 = vpack.c.b16 %v3845, %v3843
  %v4072 = vpack.c.b16 %v3846, %v3844
  %v4073 = vpack.c.b16 %v3849, %v3847
  %v4074 = vpack.c.b16 %v3850, %v3848
  %v4075 = vpack.c.b16 %v3853, %v3851
  %v4076 = vpack.c.b16 %v3854, %v3852
  %v4077 = vpack.c.b16 %v3857, %v3855
  %v4078 = vpack.c.b16 %v3858, %v3856
  %v4079 = vpack.c.b16 %v3861, %v3859
  %v4080 = vpack.c.b16 %v3862, %v3860
  %v4081 = vpack.c.b16 %v3865, %v3863
  %v4082 = vpack.c.b16 %v3866, %v3864
  %v4083 = vpack.c.b16 %v3869, %v3867
  %v4084 = vpack.c.b16 %v3870, %v3868
  %v4085 = vpack.c.b16 %v3873, %v3871
  %v4086 = vpack.c.b16 %v3874, %v3872
  %v4087 = vpack.c.b16 %v3877, %v3875
  %v4088 = vpack.c.b16 %v3878, %v3876
  %v4089 = vpack.c.b16 %v3881, %v3879
  %v4090 = vpack.c.b16 %v3882, %v3880
  %v4091 = vpack.c.b16 %v3885, %v3883
  %v4092 = vpack.c.b16 %v3886, %v3884
  %v4093 = vpack.c.b16 %v3889, %v3887
  %v4094 = vpack.c.b16 %v3890, %v3888
  %v4095 = vpack.c.b16 %v3893, %v3891
  %v4096 = vpack.c.b16 %v3894, %v3892
  %v4097 = vpack.c.b16 %v3897, %v3895
  %v4098 = vpack.c.b16 %v3898, %v3896
  %v4099 = vpack.c.b16 %v3901, %v3899
  %v4100 = vpack.c.b16 %v3902, %v3900
  %v4101 = vpack.c.b16 %v3905, %v3903
  %v4102 = vpack.c.b16 %v3906, %v3904
  %v4103 = vpack.c.b16 %v3909, %v3907
  %v4104 = vpack.c.b16 %v3910, %v3908
  %v4105 = vpack.c.b16 %v3913, %v3911
  %v4106 = vpack.c.b16 %v3914, %v3912
  %v4107 = vpack.c.b16 %v3917, %v3915
  %v4108 = vpack.c.b16 %v3918, %v3916
  %v4109 = vpack.c.b16 %v3921, %v3919
  %v4110 = vpack.c.b16 %v3922, %v3920
  %v4111 = vpack.c.b16 %v3925, %v3923
  %v4112 = vpack.c.b16 %v3926, %v3924
  %v4113 = vpack.c.b16 %v3929, %v3927
  %v4114 = vpack.c.b16 %v3930, %v3928
  %v4115 = vpack.c.b16 %v3933, %v3931
  %v4116 = vpack.c.b16 %v3934, %v3932
  %v4117 = vpack.c.b16 %v3937, %v3935
  %v4118 = vpack.c.b16 %v3938, %v3936
  %v4119 = vpack.c.b16 %v3941, %v3939
  %v4120 = vpack.c.b16 %v3942, %v3940
  %v4121 = vpack.c.b16 %v3945, %v3943
  %v4122 = vpack.c.b16 %v3946, %v3944
  %v4123 = vpack.c.b16 %v3949, %v3947
  %v4124 = vpack.c.b16 %v3950, %v3948
  %v4125 = vpack.c.b16 %v3953, %v3951
  %v4126 = vpack.c.b16 %v3954, %v3952
  %v4127 = vpack.c.b16 %v3957, %v3955
  %v4128 = vpack.c.b16 %v3958, %v3956
  %v4129 = vpack.c.b16 %v3961, %v3959
  %v4130 = vpack.c.b16 %v3962, %v3960
  %v4131 = vpack.c.b16 %v3965, %v3963
  %v4132 = vpack.c.b16 %v3966, %v3964
  %v4133 = vpack.c.b16 %v3969, %v3967
  %v4134 = vpack.c.b16 %v3970, %v3968
  %v4135 = vpack.c.b16 %v3973, %v3971
  %v4136 = vpack.c.b16 %v3974, %v3972
  %v4137 = vpack.c.b16 %v3977, %v3975
  %v4138 = vpack.c.b16 %v3978, %v3976
  %v4139 = vpack.c.b16 %v3981, %v3979
  %v4140 = vpack.c.b16 %v3982, %v3980
  %v4141 = vpack.c.b16 %v3985, %v3983
  %v4142 = vpack.c.b16 %v3986, %v3984
  %v4143 = vpack.c.b16 %v3989, %v3987
  %v4144 = vpack.c.b16 %v3990, %v3988
  %v4145 = vpack.c.b16 %v3993, %v3991
  %v4146 = vpack.c.b16 %v3994, %v3992
  %v4147 = vpack.c.b16 %v3997, %v3995
  %v4148 = vpack.c.b16 %v3998, %v3996
  %v4149 = vpack.c.b16 %v4001, %v3999
  %v4150 = vpack.c.b16 %v4002, %v4000
  %v4151 = vpack.c.b16 %v4005, %v4003
  %v4152 = vpack.c.b16 %v4006, %v4004
  %v4153 = vpack.c.b16 %v4009, %v4007
  %v4154 = vpack.c.b16 %v4010, %v4008
  %v4155 = vpack.c.b16 %v4013, %v4011
  %v4156 = vpack.c.b16 %v4014, %v4012
  %v4157 = vpack.c.b16 %v4017, %v4015
  %v4158 = vpack.c.b16 %v4018, %v4016
  %v4159 = vpack.c.b16 %v4021, %v4019
  %v4160 = vpack.c.b16 %v4022, %v4020
  %v4161 = vpack.c.b16 %v4025, %v4023
  %v4162 = vpack.c.b16 %v4026, %v4024
  %v4163 = vpack.c.b16 %v4029, %v4027
  %v4164 = vpack.c.b16 %v4030, %v4028
  %v4165 = vpack.c.b16 %v4033, %v4031
  %v4166 = vpack.c.b16 %v4034, %v4032
  %v4167 = vpack.c.b16 %v4037, %v4035
  %v4168 = vpack.c.b16 %v4038, %v4036
  %v4169 = vpack.c.b16 %v4041, %v4039
  %v4170 = vpack.c.b16 %v4042, %v4040
  %4299 = vmatprep.subr.bf16.mxu0 %v4044
  %4300 = vmatpush1.bf16.msra.mxu0 %v4043
  %4301 = vmatprep.subr.bf16.mxu0 %v4046
  %4302 = vmatpush1.bf16.msra.mxu0 %v4045
  %4303 = vmatprep.subr.bf16.mxu0 %v4048
  %4304 = vmatpush1.bf16.msra.mxu0 %v4047
  %4305 = vmatprep.subr.bf16.mxu0 %v4050
  %4306 = vmatpush1.bf16.msra.mxu0 %v4049
  %4307 = vmatprep.subr.bf16.mxu0 %v4052
  %4308 = vmatpush1.bf16.msra.mxu0 %v4051
  %4309 = vmatprep.subr.bf16.mxu0 %v4054
  %4310 = vmatpush1.bf16.msra.mxu0 %v4053
  %4311 = vmatprep.subr.bf16.mxu0 %v4056
  %4312 = vmatpush1.bf16.msra.mxu0 %v4055
  %4313 = vmatprep.subr.bf16.mxu0 %v4058
  %4314 = vmatpush1.bf16.msra.mxu0 %v4057
  %4315 = vmatprep.subr.bf16.mxu0 %v4060
  %4316 = vmatpush1.bf16.msra.mxu0 %v4059
  %4317 = vmatprep.subr.bf16.mxu0 %v4062
  %4318 = vmatpush1.bf16.msra.mxu0 %v4061
  %4319 = vmatprep.subr.bf16.mxu0 %v4064
  %4320 = vmatpush1.bf16.msra.mxu0 %v4063
  %4321 = vmatprep.subr.bf16.mxu0 %v4066
  %4322 = vmatpush1.bf16.msra.mxu0 %v4065
  %4323 = vmatprep.subr.bf16.mxu0 %v4068
  %4324 = vmatpush1.bf16.msra.mxu0 %v4067
  %4325 = vmatprep.subr.bf16.mxu0 %v4070
  %4326 = vmatpush1.bf16.msra.mxu0 %v4069
  %4327 = vmatprep.subr.bf16.mxu0 %v4072
  %4328 = vmatpush1.bf16.msra.mxu0 %v4071
  %4329 = vmatprep.subr.bf16.mxu0 %v4074
  %4330 = vmatpush1.bf16.msra.mxu0 %v4073
  %4331 = vmatprep.mubr.bf16.mxu0 %v3512
  %4332 = vmatmul.mubr.bf16.gmra.mrb[0].mxu0 %v3511
  %v4333 = vpop.f32.mrb[0].mxu0
  %v4334 = vadd.f32 %v3652, %v4333
  %v4335 = vpop.f32.mrb[0].mxu0
  %v4336 = vadd.f32 %v3656, %v4335
  %v4337 = vpop.f32.mrb[0].mxu0
  %v4338 = vadd.f32 %v3652, %v4337
  %v4339 = vpop.f32.mrb[0].mxu0
  %v4340 = vadd.f32 %v3656, %v4339
  %4341 = vdwg.mxu0
  %4342 = vmatprep.subr.bf16.mxu0 %v4076
  %4343 = vmatpush1.bf16.msra.mxu0 %v4075
  %4344 = vmatprep.subr.bf16.mxu0 %v4078
  %4345 = vmatpush1.bf16.msra.mxu0 %v4077
  %4346 = vmatprep.subr.bf16.mxu0 %v4080
  %4347 = vmatpush1.bf16.msra.mxu0 %v4079
  %4348 = vmatprep.subr.bf16.mxu0 %v4082
  %4349 = vmatpush1.bf16.msra.mxu0 %v4081
  %4350 = vmatprep.subr.bf16.mxu0 %v4084
  %4351 = vmatpush1.bf16.msra.mxu0 %v4083
  %4352 = vmatprep.subr.bf16.mxu0 %v4086
  %4353 = vmatpush1.bf16.msra.mxu0 %v4085
  %4354 = vmatprep.subr.bf16.mxu0 %v4088
  %4355 = vmatpush1.bf16.msra.mxu0 %v4087
  %4356 = vmatprep.subr.bf16.mxu0 %v4090
  %4357 = vmatpush1.bf16.msra.mxu0 %v4089
  %4358 = vmatprep.subr.bf16.mxu0 %v4092
  %4359 = vmatpush1.bf16.msra.mxu0 %v4091
  %4360 = vmatprep.subr.bf16.mxu0 %v4094
  %4361 = vmatpush1.bf16.msra.mxu0 %v4093
  %4362 = vmatprep.subr.bf16.mxu0 %v4096
  %4363 = vmatpush1.bf16.msra.mxu0 %v4095
  %4364 = vmatprep.subr.bf16.mxu0 %v4098
  %4365 = vmatpush1.bf16.msra.mxu0 %v4097
  %4366 = vmatprep.subr.bf16.mxu0 %v4100
  %4367 = vmatpush1.bf16.msra.mxu0 %v4099
  %4368 = vmatprep.subr.bf16.mxu0 %v4102
  %4369 = vmatpush1.bf16.msra.mxu0 %v4101
  %4370 = vmatprep.subr.bf16.mxu0 %v4104
  %4371 = vmatpush1.bf16.msra.mxu0 %v4103
  %4372 = vmatprep.subr.bf16.mxu0 %v4106
  %4373 = vmatpush1.bf16.msra.mxu0 %v4105
  %4374 = vmatprep.mubr.bf16.mxu0 %v3514
  %4375 = vmatmul.mubr.bf16.gmra.mrb[0].mxu0 %v3513
  %v4376 = vpop.f32.mrb[0].mxu0
  %v4377 = vadd.f32 %v4334, %v4376
  %v4378 = vpop.f32.mrb[0].mxu0
  %v4379 = vadd.f32 %v4336, %v4378
  %v4380 = vpop.f32.mrb[0].mxu0
  %v4381 = vadd.f32 %v4338, %v4380
  %v4382 = vpop.f32.mrb[0].mxu0
  %v4383 = vadd.f32 %v4340, %v4382
  %4384 = vdwg.mxu0
  %4385 = vmatprep.subr.bf16.mxu0 %v4108
  %4386 = vmatpush1.bf16.msra.mxu0 %v4107
  %4387 = vmatprep.subr.bf16.mxu0 %v4110
  %4388 = vmatpush1.bf16.msra.mxu0 %v4109
  %4389 = vmatprep.subr.bf16.mxu0 %v4112
  %4390 = vmatpush1.bf16.msra.mxu0 %v4111
  %4391 = vmatprep.subr.bf16.mxu0 %v4114
  %4392 = vmatpush1.bf16.msra.mxu0 %v4113
  %4393 = vmatprep.subr.bf16.mxu0 %v4116
  %4394 = vmatpush1.bf16.msra.mxu0 %v4115
  %4395 = vmatprep.subr.bf16.mxu0 %v4118
  %4396 = vmatpush1.bf16.msra.mxu0 %v4117
  %4397 = vmatprep.subr.bf16.mxu0 %v4120
  %4398 = vmatpush1.bf16.msra.mxu0 %v4119
  %4399 = vmatprep.subr.bf16.mxu0 %v4122
  %4400 = vmatpush1.bf16.msra.mxu0 %v4121
  %4401 = vmatprep.subr.bf16.mxu0 %v4124
  %4402 = vmatpush1.bf16.msra.mxu0 %v4123
  %4403 = vmatprep.subr.bf16.mxu0 %v4126
  %4404 = vmatpush1.bf16.msra.mxu0 %v4125
  %4405 = vmatprep.subr.bf16.mxu0 %v4128
  %4406 = vmatpush1.bf16.msra.mxu0 %v4127
  %4407 = vmatprep.subr.bf16.mxu0 %v4130
  %4408 = vmatpush1.bf16.msra.mxu0 %v4129
  %4409 = vmatprep.subr.bf16.mxu0 %v4132
  %4410 = vmatpush1.bf16.msra.mxu0 %v4131
  %4411 = vmatprep.subr.bf16.mxu0 %v4134
  %4412 = vmatpush1.bf16.msra.mxu0 %v4133
  %4413 = vmatprep.subr.bf16.mxu0 %v4136
  %4414 = vmatpush1.bf16.msra.mxu0 %v4135
  %4415 = vmatprep.subr.bf16.mxu0 %v4138
  %4416 = vmatpush1.bf16.msra.mxu0 %v4137
  %4417 = vmatprep.mubr.bf16.mxu0 %v3516
  %4418 = vmatmul.mubr.bf16.gmra.mrb[0].mxu0 %v3515
  %v4419 = vpop.f32.mrb[0].mxu0
  %v4420 = vadd.f32 %v4377, %v4419
  %v4421 = vpop.f32.mrb[0].mxu0
  %v4422 = vadd.f32 %v4379, %v4421
  %v4423 = vpop.f32.mrb[0].mxu0
  %v4424 = vadd.f32 %v4381, %v4423
  %v4425 = vpop.f32.mrb[0].mxu0
  %v4426 = vadd.f32 %v4383, %v4425
  %4427 = vdwg.mxu0
  %4428 = vmatprep.subr.bf16.mxu0 %v4140
  %4429 = vmatpush1.bf16.msra.mxu0 %v4139
  %4430 = vmatprep.subr.bf16.mxu0 %v4142
  %4431 = vmatpush1.bf16.msra.mxu0 %v4141
  %4432 = vmatprep.subr.bf16.mxu0 %v4144
  %4433 = vmatpush1.bf16.msra.mxu0 %v4143
  %4434 = vmatprep.subr.bf16.mxu0 %v4146
  %4435 = vmatpush1.bf16.msra.mxu0 %v4145
  %4436 = vmatprep.subr.bf16.mxu0 %v4148
  %4437 = vmatpush1.bf16.msra.mxu0 %v4147
  %4438 = vmatprep.subr.bf16.mxu0 %v4150
  %4439 = vmatpush1.bf16.msra.mxu0 %v4149
  %4440 = vmatprep.subr.bf16.mxu0 %v4152
  %4441 = vmatpush1.bf16.msra.mxu0 %v4151
  %4442 = vmatprep.subr.bf16.mxu0 %v4154
  %4443 = vmatpush1.bf16.msra.mxu0 %v4153
  %4444 = vmatprep.subr.bf16.mxu0 %v4156
  %4445 = vmatpush1.bf16.msra.mxu0 %v4155
  %4446 = vmatprep.subr.bf16.mxu0 %v4158
  %4447 = vmatpush1.bf16.msra.mxu0 %v4157
  %4448 = vmatprep.subr.bf16.mxu0 %v4160
  %4449 = vmatpush1.bf16.msra.mxu0 %v4159
  %4450 = vmatprep.subr.bf16.mxu0 %v4162
  %4451 = vmatpush1.bf16.msra.mxu0 %v4161
  %4452 = vmatprep.subr.bf16.mxu0 %v4164
  %4453 = vmatpush1.bf16.msra.mxu0 %v4163
  %4454 = vmatprep.subr.bf16.mxu0 %v4166
  %4455 = vmatpush1.bf16.msra.mxu0 %v4165
  %4456 = vmatprep.subr.bf16.mxu0 %v4168
  %4457 = vmatpush1.bf16.msra.mxu0 %v4167
  %4458 = vmatprep.subr.bf16.mxu0 %v4170
  %4459 = vmatpush1.bf16.msra.mxu0 %v4169
  %4460 = vmatprep.mubr.bf16.mxu0 %v3518
  %4461 = vmatmul.mubr.bf16.gmra.mrb[0].mxu0 %v3517
  %v4462 = vpop.f32.mrb[0].mxu0
  %v4463 = vadd.f32 %v4420, %v4462
  %v4464 = vpop.f32.mrb[0].mxu0
  %v4465 = vadd.f32 %v4422, %v4464
  %v4466 = vpop.f32.mrb[0].mxu0
  %v4467 = vadd.f32 %v4424, %v4466
  %v4468 = vpop.f32.mrb[0].mxu0
  %v4469 = vadd.f32 %v4426, %v4468
  %4470 = vdwg.mxu0
  %v4471 = vmax.f32 %v4463, 0.0
  %v4472 = vmax.f32 %v4465, 0.0
  %v4473 = vmax.f32 %v4467, 0.0
  %v4474 = vmax.f32 %v4469, 0.0
  %v4475 = vpack.c.bf16 %v4473, %v4471
  %v4476 = vpack.c.bf16 %v4474, %v4472
  %v4477 = vld [vmem:[%s5] sm:$0xf]
  %v4478 = vld [vmem:[%s5 + $0x4] sm:$0xf]
  %v4479 = vld [vmem:[%s5 + $0x8] sm:$0xf]
  %v4480 = vld [vmem:[%s5 + $0xc] sm:$0xf]
  %v4481 = vld [vmem:[%s5 + $0x10] sm:$0xf]
  %v4482 = vld [vmem:[%s5 + $0x14] sm:$0xf]
  %v4483 = vld [vmem:[%s5 + $0x18] sm:$0xf]
  %v4484 = vld [vmem:[%s5 + $0x1c] sm:$0xf]
  %v4485 = vld [vmem:[%s5 + $0x20] sm:$0xf]
  %v4486 = vld [vmem:[%s5 + $0x24] sm:$0xf]
  %v4487 = vld [vmem:[%s5 + $0x28] sm:$0xf]
  %v4488 = vld [vmem:[%s5 + $0x2c] sm:$0xf]
  %v4489 = vld [vmem:[%s5 + $0x30] sm:$0xf]
  %v4490 = vld [vmem:[%s5 + $0x34] sm:$0xf]
  %v4491 = vld [vmem:[%s5 + $0x38] sm:$0xf]
  %v4492 = vld [vmem:[%s5 + $0x3c] sm:$0xf]
  %v4493 = vld [vmem:[%s5 + $0x40] sm:$0xf]
  %v4494 = vld [vmem:[%s5 + $0x44] sm:$0xf]
  %v4495 = vld [vmem:[%s5 + $0x48] sm:$0xf]
  %v4496 = vld [vmem:[%s5 + $0x4c] sm:$0xf]
  %v4497 = vld [vmem:[%s5 + $0x50] sm:$0xf]
  %v4498 = vld [vmem:[%s5 + $0x54] sm:$0xf]
  %v4499 = vld [vmem:[%s5 + $0x58] sm:$0xf]
  %v4500 = vld [vmem:[%s5 + $0x5c] sm:$0xf]
  %v4501 = vld [vmem:[%s5 + $0x60] sm:$0xf]
  %v4502 = vld [vmem:[%s5 + $0x64] sm:$0xf]
  %v4503 = vld [vmem:[%s5 + $0x68] sm:$0xf]
  %v4504 = vld [vmem:[%s5 + $0x6c] sm:$0xf]
  %v4505 = vld [vmem:[%s5 + $0x70] sm:$0xf]
  %v4506 = vld [vmem:[%s5 + $0x74] sm:$0xf]
  %v4507 = vld [vmem:[%s5 + $0x78] sm:$0xf]
  %v4508 = vld [vmem:[%s5 + $0x7c] sm:$0xf]
  %v4509 = vld [vmem:[%s6] sm:$0x1]
  %v4511 = vlaneseq
  %v4512 = vshrl.u32 %v4511, 7
  %v4513 = vsub.s32 0, %v4512
  %v4514 = vrot.slane %v4509, %v4513
  %v4548 = vunpack.c.l.b16 %v4477
  %v4549 = vunpack.c.l.b16 %v4478
  %v4550 = vunpack.c.l.b16 %v4479
  %v4551 = vunpack.c.l.b16 %v4480
  %v4552 = vunpack.c.l.b16 %v4481
  %v4553 = vunpack.c.l.b16 %v4482
  %v4554 = vunpack.c.l.b16 %v4483
  %v4555 = vunpack.c.l.b16 %v4484
  %v4556 = vunpack.c.l.b16 %v4485
  %v4557 = vunpack.c.l.b16 %v4486
  %v4558 = vunpack.c.l.b16 %v4487
  %v4559 = vunpack.c.l.b16 %v4488
  %v4560 = vunpack.c.l.b16 %v4489
  %v4561 = vunpack.c.l.b16 %v4490
  %v4562 = vunpack.c.l.b16 %v4491
  %v4563 = vunpack.c.l.b16 %v4492
  %v4564 = vunpack.c.l.b16 %v4493
  %v4565 = vunpack.c.l.b16 %v4494
  %v4566 = vunpack.c.l.b16 %v4495
  %v4567 = vunpack.c.l.b16 %v4496
  %v4568 = vunpack.c.l.b16 %v4497
  %v4569 = vunpack.c.l.b16 %v4498
  %v4570 = vunpack.c.l.b16 %v4499
  %v4571 = vunpack.c.l.b16 %v4500
  %v4572 = vunpack.c.l.b16 %v4501
  %v4573 = vunpack.c.l.b16 %v4502
  %v4574 = vunpack.c.l.b16 %v4503
  %v4575 = vunpack.c.l.b16 %v4504
  %v4576 = vunpack.c.l.b16 %v4505
  %v4577 = vunpack.c.l.b16 %v4506
  %v4578 = vunpack.c.l.b16 %v4507
  %v4579 = vunpack.c.l.b16 %v4508
  %v4580 = vpack.c.b16 %v4549, %v4548
  %v4581 = vpack.c.b16 %v4551, %v4550
  %v4582 = vpack.c.b16 %v4553, %v4552
  %v4583 = vpack.c.b16 %v4555, %v4554
  %v4584 = vpack.c.b16 %v4557, %v4556
  %v4585 = vpack.c.b16 %v4559, %v4558
  %v4586 = vpack.c.b16 %v4561, %v4560
  %v4587 = vpack.c.b16 %v4563, %v4562
  %v4588 = vpack.c.b16 %v4565, %v4564
  %v4589 = vpack.c.b16 %v4567, %v4566
  %v4590 = vpack.c.b16 %v4569, %v4568
  %v4591 = vpack.c.b16 %v4571, %v4570
  %v4592 = vpack.c.b16 %v4573, %v4572
  %v4593 = vpack.c.b16 %v4575, %v4574
  %v4594 = vpack.c.b16 %v4577, %v4576
  %v4595 = vpack.c.b16 %v4579, %v4578
  %4612 = vmatprep.subr.bf16.mxu0 0
  %4613 = vmatpush1.bf16.msra.mxu0 %v4580
  %4614 = vmatprep.subr.bf16.mxu0 0
  %4615 = vmatpush1.bf16.msra.mxu0 %v4581
  %4616 = vmatprep.subr.bf16.mxu0 0
  %4617 = vmatpush1.bf16.msra.mxu0 %v4582
  %4618 = vmatprep.subr.bf16.mxu0 0
  %4619 = vmatpush1.bf16.msra.mxu0 %v4583
  %4620 = vmatprep.subr.bf16.mxu0 0
  %4621 = vmatpush1.bf16.msra.mxu0 %v4584
  %4622 = vmatprep.subr.bf16.mxu0 0
  %4623 = vmatpush1.bf16.msra.mxu0 %v4585
  %4624 = vmatprep.subr.bf16.mxu0 0
  %4625 = vmatpush1.bf16.msra.mxu0 %v4586
  %4626 = vmatprep.subr.bf16.mxu0 0
  %4627 = vmatpush1.bf16.msra.mxu0 %v4587
  %4628 = vmatprep.subr.bf16.mxu0 0
  %4629 = vmatpush1.bf16.msra.mxu0 %v4588
  %4630 = vmatprep.subr.bf16.mxu0 0
  %4631 = vmatpush1.bf16.msra.mxu0 %v4589
  %4632 = vmatprep.subr.bf16.mxu0 0
  %4633 = vmatpush1.bf16.msra.mxu0 %v4590
  %4634 = vmatprep.subr.bf16.mxu0 0
  %4635 = vmatpush1.bf16.msra.mxu0 %v4591
  %4636 = vmatprep.subr.bf16.mxu0 0
  %4637 = vmatpush1.bf16.msra.mxu0 %v4592
  %4638 = vmatprep.subr.bf16.mxu0 0
  %4639 = vmatpush1.bf16.msra.mxu0 %v4593
  %4640 = vmatprep.subr.bf16.mxu0 0
  %4641 = vmatpush1.bf16.msra.mxu0 %v4594
  %4642 = vmatprep.subr.bf16.mxu0 0
  %4643 = vmatpush1.bf16.msra.mxu0 %v4595
  %4644 = vmatprep.mubr.bf16.mxu0 %v4476
  %4645 = vmatmul.mubr.bf16.gmra.mrb[0].mxu0 %v4475
  %v4646 = vpop.f32.mrb[0].mxu0
  %v4647 = vadd.f32 %v4514, %v4646
  %v4648 = vpop.f32.mrb[0].mxu0
  %v4649 = vpop.f32.mrb[0].mxu0
  %v4650 = vadd.f32 %v4514, %v4649
  %v4651 = vpop.f32.mrb[0].mxu0
  %4652 = vdwg.mxu0
  %v4653 = vmax.f32 %v4647, 0.0
  %v4654 = vmax.f32 %v4650, 0.0
  %v4655 = vpack.c.bf16 %v4654, %v4653
  %v4656 = vld [vmem:[%s7] sm:$0xf]
  %v4657 = vld [vmem:[%s7 + $0x4] sm:$0xf]
  %v4658 = vld [vmem:[%s7 + $0x8] sm:$0xf]
  %v4659 = vld [vmem:[%s7 + $0xc] sm:$0xf]
  %v4660 = vld [vmem:[%s7 + $0x10] sm:$0xf]
  %v4661 = vld [vmem:[%s7 + $0x14] sm:$0xf]
  %v4662 = vld [vmem:[%s7 + $0x18] sm:$0xf]
  %v4663 = vld [vmem:[%s7 + $0x1c] sm:$0xf]
  %v4664 = vld [vmem:[%s7 + $0x20] sm:$0xf]
  %v4665 = vld [vmem:[%s7 + $0x24] sm:$0xf]
  %v4666 = vld [vmem:[%s7 + $0x28] sm:$0xf]
  %v4667 = vld [vmem:[%s7 + $0x2c] sm:$0xf]
  %v4668 = vld [vmem:[%s7 + $0x30] sm:$0xf]
  %v4669 = vld [vmem:[%s7 + $0x34] sm:$0xf]
  %v4670 = vld [vmem:[%s7 + $0x38] sm:$0xf]
  %v4671 = vld [vmem:[%s7 + $0x3c] sm:$0xf]
  %v4672 = vld [vmem:[%s8] sm:$0x1]
  %v4674 = vlaneseq
  %v4675 = vshrl.u32 %v4674, 7
  %v4676 = vsub.s32 0, %v4675
  %v4677 = vrot.slane %v4672, %v4676
  %v4695 = vunpack.c.l.b16 %v4656
  %v4696 = vunpack.c.l.b16 %v4657
  %v4697 = vunpack.c.l.b16 %v4658
  %v4698 = vunpack.c.l.b16 %v4659
  %v4699 = vunpack.c.l.b16 %v4660
  %v4700 = vunpack.c.l.b16 %v4661
  %v4701 = vunpack.c.l.b16 %v4662
  %v4702 = vunpack.c.l.b16 %v4663
  %v4703 = vunpack.c.l.b16 %v4664
  %v4704 = vunpack.c.l.b16 %v4665
  %v4705 = vunpack.c.l.b16 %v4666
  %v4706 = vunpack.c.l.b16 %v4667
  %v4707 = vunpack.c.l.b16 %v4668
  %v4708 = vunpack.c.l.b16 %v4669
  %v4709 = vunpack.c.l.b16 %v4670
  %v4710 = vunpack.c.l.b16 %v4671
  %v4711 = vpack.c.b16 %v4696, %v4695
  %v4712 = vpack.c.b16 %v4698, %v4697
  %v4713 = vpack.c.b16 %v4700, %v4699
  %v4714 = vpack.c.b16 %v4702, %v4701
  %v4715 = vpack.c.b16 %v4704, %v4703
  %v4716 = vpack.c.b16 %v4706, %v4705
  %v4717 = vpack.c.b16 %v4708, %v4707
  %v4718 = vpack.c.b16 %v4710, %v4709
  %4727 = vmatprep.subr.bf16.mxu0 0
  %4728 = vmatpush1.bf16.msra.mxu0 %v4711
  %4729 = vmatprep.subr.bf16.mxu0 0
  %4730 = vmatpush1.bf16.msra.mxu0 %v4712
  %4731 = vmatprep.subr.bf16.mxu0 0
  %4732 = vmatpush1.bf16.msra.mxu0 %v4713
  %4733 = vmatprep.subr.bf16.mxu0 0
  %4734 = vmatpush1.bf16.msra.mxu0 %v4714
  %4735 = vmatprep.subr.bf16.mxu0 0
  %4736 = vmatpush1.bf16.msra.mxu0 %v4715
  %4737 = vmatprep.subr.bf16.mxu0 0
  %4738 = vmatpush1.bf16.msra.mxu0 %v4716
  %4739 = vmatprep.subr.bf16.mxu0 0
  %4740 = vmatpush1.bf16.msra.mxu0 %v4717
  %4741 = vmatprep.subr.bf16.mxu0 0
  %4742 = vmatpush1.bf16.msra.mxu0 %v4718
  %4743 = vmatprep.subr.bf16.mxu0 0
  %4744 = vmatpush1.bf16.msra.mxu0 0
  %4745 = vmatprep.subr.bf16.mxu0 0
  %4746 = vmatpush1.bf16.msra.mxu0 0
  %4747 = vmatprep.subr.bf16.mxu0 0
  %4748 = vmatpush1.bf16.msra.mxu0 0
  %4749 = vmatprep.subr.bf16.mxu0 0
  %4750 = vmatpush1.bf16.msra.mxu0 0
  %4751 = vmatprep.subr.bf16.mxu0 0
  %4752 = vmatpush1.bf16.msra.mxu0 0
  %4753 = vmatprep.subr.bf16.mxu0 0
  %4754 = vmatpush1.bf16.msra.mxu0 0
  %4755 = vmatprep.subr.bf16.mxu0 0
  %4756 = vmatpush1.bf16.msra.mxu0 0
  %4757 = vmatprep.subr.bf16.mxu0 0
  %4758 = vmatpush1.bf16.msra.mxu0 0
  %4759 = vmatprep.mubr.bf16.mxu0 0
  %4760 = vmatmul.mubr.bf16.gmra.mrb[0].mxu0 %v4655
  %v4761 = vpop.f32.mrb[0].mxu0
  %v4762 = vadd.f32 %v4677, %v4761
  %v4763 = vpop.f32.mrb[0].mxu0
  %v4764 = vpop.f32.mrb[0].mxu0
  %v4765 = vadd.f32 %v4677, %v4764
  %v4766 = vpop.f32.mrb[0].mxu0
  %4767 = vdwg.mxu0
  %v4768 = vsub.f32 0.0, %v4762
  %v4769 = vsub.f32 0.0, %v4765
  %v4770 = vmul.f32 %v4768, 1.442695
  %v4771 = vpow.pop %v4770
  %v4772 = vmul.f32 %v4769, 1.442695
  %v4773 = vpow.pop %v4772
  %v4774 = vadd.f32 %v4771, 1.0
  %v4775 = vadd.f32 %v4773, 1.0
  %v4776 = vrcp.pop %v4774
  %v4777 = vmul.f32 1.0, %v4776
  %v4778 = vrcp.pop %v4775
  %v4779 = vmul.f32 1.0, %v4778
  %4780 = vst [vmem:[%s9] sm:$0xff] %v4777
  %4781 = vst [vmem:[%s9 + $0x8] sm:$0xff] %v4779
  // Predicated region
  $region38: #{_lambda_.1} parent=0 // pred_check
    _
  $region39: #{_lambda_.1} parent=0 // pred_check_branch
    %4783 = sbr.rel (0) target = $region41
  $region40: #{_lambda_.1} parent=0 // pred_region
    _
  $region41: #{_lambda_.1} parent=0 // pred_fallthru
    _
  // Predicated region
  $region42: #{_lambda_.1} parent=0 // pred_check
    _
  $region43: #{_lambda_.1} parent=0 // pred_check_branch
    %4785 = sbr.rel (0) target = $region45
  $region44: #{_lambda_.1} parent=0 // pred_region
    _
  $region45: #{_lambda_.1} parent=0 // pred_fallthru
    _

</llo_original>
